<compile_context>
chip_gen: v7x
topology: tpu7x:2x2x1
jax: 0.10.0
libtpu: 0.0.40
codegen_flags: <defaults>
</compile_context>

<pallas_src>
import jax
import jax.numpy as jnp
from jax.experimental import pallas as pl
from jax.experimental.pallas import tpu as pltpu

BN_EPS = 1e-5


def _mlp_kernel(x_ref,
                w1_ref, g1_ref, be1_ref,
                w2_ref, g2_ref, be2_ref,
                w3_ref, b3_ref,
                out_ref,
                acc_ref):
    i = pl.program_id(0)

    @pl.when(i == 0)
    def _():
        acc_ref[...] = jnp.zeros_like(acc_ref)

    # bf16 activations feed the MXU's native bf16 path; accumulation stays f32.
    x = x_ref[...].astype(jnp.bfloat16)                               # (B, D)

    # ---- layer1 (column tile of H1): Linear (bias cancelled by BN) + BatchNorm1d + ReLU ----
    h = jnp.dot(x, w1_ref[...], preferred_element_type=jnp.float32)  # (B, TH1) f32
    mean = jnp.mean(h, axis=0, keepdims=True)
    var = jnp.mean((h - mean) * (h - mean), axis=0, keepdims=True)   # biased var (PyTorch norm.)
    h = (h - mean) * jax.lax.rsqrt(var + BN_EPS) * g1_ref[...] + be1_ref[...]
    h = jnp.maximum(h, 0.0)

    # ---- layer2 partial matmul: accumulate pre-activation over H1 tiles (f32 acc) ----
    acc_ref[...] += jnp.dot(h.astype(jnp.bfloat16), w2_ref[...],
                            preferred_element_type=jnp.float32)      # (B, H2)

    # ---- finalize on the last H1 tile: BN2 + ReLU, then layer3 as a lane reduction ----
    @pl.when(i == pl.num_programs(0) - 1)
    def _():
        h2 = acc_ref[...]
        mean2 = jnp.mean(h2, axis=0, keepdims=True)
        var2 = jnp.mean((h2 - mean2) * (h2 - mean2), axis=0, keepdims=True)
        e = (h2 - mean2) * jax.lax.rsqrt(var2 + BN_EPS) * g2_ref[...] + be2_ref[...]
        e = jnp.maximum(e, 0.0)                                      # embedding "e"
        out = jnp.sum(e * w3_ref[...], axis=-1, keepdims=True) + b3_ref[0, 0]
        out_ref[...] = out.astype(out_ref.dtype)


def mlp_forward(x, params, *, tile_h1=1024):
    """x: (B, D) float32. params: dict (see init_params). Returns (B, 1) float32."""
    B, D = x.shape
    H1 = params["w1"].shape[1]
    H2 = params["w2"].shape[1]
    tile_h1 = min(tile_h1, H1)
    assert H1 % tile_h1 == 0, (H1, tile_h1)
    n_tiles = H1 // tile_h1

    # Residency guard: x (f32) and the f32 layer-2 accumulator stay in VMEM every step.
    # Keep them well under the 32 MiB scoped limit (v7x has only 64 MiB physical VMEM).
    resident_bytes = B * D * 4 + B * H2 * 4
    assert resident_bytes <= 8 * 1024 * 1024, (
        f"batch too large for full-batch-resident BN ({resident_bytes} bytes); "
        "add a two-pass BN / batch-tiling path")

    # One-time layout op (outside the kernel): make each W1 column tile a contiguous DMA.
    w1_tiled = params["w1"].reshape(D, n_tiles, tile_h1).transpose(1, 0, 2)  # (n_tiles, D, TH1)

    # NOTE: b1 / b2 are deliberately NOT passed — exactly cancelled by training-mode BN.
    args = (x,
            w1_tiled, params["g1"], params["be1"],
            params["w2"], params["g2"], params["be2"],
            params["w3"], params["b3"])

    in_specs = [
        pl.BlockSpec((B, D),              lambda i: (0, 0)),    # x: fully resident every step
        pl.BlockSpec((None, D, tile_h1),  lambda i: (i, 0, 0)), # W1 tile (contiguous, bf16)
        pl.BlockSpec((1, tile_h1),        lambda i: (0, i)),    # gamma1 tile
        pl.BlockSpec((1, tile_h1),        lambda i: (0, i)),    # beta1 tile
        pl.BlockSpec((tile_h1, H2),       lambda i: (i, 0)),    # W2 row tile (contiguous, bf16)
        pl.BlockSpec((1, H2),             lambda i: (0, 0)),    # gamma2
        pl.BlockSpec((1, H2),             lambda i: (0, 0)),    # beta2
        pl.BlockSpec((1, H2),             lambda i: (0, 0)),    # w3 (lane-major row)
        pl.BlockSpec(memory_space=pltpu.MemorySpace.SMEM),      # b3 scalar via SMEM
    ]

    kernel = pl.pallas_call(
        _mlp_kernel,
        out_shape=jax.ShapeDtypeStruct((B, 1), jnp.float32),
        grid=(n_tiles,),
        in_specs=in_specs,
        out_specs=pl.BlockSpec((B, 1), lambda i: (0, 0)),
        scratch_shapes=[pltpu.VMEM((B, H2), jnp.float32)],
        compiler_params=pltpu.CompilerParams(
            dimension_semantics=("arbitrary",),          # H1 is a reduction axis
            vmem_limit_bytes=32 * 1024 * 1024,           # fits v7x (64 MiB physical / 32 scoped)
        ),
    )
    return kernel(*args)


def init_params(key, dim, h1=2048, h2=512):
    """Deterministic synthetic parameters (PyTorch-Linear-style uniform init).

    W1 / W2 are stored in bf16 (the kernel accumulates in f32); everything else stays f32.
    """
    ks = jax.random.split(key, 10)

    def lin(kw, kb, fan_in, fan_out):
        bound = 1.0 / jnp.sqrt(fan_in)
        w = jax.random.uniform(kw, (fan_in, fan_out), jnp.float32, -bound, bound)
        b = jax.random.uniform(kb, (1, fan_out), jnp.float32, -bound, bound)
        return w, b

    w1, b1 = lin(ks[0], ks[1], dim, h1)
    w2, b2 = lin(ks[2], ks[3], h1, h2)
    w1 = w1.astype(jnp.bfloat16)
    w2 = w2.astype(jnp.bfloat16)
    # layer3 weight stored lane-major: (1, h2); bias (1, 1). Tiny -> keep f32.
    bound3 = 1.0 / jnp.sqrt(h2)
    w3 = jax.random.uniform(ks[4], (1, h2), jnp.float32, -bound3, bound3)
    b3 = jax.random.uniform(ks[5], (1, 1), jnp.float32, -bound3, bound3)
    # BatchNorm affine params (gamma, beta); non-trivial values to exercise the math.
    g1 = 1.0 + 0.1 * jax.random.normal(ks[6], (1, h1), jnp.float32)
    be1 = 0.1 * jax.random.normal(ks[7], (1, h1), jnp.float32)
    g2 = 1.0 + 0.1 * jax.random.normal(ks[8], (1, h2), jnp.float32)
    be2 = 0.1 * jax.random.normal(ks[9], (1, h2), jnp.float32)
    return dict(w1=w1, b1=b1, g1=g1, be1=be1,
                w2=w2, b2=b2, g2=g2, be2=be2,
                w3=w3, b3=b3)


def mlp_reference(x, p):
    """Pure-JAX f32 reference matching PyTorch training-mode forward (biases included).

    Uses the same bf16-rounded weights/activations at the matmul inputs as the kernel so the
    comparison isolates kernel correctness rather than quantization error.
    """
    def bn(h, g, b):
        m = jnp.mean(h, axis=0, keepdims=True)
        v = jnp.mean((h - m) ** 2, axis=0, keepdims=True)
        return (h - m) / jnp.sqrt(v + BN_EPS) * g + b

    w1 = p["w1"].astype(jnp.float32)
    w2 = p["w2"].astype(jnp.float32)
    xb = x.astype(jnp.bfloat16).astype(jnp.float32)
    h = jnp.maximum(bn(xb @ w1 + p["b1"], p["g1"], p["be1"]), 0.0)
    hb = h.astype(jnp.bfloat16).astype(jnp.float32)
    e = jnp.maximum(bn(hb @ w2 + p["b2"], p["g2"], p["be2"]), 0.0)
    return e @ p["w3"].T + p["b3"]


if __name__ == "__main__":
    # Small-but-consistent shapes: batch=8, dim=512 (hidden sizes 2048/512/1 fixed by the module).
    B, DIM = 8, 512
    key = jax.random.PRNGKey(0)
    kx, kp = jax.random.split(key)
    x = jax.random.normal(kx, (B, DIM), jnp.float32)
    params = init_params(kp, DIM)

    out = mlp_forward(x, params)
    out = jax.block_until_ready(out)

    ref = mlp_reference(x, params)
    assert out.shape == (B, 1), out.shape
    assert jnp.allclose(out, ref, atol=2e-2, rtol=2e-2), (
        float(jnp.max(jnp.abs(out - ref))))
    print("KERNEL_OK")
</pallas_src>

<mosaic_0001>
module attributes {stable_mosaic.version = 11 : i64} {
  func.func @_mlp_kernel(%arg0: i32, %arg1: memref<8x512xf32, #tpu.memory_space<vmem>>, %arg2: memref<1x512x1024xbf16, #tpu.memory_space<vmem>>, %arg3: memref<1x1024xf32, #tpu.memory_space<vmem>>, %arg4: memref<1x1024xf32, #tpu.memory_space<vmem>>, %arg5: memref<1024x512xbf16, #tpu.memory_space<vmem>>, %arg6: memref<1x512xf32, #tpu.memory_space<vmem>>, %arg7: memref<1x512xf32, #tpu.memory_space<vmem>>, %arg8: memref<1x512xf32, #tpu.memory_space<vmem>>, %arg9: memref<1x1xf32, #tpu.memory_space<smem>>, %arg10: memref<8x1xf32, #tpu.memory_space<vmem>>, %arg11: memref<8x512xf32, #tpu.memory_space<vmem>>) attributes {dimension_semantics = [#tpu.dimension_semantics<arbitrary>], iteration_bounds = array<i64: 2>, scalar_prefetch = 0 : i64, scratch_operands = 1 : i64, tpu.core_type = #tpu.core_type<tc>, window_params = [{pipeline_mode = #tpu.pipeline_mode<synchronous>, transform_indices = @transform_0, window_bounds = array<i64: 8, 512>}, {transform_indices = @transform_1, window_bounds = array<i64: 1, 512, 1024>}, {transform_indices = @transform_2, window_bounds = array<i64: 1, 1024>}, {transform_indices = @transform_3, window_bounds = array<i64: 1, 1024>}, {transform_indices = @transform_4, window_bounds = array<i64: 1024, 512>}, {pipeline_mode = #tpu.pipeline_mode<synchronous>, transform_indices = @transform_5, window_bounds = array<i64: 1, 512>}, {pipeline_mode = #tpu.pipeline_mode<synchronous>, transform_indices = @transform_6, window_bounds = array<i64: 1, 512>}, {pipeline_mode = #tpu.pipeline_mode<synchronous>, transform_indices = @transform_7, window_bounds = array<i64: 1, 512>}, {transform_indices = @transform_8, window_bounds = array<i64: 1, 1>}, {pipeline_mode = #tpu.pipeline_mode<synchronous>, transform_indices = @transform_9, window_bounds = array<i64: 8, 1>}]} {
    %c0_i32 = arith.constant 0 : i32
    %0 = arith.cmpi eq, %arg0, %c0_i32 : i32
    %1 = arith.extui %0 : i1 to i32
    %c0_i32_0 = arith.constant 0 : i32
    %2 = arith.cmpi ne, %1, %c0_i32_0 : i32
    scf.if %2 {
      %cst_23 = arith.constant 0.000000e+00 : f32
      %45 = vector.broadcast %cst_23 : f32 to vector<8x512xf32>
      %c0_24 = arith.constant 0 : index
      %c0_25 = arith.constant 0 : index
      %46 = vector.load %arg11[%c0_24, %c0_25] : memref<8x512xf32, #tpu.memory_space<vmem>>, vector<8x512xf32>
      tpu.vector_store %arg11[%c0_24, %c0_25], %45 {strides = array<i32>} : memref<8x512xf32, #tpu.memory_space<vmem>>, vector<8x512xf32>,
    } else {
    }
    %c0 = arith.constant 0 : index
    %c0_1 = arith.constant 0 : index
    %3 = vector.load %arg1[%c0, %c0_1] : memref<8x512xf32, #tpu.memory_space<vmem>>, vector<8x512xf32>
    %4 = arith.truncf %3 : vector<8x512xf32> to vector<8x512xbf16>
    %c0_2 = arith.constant 0 : index
    %c0_3 = arith.constant 0 : index
    %c0_4 = arith.constant 0 : index
    %5 = vector.load %arg2[%c0_2, %c0_3, %c0_4] : memref<1x512x1024xbf16, #tpu.memory_space<vmem>>, vector<1x512x1024xbf16>
    %6 = vector.shape_cast %5 : vector<1x512x1024xbf16> to vector<512x1024xbf16>
    %cst = arith.constant dense<0.000000e+00> : vector<8x1024xf32>
    %7 = tpu.matmul %4, %6, %cst {dimension_numbers = #tpu.dot_dimension_numbers<[1], [0], [0], [1], [0, 0, 1, 1], [], []>} : vector<8x512xbf16>, vector<512x1024xbf16>, vector<8x1024xf32> -> vector<8x1024xf32>
    %cst_5 = arith.constant dense<0.000000e+00> : vector<1024xf32>
    %8 = vector.multi_reduction <add>, %7, %cst_5 [0] : vector<8x1024xf32> to vector<1024xf32>
    %9 = vector.shape_cast %8 : vector<1024xf32> to vector<1x1024xf32>
    %cst_6 = arith.constant 8.000000e+00 : f32
    %10 = vector.broadcast %cst_6 : f32 to vector<1x1024xf32>
    %11 = arith.divf %9, %10 : vector<1x1024xf32>
    %12 = vector.broadcast %11 : vector<1x1024xf32> to vector<8x1024xf32>
    %13 = arith.subf %7, %12 : vector<8x1024xf32>
    %14 = vector.broadcast %11 : vector<1x1024xf32> to vector<8x1024xf32>
    %15 = arith.subf %7, %14 : vector<8x1024xf32>
    %16 = arith.mulf %13, %15 : vector<8x1024xf32>
    %cst_7 = arith.constant dense<0.000000e+00> : vector<1024xf32>
    %17 = vector.multi_reduction <add>, %16, %cst_7 [0] : vector<8x1024xf32> to vector<1024xf32>
    %18 = vector.shape_cast %17 : vector<1024xf32> to vector<1x1024xf32>
    %cst_8 = arith.constant 8.000000e+00 : f32
    %19 = vector.broadcast %cst_8 : f32 to vector<1x1024xf32>
    %20 = arith.divf %18, %19 : vector<1x1024xf32>
    %21 = vector.broadcast %11 : vector<1x1024xf32> to vector<8x1024xf32>
    %22 = arith.subf %7, %21 : vector<8x1024xf32>
    %cst_9 = arith.constant 9.99999974E-6 : f32
    %23 = vector.broadcast %cst_9 : f32 to vector<1x1024xf32>
    %24 = arith.addf %20, %23 : vector<1x1024xf32>
    %25 = math.rsqrt %24 : vector<1x1024xf32>
    %26 = vector.broadcast %25 : vector<1x1024xf32> to vector<8x1024xf32>
    %27 = arith.mulf %22, %26 : vector<8x1024xf32>
    %c0_10 = arith.constant 0 : index
    %c0_11 = arith.constant 0 : index
    %28 = vector.load %arg3[%c0_10, %c0_11] : memref<1x1024xf32, #tpu.memory_space<vmem>>, vector<1x1024xf32>
    %29 = vector.broadcast %28 : vector<1x1024xf32> to vector<8x1024xf32>
    %30 = arith.mulf %27, %29 : vector<8x1024xf32>
    %c0_12 = arith.constant 0 : index
    %c0_13 = arith.constant 0 : index
    %31 = vector.load %arg4[%c0_12, %c0_13] : memref<1x1024xf32, #tpu.memory_space<vmem>>, vector<1x1024xf32>
    %32 = vector.broadcast %31 : vector<1x1024xf32> to vector<8x1024xf32>
    %33 = arith.addf %30, %32 : vector<8x1024xf32>
    %cst_14 = arith.constant 0.000000e+00 : f32
    %34 = vector.broadcast %cst_14 : f32 to vector<8x1024xf32>
    %35 = arith.maximumf %33, %34 : vector<8x1024xf32>
    %c0_15 = arith.constant 0 : index
    %c0_16 = arith.constant 0 : index
    %36 = vector.load %arg11[%c0_15, %c0_16] : memref<8x512xf32, #tpu.memory_space<vmem>>, vector<8x512xf32>
    %37 = arith.truncf %35 : vector<8x1024xf32> to vector<8x1024xbf16>
    %c0_17 = arith.constant 0 : index
    %c0_18 = arith.constant 0 : index
    %38 = vector.load %arg5[%c0_17, %c0_18] : memref<1024x512xbf16, #tpu.memory_space<vmem>>, vector<1024x512xbf16>
    %cst_19 = arith.constant dense<0.000000e+00> : vector<8x512xf32>
    %39 = tpu.matmul %37, %38, %cst_19 {dimension_numbers = #tpu.dot_dimension_numbers<[1], [0], [0], [1], [0, 0, 1, 1], [], []>} : vector<8x1024xbf16>, vector<1024x512xbf16>, vector<8x512xf32> -> vector<8x512xf32>
    %40 = arith.addf %36, %39 : vector<8x512xf32>
    %c0_20 = arith.constant 0 : index
    %c0_21 = arith.constant 0 : index
    %41 = vector.load %arg11[%c0_20, %c0_21] : memref<8x512xf32, #tpu.memory_space<vmem>>, vector<8x512xf32>
    tpu.vector_store %arg11[%c0_20, %c0_21], %40 {strides = array<i32>} : memref<8x512xf32, #tpu.memory_space<vmem>>, vector<8x512xf32>,
    %c1_i32 = arith.constant 1 : i32
    %42 = arith.cmpi eq, %arg0, %c1_i32 : i32
    %43 = arith.extui %42 : i1 to i32
    %c0_i32_22 = arith.constant 0 : i32
    %44 = arith.cmpi ne, %43, %c0_i32_22 : i32
    scf.if %44 {
      %c0_23 = arith.constant 0 : index
      %c0_24 = arith.constant 0 : index
      %45 = vector.load %arg11[%c0_23, %c0_24] : memref<8x512xf32, #tpu.memory_space<vmem>>, vector<8x512xf32>
      %cst_25 = arith.constant dense<0.000000e+00> : vector<512xf32>
      %46 = vector.multi_reduction <add>, %45, %cst_25 [0] : vector<8x512xf32> to vector<512xf32>
      %47 = vector.shape_cast %46 : vector<512xf32> to vector<1x512xf32>
      %cst_26 = arith.constant 8.000000e+00 : f32
      %48 = vector.broadcast %cst_26 : f32 to vector<1x512xf32>
      %49 = arith.divf %47, %48 : vector<1x512xf32>
      %50 = vector.broadcast %49 : vector<1x512xf32> to vector<8x512xf32>
      %51 = arith.subf %45, %50 : vector<8x512xf32>
      %52 = vector.broadcast %49 : vector<1x512xf32> to vector<8x512xf32>
      %53 = arith.subf %45, %52 : vector<8x512xf32>
      %54 = arith.mulf %51, %53 : vector<8x512xf32>
      %cst_27 = arith.constant dense<0.000000e+00> : vector<512xf32>
      %55 = vector.multi_reduction <add>, %54, %cst_27 [0] : vector<8x512xf32> to vector<512xf32>
      %56 = vector.shape_cast %55 : vector<512xf32> to vector<1x512xf32>
      %cst_28 = arith.constant 8.000000e+00 : f32
      %57 = vector.broadcast %cst_28 : f32 to vector<1x512xf32>
      %58 = arith.divf %56, %57 : vector<1x512xf32>
      %59 = vector.broadcast %49 : vector<1x512xf32> to vector<8x512xf32>
      %60 = arith.subf %45, %59 : vector<8x512xf32>
      %cst_29 = arith.constant 9.99999974E-6 : f32
      %61 = vector.broadcast %cst_29 : f32 to vector<1x512xf32>
      %62 = arith.addf %58, %61 : vector<1x512xf32>
      %63 = math.rsqrt %62 : vector<1x512xf32>
      %64 = vector.broadcast %63 : vector<1x512xf32> to vector<8x512xf32>
      %65 = arith.mulf %60, %64 : vector<8x512xf32>
      %c0_30 = arith.constant 0 : index
      %c0_31 = arith.constant 0 : index
      %66 = vector.load %arg6[%c0_30, %c0_31] : memref<1x512xf32, #tpu.memory_space<vmem>>, vector<1x512xf32>
      %67 = vector.broadcast %66 : vector<1x512xf32> to vector<8x512xf32>
      %68 = arith.mulf %65, %67 : vector<8x512xf32>
      %c0_32 = arith.constant 0 : index
      %c0_33 = arith.constant 0 : index
      %69 = vector.load %arg7[%c0_32, %c0_33] : memref<1x512xf32, #tpu.memory_space<vmem>>, vector<1x512xf32>
      %70 = vector.broadcast %69 : vector<1x512xf32> to vector<8x512xf32>
      %71 = arith.addf %68, %70 : vector<8x512xf32>
      %cst_34 = arith.constant 0.000000e+00 : f32
      %72 = vector.broadcast %cst_34 : f32 to vector<8x512xf32>
      %73 = arith.maximumf %71, %72 : vector<8x512xf32>
      %c0_35 = arith.constant 0 : index
      %c0_36 = arith.constant 0 : index
      %74 = vector.load %arg8[%c0_35, %c0_36] : memref<1x512xf32, #tpu.memory_space<vmem>>, vector<1x512xf32>
      %75 = vector.broadcast %74 : vector<1x512xf32> to vector<8x512xf32>
      %76 = arith.mulf %73, %75 : vector<8x512xf32>
      %cst_37 = arith.constant dense<0.000000e+00> : vector<8xf32>
      %77 = vector.multi_reduction <add>, %76, %cst_37 [1] : vector<8x512xf32> to vector<8xf32>
      %78 = vector.shape_cast %77 : vector<8xf32> to vector<8x1xf32>
      %c0_38 = arith.constant 0 : index
      %c0_39 = arith.constant 0 : index
      %79 = memref.load %arg9[%c0_38, %c0_39] : memref<1x1xf32, #tpu.memory_space<smem>>
      %80 = vector.broadcast %79 : f32 to vector<8x1xf32>
      %81 = arith.addf %78, %80 : vector<8x1xf32>
      %c0_40 = arith.constant 0 : index
      %c0_41 = arith.constant 0 : index
      %82 = vector.load %arg10[%c0_40, %c0_41] : memref<8x1xf32, #tpu.memory_space<vmem>>, vector<8x1xf32>
      tpu.vector_store %arg10[%c0_40, %c0_41], %81 {strides = array<i32>} : memref<8x1xf32, #tpu.memory_space<vmem>>, vector<8x1xf32>,
    } else {
    }
    return
  }
  func.func @transform_0(%arg0: i32) -> (i32, i32) {
    %c0_i32 = arith.constant 0 : i32
    %c0_i32_0 = arith.constant 0 : i32
    %c0_i32_1 = arith.constant 0 : i32
    return %c0_i32, %c0_i32_0 : i32, i32
  }
  func.func @transform_1(%arg0: i32) -> (i32, i32, i32) {
    %c0_i32 = arith.constant 0 : i32
    %c0_i32_0 = arith.constant 0 : i32
    %c0_i32_1 = arith.constant 0 : i32
    return %arg0, %c0_i32, %c0_i32_0 : i32, i32, i32
  }
  func.func @transform_2(%arg0: i32) -> (i32, i32) {
    %c0_i32 = arith.constant 0 : i32
    %c0_i32_0 = arith.constant 0 : i32
    return %c0_i32, %arg0 : i32, i32
  }
  func.func @transform_3(%arg0: i32) -> (i32, i32) {
    %c0_i32 = arith.constant 0 : i32
    %c0_i32_0 = arith.constant 0 : i32
    return %c0_i32, %arg0 : i32, i32
  }
  func.func @transform_4(%arg0: i32) -> (i32, i32) {
    %c0_i32 = arith.constant 0 : i32
    %c0_i32_0 = arith.constant 0 : i32
    return %arg0, %c0_i32 : i32, i32
  }
  func.func @transform_5(%arg0: i32) -> (i32, i32) {
    %c0_i32 = arith.constant 0 : i32
    %c0_i32_0 = arith.constant 0 : i32
    %c0_i32_1 = arith.constant 0 : i32
    return %c0_i32, %c0_i32_0 : i32, i32
  }
  func.func @transform_6(%arg0: i32) -> (i32, i32) {
    %c0_i32 = arith.constant 0 : i32
    %c0_i32_0 = arith.constant 0 : i32
    %c0_i32_1 = arith.constant 0 : i32
    return %c0_i32, %c0_i32_0 : i32, i32
  }
  func.func @transform_7(%arg0: i32) -> (i32, i32) {
    %c0_i32 = arith.constant 0 : i32
    %c0_i32_0 = arith.constant 0 : i32
    %c0_i32_1 = arith.constant 0 : i32
    return %c0_i32, %c0_i32_0 : i32, i32
  }
  func.func @transform_8(%arg0: i32) -> (i32, i32) {
    %c0_i32 = arith.constant 0 : i32
    %c0_i32_0 = arith.constant 0 : i32
    %c0_i32_1 = arith.constant 0 : i32
    return %c0_i32, %c0_i32_0 : i32, i32
  }
  func.func @transform_9(%arg0: i32) -> (i32, i32) {
    %c0_i32 = arith.constant 0 : i32
    %c0_i32_0 = arith.constant 0 : i32
    %c0_i32_1 = arith.constant 0 : i32
    return %c0_i32, %c0_i32_0 : i32, i32
  }
}

</mosaic_0001>

<llo_original>
// kernel: tpu_custom_call.1
$region0: #{tpu_custom_call.1}
  #allocation0 [shape = 'u32[]', space=smem, size = 0x4, offset = 0x4, fixed_abs, tag = 'smem constant byte address 0x4 - core index']
  #allocation1 [shape = 'u32[144,128]{1,0:T(1,128)}', space=vmem, size = 0x12000, scoped, tag = 'internal scratch']
  #allocation2 [shape = 'f32[8,512]{1,0:T(8,128)}', space=vmem, size = 0x4000, scoped, tag = 'scratch operand']
  #allocation3 [shape = 'f32[1,1]{1,0:T(1,128)S(6)}', space=smem, size = 0x200, scoped, tag = 'scoped memory for tpu_custom_call.1']
  %s0 = inlined_call_operand.hbm [shape: f32[8,512], index: 0, kind: input, shape index: {}]
  %s1 = inlined_call_operand.hbm [shape: bf16[2,512,1024], index: 1, kind: input, shape index: {}]
  %s2 = inlined_call_operand.hbm [shape: f32[1,2048], index: 2, kind: input, shape index: {}]
  %s3 = inlined_call_operand.hbm [shape: f32[1,2048], index: 3, kind: input, shape index: {}]
  %s4 = inlined_call_operand.hbm [shape: bf16[2048,512], index: 4, kind: input, shape index: {}]
  %s5 = inlined_call_operand.hbm [shape: f32[1,512], index: 5, kind: input, shape index: {}]
  %s6 = inlined_call_operand.hbm [shape: f32[1,512], index: 6, kind: input, shape index: {}]
  %s7 = inlined_call_operand.hbm [shape: f32[1,512], index: 7, kind: input, shape index: {}]
  %s8 = inlined_call_operand.<no memory space> [shape: f32[1,1], index: 8, kind: input, shape index: {}]
  %s9 = inlined_call_operand.vmem [shape: f32[8,1], index: 9, kind: output, shape index: {}]
  %s10 = sld [smem:[#allocation0]]
  $region109: #{tpu_custom_call.1} parent=0
    _
  %s12 = ssub.s32 1, %s10
  %s13 = scalar_select 0, %s12, %s10
  %14 = sst [smem:[#allocation3]] %s8
  $region1: #{tpu_custom_call.1} parent=0
    #allocation4 [shape = 'u8[16384]{0}', space=vmem, size = 0x4000, scoped, tag = 'input window, operand 0, single buffered']
    #allocation5 [shape = 's32[2]{0}', space=sflag, size = 0x8, scoped, tag = 'scoped memory for tpu_custom_call.1']
    #allocation6 [shape = 'u8[2097152]{0}', space=vmem, size = 0x200000, scoped, tag = 'input window, operand 1']
    #allocation7 [shape = 's32[2]{0}', space=sflag, size = 0x8, scoped, tag = 'scoped memory for tpu_custom_call.1']
    #allocation8 [shape = 'u8[8192]{0}', space=vmem, size = 0x2000, scoped, tag = 'input window, operand 2']
    #allocation9 [shape = 'u8[8192]{0}', space=vmem, size = 0x2000, scoped, tag = 'input window, operand 3']
    #allocation10 [shape = 's32[2]{0}', space=sflag, size = 0x8, scoped, tag = 'scoped memory for tpu_custom_call.1']
    #allocation11 [shape = 'u8[2097152]{0}', space=vmem, size = 0x200000, scoped, tag = 'input window, operand 4']
    #allocation12 [shape = 'u8[2048]{0}', space=vmem, size = 0x800, scoped, tag = 'input window, operand 5, single buffered']
    #allocation13 [shape = 's32[1]{0}', space=sflag, size = 0x4, scoped, tag = 'scoped memory for tpu_custom_call.1']
    #allocation14 [shape = 'u8[2048]{0}', space=vmem, size = 0x800, scoped, tag = 'input window, operand 6, single buffered']
    #allocation15 [shape = 'u8[2048]{0}', space=vmem, size = 0x800, scoped, tag = 'input window, operand 7, single buffered']
    #allocation16 [shape = 's32[1]{0}', space=sflag, size = 0x4, scoped, tag = 'scoped memory for tpu_custom_call.1']
    %15 = vsyncpa [#allocation5], 0
    %16 = vsyncpa [#allocation7], 0
    %s17 = scalar_lea.sflag [#allocation7], 1
    %18 = vsyncpa %s17, 0
    %19 = vsyncpa [#allocation10], 0
    %s20 = scalar_lea.sflag [#allocation10], 1
    %21 = vsyncpa %s20, 0
    %22 = vsyncpa [#allocation13], 0
    %23 = vsyncpa [#allocation16], 0
    loop: start=0, step=1, limit=4
    $region2: #{tpu_custom_call.1} parent=1 // loop_pre_header
      _
    $region3: #{tpu_custom_call.1} parent=1 // loop_header
      %s25 = sphi 0, %s29
      %p26 = scmp.ge.s32.totalorder %s25, 4
      %s33 = sphi 0, %s33
      %s35 = sphi 0, %s33
      %s36 = sphi 0, %s35
      %s50 = sphi 0, %s36
      %s56 = sphi 0, %s58
      %s59 = sphi 0, %s56
      %s60 = sphi 0, %s59
      %s76 = sphi 0, %s60
      %s82 = sphi 0, %s84
      %s85 = sphi 0, %s82
      %s86 = sphi 0, %s85
      %s102 = sphi 0, %s86
      %s108 = sphi 0, %s110
      %s111 = sphi 0, %s108
      %s112 = sphi 0, %s111
      %s128 = sphi 0, %s112
      %s134 = sphi 0, %s136
      %s137 = sphi 0, %s134
      %s138 = sphi 0, %s137
      %s154 = sphi 0, %s138
      %s158 = sphi 0, %s158
      %s160 = sphi 0, %s158
      %s161 = sphi 0, %s160
      %s175 = sphi 0, %s161
      %s179 = sphi 0, %s179
      %s181 = sphi 0, %s179
      %s182 = sphi 0, %s181
      %s196 = sphi 0, %s182
      %s200 = sphi 0, %s200
      %s202 = sphi 0, %s200
      %s203 = sphi 0, %s202
      %s217 = sphi 0, %s203
      %s221 = sphi 0, %s221
      %s223 = sphi 0, %s221
      %s224 = sphi 0, %s223
      %s238 = sphi 0, %s224
      %s242 = sphi 0, %s242
      %s244 = sphi 0, %s242
      %s245 = sphi 0, %s244
      %s259 = sphi 0, %s245
    $region4: #{tpu_custom_call.1} parent=1 // loop_header_branch
      %28 = sbr.rel (%p26) target = $region8
    $region5: #{tpu_custom_call.1} parent=1 // loop_body
      %s30 = ssub.s32 %s25, 1
      %s31 = ssub.s32 %s25, 2
      %s32 = sadd.s32 %s25, 1
      %s34 = sadd.s32 %s33, 1
      %p37 = scmp.eq.s32.totalorder %s25, 1
      %p38 = scmp.ne.s32.totalorder %s33, %s35
      %p39 = scmp.eq.s32.totalorder %s25, 0
      %p40 = por %p38, %p39
      %p41 = scmp.ne.s32.totalorder %s33, %s35
      %p42 = scmp.eq.s32.totalorder %s30, 1
      %p43 = por %p41, %p42
      %p44 = scmp.ne.s32.totalorder %s35, %s36
      %p45 = scmp.eq.s32.totalorder %s30, 0
      %p46 = por %p44, %p45
      %p47 = scmp.ne.s32.totalorder %s35, %s36
      %p48 = scmp.eq.s32.totalorder %s31, 1
      %p49 = por %p47, %p48
      %p51 = scmp.ne.s32.totalorder %s36, %s50
      %p52 = scmp.eq.s32.totalorder %s31, 0
      %p53 = por %p51, %p52
      %s54 = ssub.s32 %s25, %s32
      %p55 = scmp.eq.s32.totalorder %s54, 0
      %s57 = sadd.s32 %s56, 1
      %s58 = scalar_select %p55, %s56, %s57
      %p61 = pneg %p55
      %p62 = scmp.eq.s32.totalorder %s25, 1
      %p63 = por %p61, %p62
      %p64 = scmp.ne.s32.totalorder %s56, %s59
      %p65 = scmp.eq.s32.totalorder %s25, 0
      %p66 = por %p64, %p65
      %p67 = scmp.ne.s32.totalorder %s56, %s59
      %p68 = scmp.eq.s32.totalorder %s30, 1
      %p69 = por %p67, %p68
      %p70 = scmp.ne.s32.totalorder %s59, %s60
      %p71 = scmp.eq.s32.totalorder %s30, 0
      %p72 = por %p70, %p71
      %p73 = scmp.ne.s32.totalorder %s59, %s60
      %p74 = scmp.eq.s32.totalorder %s31, 1
      %p75 = por %p73, %p74
      %p77 = scmp.ne.s32.totalorder %s60, %s76
      %p78 = scmp.eq.s32.totalorder %s31, 0
      %p79 = por %p77, %p78
      %s80 = ssub.s32 %s25, %s32
      %p81 = scmp.eq.s32.totalorder %s80, 0
      %s83 = sadd.s32 %s82, 1
      %s84 = scalar_select %p81, %s82, %s83
      %p87 = pneg %p81
      %p88 = scmp.eq.s32.totalorder %s25, 1
      %p89 = por %p87, %p88
      %p90 = scmp.ne.s32.totalorder %s82, %s85
      %p91 = scmp.eq.s32.totalorder %s25, 0
      %p92 = por %p90, %p91
      %p93 = scmp.ne.s32.totalorder %s82, %s85
      %p94 = scmp.eq.s32.totalorder %s30, 1
      %p95 = por %p93, %p94
      %p96 = scmp.ne.s32.totalorder %s85, %s86
      %p97 = scmp.eq.s32.totalorder %s30, 0
      %p98 = por %p96, %p97
      %p99 = scmp.ne.s32.totalorder %s85, %s86
      %p100 = scmp.eq.s32.totalorder %s31, 1
      %p101 = por %p99, %p100
      %p103 = scmp.ne.s32.totalorder %s86, %s102
      %p104 = scmp.eq.s32.totalorder %s31, 0
      %p105 = por %p103, %p104
      %s106 = ssub.s32 %s25, %s32
      %p107 = scmp.eq.s32.totalorder %s106, 0
      %s109 = sadd.s32 %s108, 1
      %s110 = scalar_select %p107, %s108, %s109
      %p113 = pneg %p107
      %p114 = scmp.eq.s32.totalorder %s25, 1
      %p115 = por %p113, %p114
      %p116 = scmp.ne.s32.totalorder %s108, %s111
      %p117 = scmp.eq.s32.totalorder %s25, 0
      %p118 = por %p116, %p117
      %p119 = scmp.ne.s32.totalorder %s108, %s111
      %p120 = scmp.eq.s32.totalorder %s30, 1
      %p121 = por %p119, %p120
      %p122 = scmp.ne.s32.totalorder %s111, %s112
      %p123 = scmp.eq.s32.totalorder %s30, 0
      %p124 = por %p122, %p123
      %p125 = scmp.ne.s32.totalorder %s111, %s112
      %p126 = scmp.eq.s32.totalorder %s31, 1
      %p127 = por %p125, %p126
      %p129 = scmp.ne.s32.totalorder %s112, %s128
      %p130 = scmp.eq.s32.totalorder %s31, 0
      %p131 = por %p129, %p130
      %s132 = ssub.s32 %s25, %s32
      %p133 = scmp.eq.s32.totalorder %s132, 0
      %s135 = sadd.s32 %s134, 1
      %s136 = scalar_select %p133, %s134, %s135
      %p139 = pneg %p133
      %p140 = scmp.eq.s32.totalorder %s25, 1
      %p141 = por %p139, %p140
      %p142 = scmp.ne.s32.totalorder %s134, %s137
      %p143 = scmp.eq.s32.totalorder %s25, 0
      %p144 = por %p142, %p143
      %p145 = scmp.ne.s32.totalorder %s134, %s137
      %p146 = scmp.eq.s32.totalorder %s30, 1
      %p147 = por %p145, %p146
      %p148 = scmp.ne.s32.totalorder %s137, %s138
      %p149 = scmp.eq.s32.totalorder %s30, 0
      %p150 = por %p148, %p149
      %p151 = scmp.ne.s32.totalorder %s137, %s138
      %p152 = scmp.eq.s32.totalorder %s31, 1
      %p153 = por %p151, %p152
      %p155 = scmp.ne.s32.totalorder %s138, %s154
      %p156 = scmp.eq.s32.totalorder %s31, 0
      %p157 = por %p155, %p156
      %s159 = sadd.s32 %s158, 1
      %p162 = scmp.eq.s32.totalorder %s25, 1
      %p163 = scmp.ne.s32.totalorder %s158, %s160
      %p164 = scmp.eq.s32.totalorder %s25, 0
      %p165 = por %p163, %p164
      %p166 = scmp.ne.s32.totalorder %s158, %s160
      %p167 = scmp.eq.s32.totalorder %s30, 1
      %p168 = por %p166, %p167
      %p169 = scmp.ne.s32.totalorder %s160, %s161
      %p170 = scmp.eq.s32.totalorder %s30, 0
      %p171 = por %p169, %p170
      %p172 = scmp.ne.s32.totalorder %s160, %s161
      %p173 = scmp.eq.s32.totalorder %s31, 1
      %p174 = por %p172, %p173
      %p176 = scmp.ne.s32.totalorder %s161, %s175
      %p177 = scmp.eq.s32.totalorder %s31, 0
      %p178 = por %p176, %p177
      %s180 = sadd.s32 %s179, 1
      %p183 = scmp.eq.s32.totalorder %s25, 1
      %p184 = scmp.ne.s32.totalorder %s179, %s181
      %p185 = scmp.eq.s32.totalorder %s25, 0
      %p186 = por %p184, %p185
      %p187 = scmp.ne.s32.totalorder %s179, %s181
      %p188 = scmp.eq.s32.totalorder %s30, 1
      %p189 = por %p187, %p188
      %p190 = scmp.ne.s32.totalorder %s181, %s182
      %p191 = scmp.eq.s32.totalorder %s30, 0
      %p192 = por %p190, %p191
      %p193 = scmp.ne.s32.totalorder %s181, %s182
      %p194 = scmp.eq.s32.totalorder %s31, 1
      %p195 = por %p193, %p194
      %p197 = scmp.ne.s32.totalorder %s182, %s196
      %p198 = scmp.eq.s32.totalorder %s31, 0
      %p199 = por %p197, %p198
      %s201 = sadd.s32 %s200, 1
      %p204 = scmp.eq.s32.totalorder %s25, 1
      %p205 = scmp.ne.s32.totalorder %s200, %s202
      %p206 = scmp.eq.s32.totalorder %s25, 0
      %p207 = por %p205, %p206
      %p208 = scmp.ne.s32.totalorder %s200, %s202
      %p209 = scmp.eq.s32.totalorder %s30, 1
      %p210 = por %p208, %p209
      %p211 = scmp.ne.s32.totalorder %s202, %s203
      %p212 = scmp.eq.s32.totalorder %s30, 0
      %p213 = por %p211, %p212
      %p214 = scmp.ne.s32.totalorder %s202, %s203
      %p215 = scmp.eq.s32.totalorder %s31, 1
      %p216 = por %p214, %p215
      %p218 = scmp.ne.s32.totalorder %s203, %s217
      %p219 = scmp.eq.s32.totalorder %s31, 0
      %p220 = por %p218, %p219
      %s222 = sadd.s32 %s221, 1
      %p225 = scmp.eq.s32.totalorder %s25, 1
      %p226 = scmp.ne.s32.totalorder %s221, %s223
      %p227 = scmp.eq.s32.totalorder %s25, 0
      %p228 = por %p226, %p227
      %p229 = scmp.ne.s32.totalorder %s221, %s223
      %p230 = scmp.eq.s32.totalorder %s30, 1
      %p231 = por %p229, %p230
      %p232 = scmp.ne.s32.totalorder %s223, %s224
      %p233 = scmp.eq.s32.totalorder %s30, 0
      %p234 = por %p232, %p233
      %p235 = scmp.ne.s32.totalorder %s223, %s224
      %p236 = scmp.eq.s32.totalorder %s31, 1
      %p237 = por %p235, %p236
      %p239 = scmp.ne.s32.totalorder %s224, %s238
      %p240 = scmp.eq.s32.totalorder %s31, 0
      %p241 = por %p239, %p240
      %s243 = sadd.s32 %s242, 1
      %p246 = scmp.eq.s32.totalorder %s25, 1
      %p247 = scmp.ne.s32.totalorder %s242, %s244
      %p248 = scmp.eq.s32.totalorder %s25, 0
      %p249 = por %p247, %p248
      %p250 = scmp.ne.s32.totalorder %s242, %s244
      %p251 = scmp.eq.s32.totalorder %s30, 1
      %p252 = por %p250, %p251
      %p253 = scmp.ne.s32.totalorder %s244, %s245
      %p254 = scmp.eq.s32.totalorder %s30, 0
      %p255 = por %p253, %p254
      %p256 = scmp.ne.s32.totalorder %s244, %s245
      %p257 = scmp.eq.s32.totalorder %s31, 1
      %p258 = por %p256, %p257
      %p260 = scmp.ne.s32.totalorder %s245, %s259
      %p261 = scmp.eq.s32.totalorder %s31, 0
      %p262 = por %p260, %p261
      %p263 = scmp.le.s32.totalorder 1, %s25
      %p264 = scmp.lt.s32.totalorder %s25, 3
      %p265 = pnand %p263, %p264
      %p266 = pneg %p265
      // Predicated region
      $region9: #{tpu_custom_call.1} parent=5 // pred_check
        _
      $region10: #{tpu_custom_call.1} parent=5 // pred_check_branch
        %268 = sbr.rel (%p265) target = $region12
      $region11: #{tpu_custom_call.1} parent=5 // pred_region
        %s269 = ssub.s32 %s25, 1
        // Predicated region
        $region13: #{tpu_custom_call.1} parent=11 // pred_check
          %p270 = pneg %p46
        $region14: #{tpu_custom_call.1} parent=11 // pred_check_branch
          %272 = sbr.rel (%p270) target = $region16
        $region15: #{tpu_custom_call.1} parent=11 // pred_region
          %s274 = ssub.s32 512, 512
          %275 = vsyncadd [#allocation5], %s274
          %s277 = sshll.u32 [#allocation4], 4
          %s278 = int_to_ptr.vmem [resolvable:$true] %s277
          %280 = dma.hbm_to_vmem [thread:$0]  %s0, 512, %s278, [#allocation5]
        $region16: #{tpu_custom_call.1} parent=11 // pred_fallthru
          _
        // Predicated region
        $region17: #{tpu_custom_call.1} parent=11 // pred_check
          %p281 = pneg %p171
        $region18: #{tpu_custom_call.1} parent=11 // pred_check_branch
          %283 = sbr.rel (%p281) target = $region20
        $region19: #{tpu_custom_call.1} parent=11 // pred_region
          %s285 = ssub.s32 64, 64
          %286 = vsyncadd [#allocation13], %s285
          %s288 = sshll.u32 [#allocation12], 4
          %s289 = int_to_ptr.vmem [resolvable:$true] %s288
          %291 = dma.hbm_to_vmem [thread:$0]  %s5, 64, %s289, [#allocation13]
        $region20: #{tpu_custom_call.1} parent=11 // pred_fallthru
          _
        // Predicated region
        $region21: #{tpu_custom_call.1} parent=11 // pred_check
          %p292 = pneg %p192
        $region22: #{tpu_custom_call.1} parent=11 // pred_check_branch
          %294 = sbr.rel (%p292) target = $region24
        $region23: #{tpu_custom_call.1} parent=11 // pred_region
          %s296 = ssub.s32 64, 64
          %297 = vsyncadd [#allocation13], %s296
          %s299 = sshll.u32 [#allocation14], 4
          %s300 = int_to_ptr.vmem [resolvable:$true] %s299
          %302 = dma.hbm_to_vmem [thread:$0]  %s6, 64, %s300, [#allocation13]
        $region24: #{tpu_custom_call.1} parent=11 // pred_fallthru
          _
        // Predicated region
        $region25: #{tpu_custom_call.1} parent=11 // pred_check
          %p303 = pneg %p213
        $region26: #{tpu_custom_call.1} parent=11 // pred_check_branch
          %305 = sbr.rel (%p303) target = $region28
        $region27: #{tpu_custom_call.1} parent=11 // pred_region
          %s307 = ssub.s32 64, 64
          %308 = vsyncadd [#allocation16], %s307
          %s310 = sshll.u32 [#allocation15], 4
          %s311 = int_to_ptr.vmem [resolvable:$true] %s310
          %313 = dma.hbm_to_vmem [thread:$0]  %s7, 64, %s311, [#allocation16]
        $region28: #{tpu_custom_call.1} parent=11 // pred_fallthru
          _
        // Predicated region
        $region29: #{tpu_custom_call.1} parent=11 // pred_check
          %p314 = pneg %p234
        $region30: #{tpu_custom_call.1} parent=11 // pred_check_branch
          %316 = sbr.rel (%p314) target = $region32
        $region31: #{tpu_custom_call.1} parent=11 // pred_region
          _
        $region32: #{tpu_custom_call.1} parent=11 // pred_fallthru
          _
      $region12: #{tpu_custom_call.1} parent=5 // pred_fallthru
        _
      %p317 = scmp.lt.s32.totalorder %s25, 2
      // Predicated region
      $region33: #{tpu_custom_call.1} parent=5 // pred_check
        %p318 = pneg %p317
      $region34: #{tpu_custom_call.1} parent=5 // pred_check_branch
        %320 = sbr.rel (%p318) target = $region36
      $region35: #{tpu_custom_call.1} parent=5 // pred_region
        // Predicated region
        $region37: #{tpu_custom_call.1} parent=35 // pred_check
          %p321 = pneg %p66
        $region38: #{tpu_custom_call.1} parent=35 // pred_check_branch
          %323 = sbr.rel (%p321) target = $region40
        $region39: #{tpu_custom_call.1} parent=35 // pred_region
          %s324 = sand.u32 %s25, 1
          %s325 = scalar_lea.sflag [#allocation7], %s324
          %s326 = sand.u32 %s56, 1
          %s327 = smul.addr %s326, 2048
          %s328 = scalar_lea.vmem [#allocation6], %s327
          %s330 = ssub.s32 32768, 32768
          %331 = vsyncadd %s325, %s330
          %s332 = smul.addr %s25, 512
          %s333 = smul.addr %s332, 64
          %s334 = scalar_lea.hbm %s1, %s333
          %s335 = sshll.u32 %s328, 4
          %s336 = int_to_ptr.vmem [resolvable:$true] %s335
          %341 = dma.hbm_to_vmem [thread:$0]  %s334, 32768, %s336, %s325, 512, 512, 32
        $region40: #{tpu_custom_call.1} parent=35 // pred_fallthru
          _
        // Predicated region
        $region41: #{tpu_custom_call.1} parent=35 // pred_check
          %p342 = pneg %p92
        $region42: #{tpu_custom_call.1} parent=35 // pred_check_branch
          %344 = sbr.rel (%p342) target = $region44
        $region43: #{tpu_custom_call.1} parent=35 // pred_region
          %s345 = sand.u32 %s25, 1
          %s346 = scalar_lea.sflag [#allocation7], %s345
          %s347 = sand.u32 %s82, 1
          %s348 = smul.addr %s347, 8
          %s349 = scalar_lea.vmem [#allocation8], %s348
          %s350 = smul.u32 8, %s25
          %s352 = ssub.s32 128, 128
          %353 = vsyncadd %s346, %s352
          %s354 = smul.addr %s350, 16
          %s355 = scalar_lea.hbm %s2, %s354
          %s357 = sshll.u32 %s349, 4
          %s358 = int_to_ptr.vmem [resolvable:$true] %s357
          %360 = dma.hbm_to_vmem [thread:$0]  %s355, 128, %s358, %s346
        $region44: #{tpu_custom_call.1} parent=35 // pred_fallthru
          _
        // Predicated region
        $region45: #{tpu_custom_call.1} parent=35 // pred_check
          %p361 = pneg %p118
        $region46: #{tpu_custom_call.1} parent=35 // pred_check_branch
          %363 = sbr.rel (%p361) target = $region48
        $region47: #{tpu_custom_call.1} parent=35 // pred_region
          %s364 = sand.u32 %s25, 1
          %s365 = scalar_lea.sflag [#allocation10], %s364
          %s366 = sand.u32 %s108, 1
          %s367 = smul.addr %s366, 8
          %s368 = scalar_lea.vmem [#allocation9], %s367
          %s369 = smul.u32 8, %s25
          %s371 = ssub.s32 128, 128
          %372 = vsyncadd %s365, %s371
          %s373 = smul.addr %s369, 16
          %s374 = scalar_lea.hbm %s3, %s373
          %s376 = sshll.u32 %s368, 4
          %s377 = int_to_ptr.vmem [resolvable:$true] %s376
          %379 = dma.hbm_to_vmem [thread:$0]  %s374, 128, %s377, %s365
        $region48: #{tpu_custom_call.1} parent=35 // pred_fallthru
          _
        // Predicated region
        $region49: #{tpu_custom_call.1} parent=35 // pred_check
          %p380 = pneg %p144
        $region50: #{tpu_custom_call.1} parent=35 // pred_check_branch
          %382 = sbr.rel (%p380) target = $region52
        $region51: #{tpu_custom_call.1} parent=35 // pred_region
          %s383 = sand.u32 %s25, 1
          %s384 = scalar_lea.sflag [#allocation10], %s383
          %s385 = sand.u32 %s134, 1
          %s386 = smul.addr %s385, 2048
          %s387 = scalar_lea.vmem [#allocation11], %s386
          %s388 = smul.u32 128, %s25
          %s390 = ssub.s32 32768, 32768
          %391 = vsyncadd %s384, %s390
          %s392 = smul.addr %s388, 4
          %s393 = smul.addr %s392, 64
          %s394 = scalar_lea.hbm %s4, %s393
          %s395 = sshll.u32 %s387, 4
          %s396 = int_to_ptr.vmem [resolvable:$true] %s395
          %401 = dma.hbm_to_vmem [thread:$0]  %s394, 32768, %s396, %s384, 256, 256, 16
        $region52: #{tpu_custom_call.1} parent=35 // pred_fallthru
          _
      $region36: #{tpu_custom_call.1} parent=5 // pred_fallthru
        _
      %p402 = scmp.le.s32.totalorder 1, %s25
      %p403 = scmp.lt.s32.totalorder %s25, 3
      %p404 = pnand %p402, %p403
      %p405 = pneg %p404
      // Predicated region
      $region53: #{tpu_custom_call.1} parent=5 // pred_check
        _
      $region54: #{tpu_custom_call.1} parent=5 // pred_check_branch
        %407 = sbr.rel (%p404) target = $region56
      $region55: #{tpu_custom_call.1} parent=5 // pred_region
        %s408 = ssub.s32 %s25, 1
        // Predicated region
        $region57: #{tpu_custom_call.1} parent=55 // pred_check
          %p409 = pneg %p46
        $region58: #{tpu_custom_call.1} parent=55 // pred_check_branch
          %411 = sbr.rel (%p409) target = $region60
        $region59: #{tpu_custom_call.1} parent=55 // pred_region
          %412 = dma.done [#allocation5], 512
        $region60: #{tpu_custom_call.1} parent=55 // pred_fallthru
          _
        %s413 = sand.u32 %s30, 1
        %s414 = scalar_lea.sflag [#allocation7], %s413
        %s415 = sand.u32 %s59, 1
        %s416 = smul.addr %s415, 2048
        %s417 = scalar_lea.vmem [#allocation6], %s416
        // Predicated region
        $region61: #{tpu_custom_call.1} parent=55 // pred_check
          %p418 = pneg %p72
        $region62: #{tpu_custom_call.1} parent=55 // pred_check_branch
          %420 = sbr.rel (%p418) target = $region64
        $region63: #{tpu_custom_call.1} parent=55 // pred_region
          %421 = dma.done %s414, 32768
        $region64: #{tpu_custom_call.1} parent=55 // pred_fallthru
          _
        %s422 = sand.u32 %s30, 1
        %s423 = scalar_lea.sflag [#allocation7], %s422
        %s424 = sand.u32 %s85, 1
        %s425 = smul.addr %s424, 8
        %s426 = scalar_lea.vmem [#allocation8], %s425
        // Predicated region
        $region65: #{tpu_custom_call.1} parent=55 // pred_check
          %p427 = pneg %p98
        $region66: #{tpu_custom_call.1} parent=55 // pred_check_branch
          %429 = sbr.rel (%p427) target = $region68
        $region67: #{tpu_custom_call.1} parent=55 // pred_region
          %430 = dma.done %s423, 128
        $region68: #{tpu_custom_call.1} parent=55 // pred_fallthru
          _
        %s431 = sand.u32 %s30, 1
        %s432 = scalar_lea.sflag [#allocation10], %s431
        %s433 = sand.u32 %s111, 1
        %s434 = smul.addr %s433, 8
        %s435 = scalar_lea.vmem [#allocation9], %s434
        // Predicated region
        $region69: #{tpu_custom_call.1} parent=55 // pred_check
          %p436 = pneg %p124
        $region70: #{tpu_custom_call.1} parent=55 // pred_check_branch
          %438 = sbr.rel (%p436) target = $region72
        $region71: #{tpu_custom_call.1} parent=55 // pred_region
          %439 = dma.done %s432, 128
        $region72: #{tpu_custom_call.1} parent=55 // pred_fallthru
          _
        %s440 = sand.u32 %s30, 1
        %s441 = scalar_lea.sflag [#allocation10], %s440
        %s442 = sand.u32 %s137, 1
        %s443 = smul.addr %s442, 2048
        %s444 = scalar_lea.vmem [#allocation11], %s443
        // Predicated region
        $region73: #{tpu_custom_call.1} parent=55 // pred_check
          %p445 = pneg %p150
        $region74: #{tpu_custom_call.1} parent=55 // pred_check_branch
          %447 = sbr.rel (%p445) target = $region76
        $region75: #{tpu_custom_call.1} parent=55 // pred_region
          %448 = dma.done %s441, 32768
        $region76: #{tpu_custom_call.1} parent=55 // pred_fallthru
          _
        // Predicated region
        $region77: #{tpu_custom_call.1} parent=55 // pred_check
          %p449 = pneg %p171
        $region78: #{tpu_custom_call.1} parent=55 // pred_check_branch
          %451 = sbr.rel (%p449) target = $region80
        $region79: #{tpu_custom_call.1} parent=55 // pred_region
          %452 = dma.done [#allocation13], 64
        $region80: #{tpu_custom_call.1} parent=55 // pred_fallthru
          _
        // Predicated region
        $region81: #{tpu_custom_call.1} parent=55 // pred_check
          %p453 = pneg %p192
        $region82: #{tpu_custom_call.1} parent=55 // pred_check_branch
          %455 = sbr.rel (%p453) target = $region84
        $region83: #{tpu_custom_call.1} parent=55 // pred_region
          %456 = dma.done [#allocation13], 64
        $region84: #{tpu_custom_call.1} parent=55 // pred_fallthru
          _
        // Predicated region
        $region85: #{tpu_custom_call.1} parent=55 // pred_check
          %p457 = pneg %p213
        $region86: #{tpu_custom_call.1} parent=55 // pred_check_branch
          %459 = sbr.rel (%p457) target = $region88
        $region87: #{tpu_custom_call.1} parent=55 // pred_region
          %460 = dma.done [#allocation16], 64
        $region88: #{tpu_custom_call.1} parent=55 // pred_fallthru
          _
        %p461 = pneg %p46
        %p462 = pneg %p43
        %s463 = sand.u32 %s30, 1
        %s464 = scalar_lea.sflag [#allocation7], %s463
        %s465 = sand.u32 %s59, 1
        %s466 = smul.addr %s465, 2048
        %s467 = scalar_lea.vmem [#allocation6], %s466
        %p468 = pneg %p72
        %p469 = pneg %p69
        %s470 = sand.u32 %s30, 1
        %s471 = scalar_lea.sflag [#allocation7], %s470
        %s472 = sand.u32 %s85, 1
        %s473 = smul.addr %s472, 8
        %s474 = scalar_lea.vmem [#allocation8], %s473
        %p475 = pneg %p98
        %p476 = pneg %p95
        %s477 = sand.u32 %s30, 1
        %s478 = scalar_lea.sflag [#allocation10], %s477
        %s479 = sand.u32 %s111, 1
        %s480 = smul.addr %s479, 8
        %s481 = scalar_lea.vmem [#allocation9], %s480
        %p482 = pneg %p124
        %p483 = pneg %p121
        %s484 = sand.u32 %s30, 1
        %s485 = scalar_lea.sflag [#allocation10], %s484
        %s486 = sand.u32 %s137, 1
        %s487 = smul.addr %s486, 2048
        %s488 = scalar_lea.vmem [#allocation11], %s487
        %p489 = pneg %p150
        %p490 = pneg %p147
        %p491 = pneg %p171
        %p492 = pneg %p168
        %p493 = pneg %p192
        %p494 = pneg %p189
        %p495 = pneg %p213
        %p496 = pneg %p210
        %p497 = pneg %p234
        %p498 = pneg %p231
        %p499 = pneg %p255
        %p500 = pneg %p252
        %s501 = smul.u32 8, %s30
        %s502 = smul.u32 8, %s30
        %s503 = smul.u32 128, %s30
        %p504 = scmp.eq.s32.totalorder %s30, 0
        // Predicated region
        $region89: #{tpu_custom_call.1} parent=55 // pred_check
          %p505 = pneg %p504
        $region90: #{tpu_custom_call.1} parent=55 // pred_check_branch
          %507 = sbr.rel (%p505) target = $region92
        $region91: #{tpu_custom_call.1} parent=55 // pred_region
          %508 = vst [vmem:[#allocation2] sm:$0xff] 0.0
          %509 = vst [vmem:[#allocation2 + $0x8] sm:$0xff] 0.0
          %510 = vst [vmem:[#allocation2 + $0x10] sm:$0xff] 0.0
          %511 = vst [vmem:[#allocation2 + $0x18] sm:$0xff] 0.0
        $region92: #{tpu_custom_call.1} parent=55 // pred_fallthru
          _
        %v512 = vld [vmem:[#allocation4] sm:$0xff]
        %v513 = vld [vmem:[#allocation4 + $0x8] sm:$0xff]
        %v514 = vld [vmem:[#allocation4 + $0x10] sm:$0xff]
        %v515 = vld [vmem:[#allocation4 + $0x18] sm:$0xff]
        %v516 = vpack.c.bf16 %v512, %v512
        %v517 = vpack.c.bf16 %v513, %v513
        %v518 = vpack.c.bf16 %v514, %v514
        %v519 = vpack.c.bf16 %v515, %v515
        %v520 = vld [vmem:[%s417] sm:$0xff]
        %v521 = vld [vmem:[%s417 + $0x8] sm:$0xff]
        %v522 = vld [vmem:[%s417 + $0x10] sm:$0xff]
        %v523 = vld [vmem:[%s417 + $0x18] sm:$0xff]
        %v524 = vld [vmem:[%s417 + $0x20] sm:$0xff]
        %v525 = vld [vmem:[%s417 + $0x28] sm:$0xff]
        %v526 = vld [vmem:[%s417 + $0x30] sm:$0xff]
        %v527 = vld [vmem:[%s417 + $0x38] sm:$0xff]
        %v528 = vld [vmem:[%s417 + $0x40] sm:$0xff]
        %v529 = vld [vmem:[%s417 + $0x48] sm:$0xff]
        %v530 = vld [vmem:[%s417 + $0x50] sm:$0xff]
        %v531 = vld [vmem:[%s417 + $0x58] sm:$0xff]
        %v532 = vld [vmem:[%s417 + $0x60] sm:$0xff]
        %v533 = vld [vmem:[%s417 + $0x68] sm:$0xff]
        %v534 = vld [vmem:[%s417 + $0x70] sm:$0xff]
        %v535 = vld [vmem:[%s417 + $0x78] sm:$0xff]
        %v536 = vld [vmem:[%s417 + $0x80] sm:$0xff]
        %v537 = vld [vmem:[%s417 + $0x88] sm:$0xff]
        %v538 = vld [vmem:[%s417 + $0x90] sm:$0xff]
        %v539 = vld [vmem:[%s417 + $0x98] sm:$0xff]
        %v540 = vld [vmem:[%s417 + $0xa0] sm:$0xff]
        %v541 = vld [vmem:[%s417 + $0xa8] sm:$0xff]
        %v542 = vld [vmem:[%s417 + $0xb0] sm:$0xff]
        %v543 = vld [vmem:[%s417 + $0xb8] sm:$0xff]
        %v544 = vld [vmem:[%s417 + $0xc0] sm:$0xff]
        %v545 = vld [vmem:[%s417 + $0xc8] sm:$0xff]
        %v546 = vld [vmem:[%s417 + $0xd0] sm:$0xff]
        %v547 = vld [vmem:[%s417 + $0xd8] sm:$0xff]
        %v548 = vld [vmem:[%s417 + $0xe0] sm:$0xff]
        %v549 = vld [vmem:[%s417 + $0xe8] sm:$0xff]
        %v550 = vld [vmem:[%s417 + $0xf0] sm:$0xff]
        %v551 = vld [vmem:[%s417 + $0xf8] sm:$0xff]
        %v552 = vld [vmem:[%s417 + $0x100] sm:$0xff]
        %v553 = vld [vmem:[%s417 + $0x108] sm:$0xff]
        %v554 = vld [vmem:[%s417 + $0x110] sm:$0xff]
        %v555 = vld [vmem:[%s417 + $0x118] sm:$0xff]
        %v556 = vld [vmem:[%s417 + $0x120] sm:$0xff]
        %v557 = vld [vmem:[%s417 + $0x128] sm:$0xff]
        %v558 = vld [vmem:[%s417 + $0x130] sm:$0xff]
        %v559 = vld [vmem:[%s417 + $0x138] sm:$0xff]
        %v560 = vld [vmem:[%s417 + $0x140] sm:$0xff]
        %v561 = vld [vmem:[%s417 + $0x148] sm:$0xff]
        %v562 = vld [vmem:[%s417 + $0x150] sm:$0xff]
        %v563 = vld [vmem:[%s417 + $0x158] sm:$0xff]
        %v564 = vld [vmem:[%s417 + $0x160] sm:$0xff]
        %v565 = vld [vmem:[%s417 + $0x168] sm:$0xff]
        %v566 = vld [vmem:[%s417 + $0x170] sm:$0xff]
        %v567 = vld [vmem:[%s417 + $0x178] sm:$0xff]
        %v568 = vld [vmem:[%s417 + $0x180] sm:$0xff]
        %v569 = vld [vmem:[%s417 + $0x188] sm:$0xff]
        %v570 = vld [vmem:[%s417 + $0x190] sm:$0xff]
        %v571 = vld [vmem:[%s417 + $0x198] sm:$0xff]
        %v572 = vld [vmem:[%s417 + $0x1a0] sm:$0xff]
        %v573 = vld [vmem:[%s417 + $0x1a8] sm:$0xff]
        %v574 = vld [vmem:[%s417 + $0x1b0] sm:$0xff]
        %v575 = vld [vmem:[%s417 + $0x1b8] sm:$0xff]
        %v576 = vld [vmem:[%s417 + $0x1c0] sm:$0xff]
        %v577 = vld [vmem:[%s417 + $0x1c8] sm:$0xff]
        %v578 = vld [vmem:[%s417 + $0x1d0] sm:$0xff]
        %v579 = vld [vmem:[%s417 + $0x1d8] sm:$0xff]
        %v580 = vld [vmem:[%s417 + $0x1e0] sm:$0xff]
        %v581 = vld [vmem:[%s417 + $0x1e8] sm:$0xff]
        %v582 = vld [vmem:[%s417 + $0x1f0] sm:$0xff]
        %v583 = vld [vmem:[%s417 + $0x1f8] sm:$0xff]
        %v584 = vld [vmem:[%s417 + $0x200] sm:$0xff]
        %v585 = vld [vmem:[%s417 + $0x208] sm:$0xff]
        %v586 = vld [vmem:[%s417 + $0x210] sm:$0xff]
        %v587 = vld [vmem:[%s417 + $0x218] sm:$0xff]
        %v588 = vld [vmem:[%s417 + $0x220] sm:$0xff]
        %v589 = vld [vmem:[%s417 + $0x228] sm:$0xff]
        %v590 = vld [vmem:[%s417 + $0x230] sm:$0xff]
        %v591 = vld [vmem:[%s417 + $0x238] sm:$0xff]
        %v592 = vld [vmem:[%s417 + $0x240] sm:$0xff]
        %v593 = vld [vmem:[%s417 + $0x248] sm:$0xff]
        %v594 = vld [vmem:[%s417 + $0x250] sm:$0xff]
        %v595 = vld [vmem:[%s417 + $0x258] sm:$0xff]
        %v596 = vld [vmem:[%s417 + $0x260] sm:$0xff]
        %v597 = vld [vmem:[%s417 + $0x268] sm:$0xff]
        %v598 = vld [vmem:[%s417 + $0x270] sm:$0xff]
        %v599 = vld [vmem:[%s417 + $0x278] sm:$0xff]
        %v600 = vld [vmem:[%s417 + $0x280] sm:$0xff]
        %v601 = vld [vmem:[%s417 + $0x288] sm:$0xff]
        %v602 = vld [vmem:[%s417 + $0x290] sm:$0xff]
        %v603 = vld [vmem:[%s417 + $0x298] sm:$0xff]
        %v604 = vld [vmem:[%s417 + $0x2a0] sm:$0xff]
        %v605 = vld [vmem:[%s417 + $0x2a8] sm:$0xff]
        %v606 = vld [vmem:[%s417 + $0x2b0] sm:$0xff]
        %v607 = vld [vmem:[%s417 + $0x2b8] sm:$0xff]
        %v608 = vld [vmem:[%s417 + $0x2c0] sm:$0xff]
        %v609 = vld [vmem:[%s417 + $0x2c8] sm:$0xff]
        %v610 = vld [vmem:[%s417 + $0x2d0] sm:$0xff]
        %v611 = vld [vmem:[%s417 + $0x2d8] sm:$0xff]
        %v612 = vld [vmem:[%s417 + $0x2e0] sm:$0xff]
        %v613 = vld [vmem:[%s417 + $0x2e8] sm:$0xff]
        %v614 = vld [vmem:[%s417 + $0x2f0] sm:$0xff]
        %v615 = vld [vmem:[%s417 + $0x2f8] sm:$0xff]
        %v616 = vld [vmem:[%s417 + $0x300] sm:$0xff]
        %v617 = vld [vmem:[%s417 + $0x308] sm:$0xff]
        %v618 = vld [vmem:[%s417 + $0x310] sm:$0xff]
        %v619 = vld [vmem:[%s417 + $0x318] sm:$0xff]
        %v620 = vld [vmem:[%s417 + $0x320] sm:$0xff]
        %v621 = vld [vmem:[%s417 + $0x328] sm:$0xff]
        %v622 = vld [vmem:[%s417 + $0x330] sm:$0xff]
        %v623 = vld [vmem:[%s417 + $0x338] sm:$0xff]
        %v624 = vld [vmem:[%s417 + $0x340] sm:$0xff]
        %v625 = vld [vmem:[%s417 + $0x348] sm:$0xff]
        %v626 = vld [vmem:[%s417 + $0x350] sm:$0xff]
        %v627 = vld [vmem:[%s417 + $0x358] sm:$0xff]
        %v628 = vld [vmem:[%s417 + $0x360] sm:$0xff]
        %v629 = vld [vmem:[%s417 + $0x368] sm:$0xff]
        %v630 = vld [vmem:[%s417 + $0x370] sm:$0xff]
        %v631 = vld [vmem:[%s417 + $0x378] sm:$0xff]
        %v632 = vld [vmem:[%s417 + $0x380] sm:$0xff]
        %v633 = vld [vmem:[%s417 + $0x388] sm:$0xff]
        %v634 = vld [vmem:[%s417 + $0x390] sm:$0xff]
        %v635 = vld [vmem:[%s417 + $0x398] sm:$0xff]
        %v636 = vld [vmem:[%s417 + $0x3a0] sm:$0xff]
        %v637 = vld [vmem:[%s417 + $0x3a8] sm:$0xff]
        %v638 = vld [vmem:[%s417 + $0x3b0] sm:$0xff]
        %v639 = vld [vmem:[%s417 + $0x3b8] sm:$0xff]
        %v640 = vld [vmem:[%s417 + $0x3c0] sm:$0xff]
        %v641 = vld [vmem:[%s417 + $0x3c8] sm:$0xff]
        %v642 = vld [vmem:[%s417 + $0x3d0] sm:$0xff]
        %v643 = vld [vmem:[%s417 + $0x3d8] sm:$0xff]
        %v644 = vld [vmem:[%s417 + $0x3e0] sm:$0xff]
        %v645 = vld [vmem:[%s417 + $0x3e8] sm:$0xff]
        %v646 = vld [vmem:[%s417 + $0x3f0] sm:$0xff]
        %v647 = vld [vmem:[%s417 + $0x3f8] sm:$0xff]
        %v648 = vld [vmem:[%s417 + $0x400] sm:$0xff]
        %v649 = vld [vmem:[%s417 + $0x408] sm:$0xff]
        %v650 = vld [vmem:[%s417 + $0x410] sm:$0xff]
        %v651 = vld [vmem:[%s417 + $0x418] sm:$0xff]
        %v652 = vld [vmem:[%s417 + $0x420] sm:$0xff]
        %v653 = vld [vmem:[%s417 + $0x428] sm:$0xff]
        %v654 = vld [vmem:[%s417 + $0x430] sm:$0xff]
        %v655 = vld [vmem:[%s417 + $0x438] sm:$0xff]
        %v656 = vld [vmem:[%s417 + $0x440] sm:$0xff]
        %v657 = vld [vmem:[%s417 + $0x448] sm:$0xff]
        %v658 = vld [vmem:[%s417 + $0x450] sm:$0xff]
        %v659 = vld [vmem:[%s417 + $0x458] sm:$0xff]
        %v660 = vld [vmem:[%s417 + $0x460] sm:$0xff]
        %v661 = vld [vmem:[%s417 + $0x468] sm:$0xff]
        %v662 = vld [vmem:[%s417 + $0x470] sm:$0xff]
        %v663 = vld [vmem:[%s417 + $0x478] sm:$0xff]
        %v664 = vld [vmem:[%s417 + $0x480] sm:$0xff]
        %v665 = vld [vmem:[%s417 + $0x488] sm:$0xff]
        %v666 = vld [vmem:[%s417 + $0x490] sm:$0xff]
        %v667 = vld [vmem:[%s417 + $0x498] sm:$0xff]
        %v668 = vld [vmem:[%s417 + $0x4a0] sm:$0xff]
        %v669 = vld [vmem:[%s417 + $0x4a8] sm:$0xff]
        %v670 = vld [vmem:[%s417 + $0x4b0] sm:$0xff]
        %v671 = vld [vmem:[%s417 + $0x4b8] sm:$0xff]
        %v672 = vld [vmem:[%s417 + $0x4c0] sm:$0xff]
        %v673 = vld [vmem:[%s417 + $0x4c8] sm:$0xff]
        %v674 = vld [vmem:[%s417 + $0x4d0] sm:$0xff]
        %v675 = vld [vmem:[%s417 + $0x4d8] sm:$0xff]
        %v676 = vld [vmem:[%s417 + $0x4e0] sm:$0xff]
        %v677 = vld [vmem:[%s417 + $0x4e8] sm:$0xff]
        %v678 = vld [vmem:[%s417 + $0x4f0] sm:$0xff]
        %v679 = vld [vmem:[%s417 + $0x4f8] sm:$0xff]
        %v680 = vld [vmem:[%s417 + $0x500] sm:$0xff]
        %v681 = vld [vmem:[%s417 + $0x508] sm:$0xff]
        %v682 = vld [vmem:[%s417 + $0x510] sm:$0xff]
        %v683 = vld [vmem:[%s417 + $0x518] sm:$0xff]
        %v684 = vld [vmem:[%s417 + $0x520] sm:$0xff]
        %v685 = vld [vmem:[%s417 + $0x528] sm:$0xff]
        %v686 = vld [vmem:[%s417 + $0x530] sm:$0xff]
        %v687 = vld [vmem:[%s417 + $0x538] sm:$0xff]
        %v688 = vld [vmem:[%s417 + $0x540] sm:$0xff]
        %v689 = vld [vmem:[%s417 + $0x548] sm:$0xff]
        %v690 = vld [vmem:[%s417 + $0x550] sm:$0xff]
        %v691 = vld [vmem:[%s417 + $0x558] sm:$0xff]
        %v692 = vld [vmem:[%s417 + $0x560] sm:$0xff]
        %v693 = vld [vmem:[%s417 + $0x568] sm:$0xff]
        %v694 = vld [vmem:[%s417 + $0x570] sm:$0xff]
        %v695 = vld [vmem:[%s417 + $0x578] sm:$0xff]
        %v696 = vld [vmem:[%s417 + $0x580] sm:$0xff]
        %v697 = vld [vmem:[%s417 + $0x588] sm:$0xff]
        %v698 = vld [vmem:[%s417 + $0x590] sm:$0xff]
        %v699 = vld [vmem:[%s417 + $0x598] sm:$0xff]
        %v700 = vld [vmem:[%s417 + $0x5a0] sm:$0xff]
        %v701 = vld [vmem:[%s417 + $0x5a8] sm:$0xff]
        %v702 = vld [vmem:[%s417 + $0x5b0] sm:$0xff]
        %v703 = vld [vmem:[%s417 + $0x5b8] sm:$0xff]
        %v704 = vld [vmem:[%s417 + $0x5c0] sm:$0xff]
        %v705 = vld [vmem:[%s417 + $0x5c8] sm:$0xff]
        %v706 = vld [vmem:[%s417 + $0x5d0] sm:$0xff]
        %v707 = vld [vmem:[%s417 + $0x5d8] sm:$0xff]
        %v708 = vld [vmem:[%s417 + $0x5e0] sm:$0xff]
        %v709 = vld [vmem:[%s417 + $0x5e8] sm:$0xff]
        %v710 = vld [vmem:[%s417 + $0x5f0] sm:$0xff]
        %v711 = vld [vmem:[%s417 + $0x5f8] sm:$0xff]
        %v712 = vld [vmem:[%s417 + $0x600] sm:$0xff]
        %v713 = vld [vmem:[%s417 + $0x608] sm:$0xff]
        %v714 = vld [vmem:[%s417 + $0x610] sm:$0xff]
        %v715 = vld [vmem:[%s417 + $0x618] sm:$0xff]
        %v716 = vld [vmem:[%s417 + $0x620] sm:$0xff]
        %v717 = vld [vmem:[%s417 + $0x628] sm:$0xff]
        %v718 = vld [vmem:[%s417 + $0x630] sm:$0xff]
        %v719 = vld [vmem:[%s417 + $0x638] sm:$0xff]
        %v720 = vld [vmem:[%s417 + $0x640] sm:$0xff]
        %v721 = vld [vmem:[%s417 + $0x648] sm:$0xff]
        %v722 = vld [vmem:[%s417 + $0x650] sm:$0xff]
        %v723 = vld [vmem:[%s417 + $0x658] sm:$0xff]
        %v724 = vld [vmem:[%s417 + $0x660] sm:$0xff]
        %v725 = vld [vmem:[%s417 + $0x668] sm:$0xff]
        %v726 = vld [vmem:[%s417 + $0x670] sm:$0xff]
        %v727 = vld [vmem:[%s417 + $0x678] sm:$0xff]
        %v728 = vld [vmem:[%s417 + $0x680] sm:$0xff]
        %v729 = vld [vmem:[%s417 + $0x688] sm:$0xff]
        %v730 = vld [vmem:[%s417 + $0x690] sm:$0xff]
        %v731 = vld [vmem:[%s417 + $0x698] sm:$0xff]
        %v732 = vld [vmem:[%s417 + $0x6a0] sm:$0xff]
        %v733 = vld [vmem:[%s417 + $0x6a8] sm:$0xff]
        %v734 = vld [vmem:[%s417 + $0x6b0] sm:$0xff]
        %v735 = vld [vmem:[%s417 + $0x6b8] sm:$0xff]
        %v736 = vld [vmem:[%s417 + $0x6c0] sm:$0xff]
        %v737 = vld [vmem:[%s417 + $0x6c8] sm:$0xff]
        %v738 = vld [vmem:[%s417 + $0x6d0] sm:$0xff]
        %v739 = vld [vmem:[%s417 + $0x6d8] sm:$0xff]
        %v740 = vld [vmem:[%s417 + $0x6e0] sm:$0xff]
        %v741 = vld [vmem:[%s417 + $0x6e8] sm:$0xff]
        %v742 = vld [vmem:[%s417 + $0x6f0] sm:$0xff]
        %v743 = vld [vmem:[%s417 + $0x6f8] sm:$0xff]
        %v744 = vld [vmem:[%s417 + $0x700] sm:$0xff]
        %v745 = vld [vmem:[%s417 + $0x708] sm:$0xff]
        %v746 = vld [vmem:[%s417 + $0x710] sm:$0xff]
        %v747 = vld [vmem:[%s417 + $0x718] sm:$0xff]
        %v748 = vld [vmem:[%s417 + $0x720] sm:$0xff]
        %v749 = vld [vmem:[%s417 + $0x728] sm:$0xff]
        %v750 = vld [vmem:[%s417 + $0x730] sm:$0xff]
        %v751 = vld [vmem:[%s417 + $0x738] sm:$0xff]
        %v752 = vld [vmem:[%s417 + $0x740] sm:$0xff]
        %v753 = vld [vmem:[%s417 + $0x748] sm:$0xff]
        %v754 = vld [vmem:[%s417 + $0x750] sm:$0xff]
        %v755 = vld [vmem:[%s417 + $0x758] sm:$0xff]
        %v756 = vld [vmem:[%s417 + $0x760] sm:$0xff]
        %v757 = vld [vmem:[%s417 + $0x768] sm:$0xff]
        %v758 = vld [vmem:[%s417 + $0x770] sm:$0xff]
        %v759 = vld [vmem:[%s417 + $0x778] sm:$0xff]
        %v760 = vld [vmem:[%s417 + $0x780] sm:$0xff]
        %v761 = vld [vmem:[%s417 + $0x788] sm:$0xff]
        %v762 = vld [vmem:[%s417 + $0x790] sm:$0xff]
        %v763 = vld [vmem:[%s417 + $0x798] sm:$0xff]
        %v764 = vld [vmem:[%s417 + $0x7a0] sm:$0xff]
        %v765 = vld [vmem:[%s417 + $0x7a8] sm:$0xff]
        %v766 = vld [vmem:[%s417 + $0x7b0] sm:$0xff]
        %v767 = vld [vmem:[%s417 + $0x7b8] sm:$0xff]
        %v768 = vld [vmem:[%s417 + $0x7c0] sm:$0xff]
        %v769 = vld [vmem:[%s417 + $0x7c8] sm:$0xff]
        %v770 = vld [vmem:[%s417 + $0x7d0] sm:$0xff]
        %v771 = vld [vmem:[%s417 + $0x7d8] sm:$0xff]
        %v772 = vld [vmem:[%s417 + $0x7e0] sm:$0xff]
        %v773 = vld [vmem:[%s417 + $0x7e8] sm:$0xff]
        %v774 = vld [vmem:[%s417 + $0x7f0] sm:$0xff]
        %v775 = vld [vmem:[%s417 + $0x7f8] sm:$0xff]
        %v1032 = vunpack.c.l.b16 %v520
        %v1033 = vunpack.c.h.b16 %v520
        %v1034 = vunpack.c.l.b16 %v521
        %v1035 = vunpack.c.h.b16 %v521
        %v1036 = vunpack.c.l.b16 %v522
        %v1037 = vunpack.c.h.b16 %v522
        %v1038 = vunpack.c.l.b16 %v523
        %v1039 = vunpack.c.h.b16 %v523
        %v1040 = vunpack.c.l.b16 %v524
        %v1041 = vunpack.c.h.b16 %v524
        %v1042 = vunpack.c.l.b16 %v525
        %v1043 = vunpack.c.h.b16 %v525
        %v1044 = vunpack.c.l.b16 %v526
        %v1045 = vunpack.c.h.b16 %v526
        %v1046 = vunpack.c.l.b16 %v527
        %v1047 = vunpack.c.h.b16 %v527
        %v1048 = vunpack.c.l.b16 %v528
        %v1049 = vunpack.c.h.b16 %v528
        %v1050 = vunpack.c.l.b16 %v529
        %v1051 = vunpack.c.h.b16 %v529
        %v1052 = vunpack.c.l.b16 %v530
        %v1053 = vunpack.c.h.b16 %v530
        %v1054 = vunpack.c.l.b16 %v531
        %v1055 = vunpack.c.h.b16 %v531
        %v1056 = vunpack.c.l.b16 %v532
        %v1057 = vunpack.c.h.b16 %v532
        %v1058 = vunpack.c.l.b16 %v533
        %v1059 = vunpack.c.h.b16 %v533
        %v1060 = vunpack.c.l.b16 %v534
        %v1061 = vunpack.c.h.b16 %v534
        %v1062 = vunpack.c.l.b16 %v535
        %v1063 = vunpack.c.h.b16 %v535
        %v1064 = vunpack.c.l.b16 %v536
        %v1065 = vunpack.c.h.b16 %v536
        %v1066 = vunpack.c.l.b16 %v537
        %v1067 = vunpack.c.h.b16 %v537
        %v1068 = vunpack.c.l.b16 %v538
        %v1069 = vunpack.c.h.b16 %v538
        %v1070 = vunpack.c.l.b16 %v539
        %v1071 = vunpack.c.h.b16 %v539
        %v1072 = vunpack.c.l.b16 %v540
        %v1073 = vunpack.c.h.b16 %v540
        %v1074 = vunpack.c.l.b16 %v541
        %v1075 = vunpack.c.h.b16 %v541
        %v1076 = vunpack.c.l.b16 %v542
        %v1077 = vunpack.c.h.b16 %v542
        %v1078 = vunpack.c.l.b16 %v543
        %v1079 = vunpack.c.h.b16 %v543
        %v1080 = vunpack.c.l.b16 %v544
        %v1081 = vunpack.c.h.b16 %v544
        %v1082 = vunpack.c.l.b16 %v545
        %v1083 = vunpack.c.h.b16 %v545
        %v1084 = vunpack.c.l.b16 %v546
        %v1085 = vunpack.c.h.b16 %v546
        %v1086 = vunpack.c.l.b16 %v547
        %v1087 = vunpack.c.h.b16 %v547
        %v1088 = vunpack.c.l.b16 %v548
        %v1089 = vunpack.c.h.b16 %v548
        %v1090 = vunpack.c.l.b16 %v549
        %v1091 = vunpack.c.h.b16 %v549
        %v1092 = vunpack.c.l.b16 %v550
        %v1093 = vunpack.c.h.b16 %v550
        %v1094 = vunpack.c.l.b16 %v551
        %v1095 = vunpack.c.h.b16 %v551
        %v1096 = vunpack.c.l.b16 %v552
        %v1097 = vunpack.c.h.b16 %v552
        %v1098 = vunpack.c.l.b16 %v553
        %v1099 = vunpack.c.h.b16 %v553
        %v1100 = vunpack.c.l.b16 %v554
        %v1101 = vunpack.c.h.b16 %v554
        %v1102 = vunpack.c.l.b16 %v555
        %v1103 = vunpack.c.h.b16 %v555
        %v1104 = vunpack.c.l.b16 %v556
        %v1105 = vunpack.c.h.b16 %v556
        %v1106 = vunpack.c.l.b16 %v557
        %v1107 = vunpack.c.h.b16 %v557
        %v1108 = vunpack.c.l.b16 %v558
        %v1109 = vunpack.c.h.b16 %v558
        %v1110 = vunpack.c.l.b16 %v559
        %v1111 = vunpack.c.h.b16 %v559
        %v1112 = vunpack.c.l.b16 %v560
        %v1113 = vunpack.c.h.b16 %v560
        %v1114 = vunpack.c.l.b16 %v561
        %v1115 = vunpack.c.h.b16 %v561
        %v1116 = vunpack.c.l.b16 %v562
        %v1117 = vunpack.c.h.b16 %v562
        %v1118 = vunpack.c.l.b16 %v563
        %v1119 = vunpack.c.h.b16 %v563
        %v1120 = vunpack.c.l.b16 %v564
        %v1121 = vunpack.c.h.b16 %v564
        %v1122 = vunpack.c.l.b16 %v565
        %v1123 = vunpack.c.h.b16 %v565
        %v1124 = vunpack.c.l.b16 %v566
        %v1125 = vunpack.c.h.b16 %v566
        %v1126 = vunpack.c.l.b16 %v567
        %v1127 = vunpack.c.h.b16 %v567
        %v1128 = vunpack.c.l.b16 %v568
        %v1129 = vunpack.c.h.b16 %v568
        %v1130 = vunpack.c.l.b16 %v569
        %v1131 = vunpack.c.h.b16 %v569
        %v1132 = vunpack.c.l.b16 %v570
        %v1133 = vunpack.c.h.b16 %v570
        %v1134 = vunpack.c.l.b16 %v571
        %v1135 = vunpack.c.h.b16 %v571
        %v1136 = vunpack.c.l.b16 %v572
        %v1137 = vunpack.c.h.b16 %v572
        %v1138 = vunpack.c.l.b16 %v573
        %v1139 = vunpack.c.h.b16 %v573
        %v1140 = vunpack.c.l.b16 %v574
        %v1141 = vunpack.c.h.b16 %v574
        %v1142 = vunpack.c.l.b16 %v575
        %v1143 = vunpack.c.h.b16 %v575
        %v1144 = vunpack.c.l.b16 %v576
        %v1145 = vunpack.c.h.b16 %v576
        %v1146 = vunpack.c.l.b16 %v577
        %v1147 = vunpack.c.h.b16 %v577
        %v1148 = vunpack.c.l.b16 %v578
        %v1149 = vunpack.c.h.b16 %v578
        %v1150 = vunpack.c.l.b16 %v579
        %v1151 = vunpack.c.h.b16 %v579
        %v1152 = vunpack.c.l.b16 %v580
        %v1153 = vunpack.c.h.b16 %v580
        %v1154 = vunpack.c.l.b16 %v581
        %v1155 = vunpack.c.h.b16 %v581
        %v1156 = vunpack.c.l.b16 %v582
        %v1157 = vunpack.c.h.b16 %v582
        %v1158 = vunpack.c.l.b16 %v583
        %v1159 = vunpack.c.h.b16 %v583
        %v1160 = vunpack.c.l.b16 %v584
        %v1161 = vunpack.c.h.b16 %v584
        %v1162 = vunpack.c.l.b16 %v585
        %v1163 = vunpack.c.h.b16 %v585
        %v1164 = vunpack.c.l.b16 %v586
        %v1165 = vunpack.c.h.b16 %v586
        %v1166 = vunpack.c.l.b16 %v587
        %v1167 = vunpack.c.h.b16 %v587
        %v1168 = vunpack.c.l.b16 %v588
        %v1169 = vunpack.c.h.b16 %v588
        %v1170 = vunpack.c.l.b16 %v589
        %v1171 = vunpack.c.h.b16 %v589
        %v1172 = vunpack.c.l.b16 %v590
        %v1173 = vunpack.c.h.b16 %v590
        %v1174 = vunpack.c.l.b16 %v591
        %v1175 = vunpack.c.h.b16 %v591
        %v1176 = vunpack.c.l.b16 %v592
        %v1177 = vunpack.c.h.b16 %v592
        %v1178 = vunpack.c.l.b16 %v593
        %v1179 = vunpack.c.h.b16 %v593
        %v1180 = vunpack.c.l.b16 %v594
        %v1181 = vunpack.c.h.b16 %v594
        %v1182 = vunpack.c.l.b16 %v595
        %v1183 = vunpack.c.h.b16 %v595
        %v1184 = vunpack.c.l.b16 %v596
        %v1185 = vunpack.c.h.b16 %v596
        %v1186 = vunpack.c.l.b16 %v597
        %v1187 = vunpack.c.h.b16 %v597
        %v1188 = vunpack.c.l.b16 %v598
        %v1189 = vunpack.c.h.b16 %v598
        %v1190 = vunpack.c.l.b16 %v599
        %v1191 = vunpack.c.h.b16 %v599
        %v1192 = vunpack.c.l.b16 %v600
        %v1193 = vunpack.c.h.b16 %v600
        %v1194 = vunpack.c.l.b16 %v601
        %v1195 = vunpack.c.h.b16 %v601
        %v1196 = vunpack.c.l.b16 %v602
        %v1197 = vunpack.c.h.b16 %v602
        %v1198 = vunpack.c.l.b16 %v603
        %v1199 = vunpack.c.h.b16 %v603
        %v1200 = vunpack.c.l.b16 %v604
        %v1201 = vunpack.c.h.b16 %v604
        %v1202 = vunpack.c.l.b16 %v605
        %v1203 = vunpack.c.h.b16 %v605
        %v1204 = vunpack.c.l.b16 %v606
        %v1205 = vunpack.c.h.b16 %v606
        %v1206 = vunpack.c.l.b16 %v607
        %v1207 = vunpack.c.h.b16 %v607
        %v1208 = vunpack.c.l.b16 %v608
        %v1209 = vunpack.c.h.b16 %v608
        %v1210 = vunpack.c.l.b16 %v609
        %v1211 = vunpack.c.h.b16 %v609
        %v1212 = vunpack.c.l.b16 %v610
        %v1213 = vunpack.c.h.b16 %v610
        %v1214 = vunpack.c.l.b16 %v611
        %v1215 = vunpack.c.h.b16 %v611
        %v1216 = vunpack.c.l.b16 %v612
        %v1217 = vunpack.c.h.b16 %v612
        %v1218 = vunpack.c.l.b16 %v613
        %v1219 = vunpack.c.h.b16 %v613
        %v1220 = vunpack.c.l.b16 %v614
        %v1221 = vunpack.c.h.b16 %v614
        %v1222 = vunpack.c.l.b16 %v615
        %v1223 = vunpack.c.h.b16 %v615
        %v1224 = vunpack.c.l.b16 %v616
        %v1225 = vunpack.c.h.b16 %v616
        %v1226 = vunpack.c.l.b16 %v617
        %v1227 = vunpack.c.h.b16 %v617
        %v1228 = vunpack.c.l.b16 %v618
        %v1229 = vunpack.c.h.b16 %v618
        %v1230 = vunpack.c.l.b16 %v619
        %v1231 = vunpack.c.h.b16 %v619
        %v1232 = vunpack.c.l.b16 %v620
        %v1233 = vunpack.c.h.b16 %v620
        %v1234 = vunpack.c.l.b16 %v621
        %v1235 = vunpack.c.h.b16 %v621
        %v1236 = vunpack.c.l.b16 %v622
        %v1237 = vunpack.c.h.b16 %v622
        %v1238 = vunpack.c.l.b16 %v623
        %v1239 = vunpack.c.h.b16 %v623
        %v1240 = vunpack.c.l.b16 %v624
        %v1241 = vunpack.c.h.b16 %v624
        %v1242 = vunpack.c.l.b16 %v625
        %v1243 = vunpack.c.h.b16 %v625
        %v1244 = vunpack.c.l.b16 %v626
        %v1245 = vunpack.c.h.b16 %v626
        %v1246 = vunpack.c.l.b16 %v627
        %v1247 = vunpack.c.h.b16 %v627
        %v1248 = vunpack.c.l.b16 %v628
        %v1249 = vunpack.c.h.b16 %v628
        %v1250 = vunpack.c.l.b16 %v629
        %v1251 = vunpack.c.h.b16 %v629
        %v1252 = vunpack.c.l.b16 %v630
        %v1253 = vunpack.c.h.b16 %v630
        %v1254 = vunpack.c.l.b16 %v631
        %v1255 = vunpack.c.h.b16 %v631
        %v1256 = vunpack.c.l.b16 %v632
        %v1257 = vunpack.c.h.b16 %v632
        %v1258 = vunpack.c.l.b16 %v633
        %v1259 = vunpack.c.h.b16 %v633
        %v1260 = vunpack.c.l.b16 %v634
        %v1261 = vunpack.c.h.b16 %v634
        %v1262 = vunpack.c.l.b16 %v635
        %v1263 = vunpack.c.h.b16 %v635
        %v1264 = vunpack.c.l.b16 %v636
        %v1265 = vunpack.c.h.b16 %v636
        %v1266 = vunpack.c.l.b16 %v637
        %v1267 = vunpack.c.h.b16 %v637
        %v1268 = vunpack.c.l.b16 %v638
        %v1269 = vunpack.c.h.b16 %v638
        %v1270 = vunpack.c.l.b16 %v639
        %v1271 = vunpack.c.h.b16 %v639
        %v1272 = vunpack.c.l.b16 %v640
        %v1273 = vunpack.c.h.b16 %v640
        %v1274 = vunpack.c.l.b16 %v641
        %v1275 = vunpack.c.h.b16 %v641
        %v1276 = vunpack.c.l.b16 %v642
        %v1277 = vunpack.c.h.b16 %v642
        %v1278 = vunpack.c.l.b16 %v643
        %v1279 = vunpack.c.h.b16 %v643
        %v1280 = vunpack.c.l.b16 %v644
        %v1281 = vunpack.c.h.b16 %v644
        %v1282 = vunpack.c.l.b16 %v645
        %v1283 = vunpack.c.h.b16 %v645
        %v1284 = vunpack.c.l.b16 %v646
        %v1285 = vunpack.c.h.b16 %v646
        %v1286 = vunpack.c.l.b16 %v647
        %v1287 = vunpack.c.h.b16 %v647
        %v1288 = vunpack.c.l.b16 %v648
        %v1289 = vunpack.c.h.b16 %v648
        %v1290 = vunpack.c.l.b16 %v649
        %v1291 = vunpack.c.h.b16 %v649
        %v1292 = vunpack.c.l.b16 %v650
        %v1293 = vunpack.c.h.b16 %v650
        %v1294 = vunpack.c.l.b16 %v651
        %v1295 = vunpack.c.h.b16 %v651
        %v1296 = vunpack.c.l.b16 %v652
        %v1297 = vunpack.c.h.b16 %v652
        %v1298 = vunpack.c.l.b16 %v653
        %v1299 = vunpack.c.h.b16 %v653
        %v1300 = vunpack.c.l.b16 %v654
        %v1301 = vunpack.c.h.b16 %v654
        %v1302 = vunpack.c.l.b16 %v655
        %v1303 = vunpack.c.h.b16 %v655
        %v1304 = vunpack.c.l.b16 %v656
        %v1305 = vunpack.c.h.b16 %v656
        %v1306 = vunpack.c.l.b16 %v657
        %v1307 = vunpack.c.h.b16 %v657
        %v1308 = vunpack.c.l.b16 %v658
        %v1309 = vunpack.c.h.b16 %v658
        %v1310 = vunpack.c.l.b16 %v659
        %v1311 = vunpack.c.h.b16 %v659
        %v1312 = vunpack.c.l.b16 %v660
        %v1313 = vunpack.c.h.b16 %v660
        %v1314 = vunpack.c.l.b16 %v661
        %v1315 = vunpack.c.h.b16 %v661
        %v1316 = vunpack.c.l.b16 %v662
        %v1317 = vunpack.c.h.b16 %v662
        %v1318 = vunpack.c.l.b16 %v663
        %v1319 = vunpack.c.h.b16 %v663
        %v1320 = vunpack.c.l.b16 %v664
        %v1321 = vunpack.c.h.b16 %v664
        %v1322 = vunpack.c.l.b16 %v665
        %v1323 = vunpack.c.h.b16 %v665
        %v1324 = vunpack.c.l.b16 %v666
        %v1325 = vunpack.c.h.b16 %v666
        %v1326 = vunpack.c.l.b16 %v667
        %v1327 = vunpack.c.h.b16 %v667
        %v1328 = vunpack.c.l.b16 %v668
        %v1329 = vunpack.c.h.b16 %v668
        %v1330 = vunpack.c.l.b16 %v669
        %v1331 = vunpack.c.h.b16 %v669
        %v1332 = vunpack.c.l.b16 %v670
        %v1333 = vunpack.c.h.b16 %v670
        %v1334 = vunpack.c.l.b16 %v671
        %v1335 = vunpack.c.h.b16 %v671
        %v1336 = vunpack.c.l.b16 %v672
        %v1337 = vunpack.c.h.b16 %v672
        %v1338 = vunpack.c.l.b16 %v673
        %v1339 = vunpack.c.h.b16 %v673
        %v1340 = vunpack.c.l.b16 %v674
        %v1341 = vunpack.c.h.b16 %v674
        %v1342 = vunpack.c.l.b16 %v675
        %v1343 = vunpack.c.h.b16 %v675
        %v1344 = vunpack.c.l.b16 %v676
        %v1345 = vunpack.c.h.b16 %v676
        %v1346 = vunpack.c.l.b16 %v677
        %v1347 = vunpack.c.h.b16 %v677
        %v1348 = vunpack.c.l.b16 %v678
        %v1349 = vunpack.c.h.b16 %v678
        %v1350 = vunpack.c.l.b16 %v679
        %v1351 = vunpack.c.h.b16 %v679
        %v1352 = vunpack.c.l.b16 %v680
        %v1353 = vunpack.c.h.b16 %v680
        %v1354 = vunpack.c.l.b16 %v681
        %v1355 = vunpack.c.h.b16 %v681
        %v1356 = vunpack.c.l.b16 %v682
        %v1357 = vunpack.c.h.b16 %v682
        %v1358 = vunpack.c.l.b16 %v683
        %v1359 = vunpack.c.h.b16 %v683
        %v1360 = vunpack.c.l.b16 %v684
        %v1361 = vunpack.c.h.b16 %v684
        %v1362 = vunpack.c.l.b16 %v685
        %v1363 = vunpack.c.h.b16 %v685
        %v1364 = vunpack.c.l.b16 %v686
        %v1365 = vunpack.c.h.b16 %v686
        %v1366 = vunpack.c.l.b16 %v687
        %v1367 = vunpack.c.h.b16 %v687
        %v1368 = vunpack.c.l.b16 %v688
        %v1369 = vunpack.c.h.b16 %v688
        %v1370 = vunpack.c.l.b16 %v689
        %v1371 = vunpack.c.h.b16 %v689
        %v1372 = vunpack.c.l.b16 %v690
        %v1373 = vunpack.c.h.b16 %v690
        %v1374 = vunpack.c.l.b16 %v691
        %v1375 = vunpack.c.h.b16 %v691
        %v1376 = vunpack.c.l.b16 %v692
        %v1377 = vunpack.c.h.b16 %v692
        %v1378 = vunpack.c.l.b16 %v693
        %v1379 = vunpack.c.h.b16 %v693
        %v1380 = vunpack.c.l.b16 %v694
        %v1381 = vunpack.c.h.b16 %v694
        %v1382 = vunpack.c.l.b16 %v695
        %v1383 = vunpack.c.h.b16 %v695
        %v1384 = vunpack.c.l.b16 %v696
        %v1385 = vunpack.c.h.b16 %v696
        %v1386 = vunpack.c.l.b16 %v697
        %v1387 = vunpack.c.h.b16 %v697
        %v1388 = vunpack.c.l.b16 %v698
        %v1389 = vunpack.c.h.b16 %v698
        %v1390 = vunpack.c.l.b16 %v699
        %v1391 = vunpack.c.h.b16 %v699
        %v1392 = vunpack.c.l.b16 %v700
        %v1393 = vunpack.c.h.b16 %v700
        %v1394 = vunpack.c.l.b16 %v701
        %v1395 = vunpack.c.h.b16 %v701
        %v1396 = vunpack.c.l.b16 %v702
        %v1397 = vunpack.c.h.b16 %v702
        %v1398 = vunpack.c.l.b16 %v703
        %v1399 = vunpack.c.h.b16 %v703
        %v1400 = vunpack.c.l.b16 %v704
        %v1401 = vunpack.c.h.b16 %v704
        %v1402 = vunpack.c.l.b16 %v705
        %v1403 = vunpack.c.h.b16 %v705
        %v1404 = vunpack.c.l.b16 %v706
        %v1405 = vunpack.c.h.b16 %v706
        %v1406 = vunpack.c.l.b16 %v707
        %v1407 = vunpack.c.h.b16 %v707
        %v1408 = vunpack.c.l.b16 %v708
        %v1409 = vunpack.c.h.b16 %v708
        %v1410 = vunpack.c.l.b16 %v709
        %v1411 = vunpack.c.h.b16 %v709
        %v1412 = vunpack.c.l.b16 %v710
        %v1413 = vunpack.c.h.b16 %v710
        %v1414 = vunpack.c.l.b16 %v711
        %v1415 = vunpack.c.h.b16 %v711
        %v1416 = vunpack.c.l.b16 %v712
        %v1417 = vunpack.c.h.b16 %v712
        %v1418 = vunpack.c.l.b16 %v713
        %v1419 = vunpack.c.h.b16 %v713
        %v1420 = vunpack.c.l.b16 %v714
        %v1421 = vunpack.c.h.b16 %v714
        %v1422 = vunpack.c.l.b16 %v715
        %v1423 = vunpack.c.h.b16 %v715
        %v1424 = vunpack.c.l.b16 %v716
        %v1425 = vunpack.c.h.b16 %v716
        %v1426 = vunpack.c.l.b16 %v717
        %v1427 = vunpack.c.h.b16 %v717
        %v1428 = vunpack.c.l.b16 %v718
        %v1429 = vunpack.c.h.b16 %v718
        %v1430 = vunpack.c.l.b16 %v719
        %v1431 = vunpack.c.h.b16 %v719
        %v1432 = vunpack.c.l.b16 %v720
        %v1433 = vunpack.c.h.b16 %v720
        %v1434 = vunpack.c.l.b16 %v721
        %v1435 = vunpack.c.h.b16 %v721
        %v1436 = vunpack.c.l.b16 %v722
        %v1437 = vunpack.c.h.b16 %v722
        %v1438 = vunpack.c.l.b16 %v723
        %v1439 = vunpack.c.h.b16 %v723
        %v1440 = vunpack.c.l.b16 %v724
        %v1441 = vunpack.c.h.b16 %v724
        %v1442 = vunpack.c.l.b16 %v725
        %v1443 = vunpack.c.h.b16 %v725
        %v1444 = vunpack.c.l.b16 %v726
        %v1445 = vunpack.c.h.b16 %v726
        %v1446 = vunpack.c.l.b16 %v727
        %v1447 = vunpack.c.h.b16 %v727
        %v1448 = vunpack.c.l.b16 %v728
        %v1449 = vunpack.c.h.b16 %v728
        %v1450 = vunpack.c.l.b16 %v729
        %v1451 = vunpack.c.h.b16 %v729
        %v1452 = vunpack.c.l.b16 %v730
        %v1453 = vunpack.c.h.b16 %v730
        %v1454 = vunpack.c.l.b16 %v731
        %v1455 = vunpack.c.h.b16 %v731
        %v1456 = vunpack.c.l.b16 %v732
        %v1457 = vunpack.c.h.b16 %v732
        %v1458 = vunpack.c.l.b16 %v733
        %v1459 = vunpack.c.h.b16 %v733
        %v1460 = vunpack.c.l.b16 %v734
        %v1461 = vunpack.c.h.b16 %v734
        %v1462 = vunpack.c.l.b16 %v735
        %v1463 = vunpack.c.h.b16 %v735
        %v1464 = vunpack.c.l.b16 %v736
        %v1465 = vunpack.c.h.b16 %v736
        %v1466 = vunpack.c.l.b16 %v737
        %v1467 = vunpack.c.h.b16 %v737
        %v1468 = vunpack.c.l.b16 %v738
        %v1469 = vunpack.c.h.b16 %v738
        %v1470 = vunpack.c.l.b16 %v739
        %v1471 = vunpack.c.h.b16 %v739
        %v1472 = vunpack.c.l.b16 %v740
        %v1473 = vunpack.c.h.b16 %v740
        %v1474 = vunpack.c.l.b16 %v741
        %v1475 = vunpack.c.h.b16 %v741
        %v1476 = vunpack.c.l.b16 %v742
        %v1477 = vunpack.c.h.b16 %v742
        %v1478 = vunpack.c.l.b16 %v743
        %v1479 = vunpack.c.h.b16 %v743
        %v1480 = vunpack.c.l.b16 %v744
        %v1481 = vunpack.c.h.b16 %v744
        %v1482 = vunpack.c.l.b16 %v745
        %v1483 = vunpack.c.h.b16 %v745
        %v1484 = vunpack.c.l.b16 %v746
        %v1485 = vunpack.c.h.b16 %v746
        %v1486 = vunpack.c.l.b16 %v747
        %v1487 = vunpack.c.h.b16 %v747
        %v1488 = vunpack.c.l.b16 %v748
        %v1489 = vunpack.c.h.b16 %v748
        %v1490 = vunpack.c.l.b16 %v749
        %v1491 = vunpack.c.h.b16 %v749
        %v1492 = vunpack.c.l.b16 %v750
        %v1493 = vunpack.c.h.b16 %v750
        %v1494 = vunpack.c.l.b16 %v751
        %v1495 = vunpack.c.h.b16 %v751
        %v1496 = vunpack.c.l.b16 %v752
        %v1497 = vunpack.c.h.b16 %v752
        %v1498 = vunpack.c.l.b16 %v753
        %v1499 = vunpack.c.h.b16 %v753
        %v1500 = vunpack.c.l.b16 %v754
        %v1501 = vunpack.c.h.b16 %v754
        %v1502 = vunpack.c.l.b16 %v755
        %v1503 = vunpack.c.h.b16 %v755
        %v1504 = vunpack.c.l.b16 %v756
        %v1505 = vunpack.c.h.b16 %v756
        %v1506 = vunpack.c.l.b16 %v757
        %v1507 = vunpack.c.h.b16 %v757
        %v1508 = vunpack.c.l.b16 %v758
        %v1509 = vunpack.c.h.b16 %v758
        %v1510 = vunpack.c.l.b16 %v759
        %v1511 = vunpack.c.h.b16 %v759
        %v1512 = vunpack.c.l.b16 %v760
        %v1513 = vunpack.c.h.b16 %v760
        %v1514 = vunpack.c.l.b16 %v761
        %v1515 = vunpack.c.h.b16 %v761
        %v1516 = vunpack.c.l.b16 %v762
        %v1517 = vunpack.c.h.b16 %v762
        %v1518 = vunpack.c.l.b16 %v763
        %v1519 = vunpack.c.h.b16 %v763
        %v1520 = vunpack.c.l.b16 %v764
        %v1521 = vunpack.c.h.b16 %v764
        %v1522 = vunpack.c.l.b16 %v765
        %v1523 = vunpack.c.h.b16 %v765
        %v1524 = vunpack.c.l.b16 %v766
        %v1525 = vunpack.c.h.b16 %v766
        %v1526 = vunpack.c.l.b16 %v767
        %v1527 = vunpack.c.h.b16 %v767
        %v1528 = vunpack.c.l.b16 %v768
        %v1529 = vunpack.c.h.b16 %v768
        %v1530 = vunpack.c.l.b16 %v769
        %v1531 = vunpack.c.h.b16 %v769
        %v1532 = vunpack.c.l.b16 %v770
        %v1533 = vunpack.c.h.b16 %v770
        %v1534 = vunpack.c.l.b16 %v771
        %v1535 = vunpack.c.h.b16 %v771
        %v1536 = vunpack.c.l.b16 %v772
        %v1537 = vunpack.c.h.b16 %v772
        %v1538 = vunpack.c.l.b16 %v773
        %v1539 = vunpack.c.h.b16 %v773
        %v1540 = vunpack.c.l.b16 %v774
        %v1541 = vunpack.c.h.b16 %v774
        %v1542 = vunpack.c.l.b16 %v775
        %v1543 = vunpack.c.h.b16 %v775
        %v1544 = vpack.c.b16 %v1040, %v1032
        %v1545 = vpack.c.b16 %v1041, %v1033
        %v1546 = vpack.c.b16 %v1042, %v1034
        %v1547 = vpack.c.b16 %v1043, %v1035
        %v1548 = vpack.c.b16 %v1044, %v1036
        %v1549 = vpack.c.b16 %v1045, %v1037
        %v1550 = vpack.c.b16 %v1046, %v1038
        %v1551 = vpack.c.b16 %v1047, %v1039
        %v1552 = vpack.c.b16 %v1056, %v1048
        %v1553 = vpack.c.b16 %v1057, %v1049
        %v1554 = vpack.c.b16 %v1058, %v1050
        %v1555 = vpack.c.b16 %v1059, %v1051
        %v1556 = vpack.c.b16 %v1060, %v1052
        %v1557 = vpack.c.b16 %v1061, %v1053
        %v1558 = vpack.c.b16 %v1062, %v1054
        %v1559 = vpack.c.b16 %v1063, %v1055
        %v1560 = vpack.c.b16 %v1072, %v1064
        %v1561 = vpack.c.b16 %v1073, %v1065
        %v1562 = vpack.c.b16 %v1074, %v1066
        %v1563 = vpack.c.b16 %v1075, %v1067
        %v1564 = vpack.c.b16 %v1076, %v1068
        %v1565 = vpack.c.b16 %v1077, %v1069
        %v1566 = vpack.c.b16 %v1078, %v1070
        %v1567 = vpack.c.b16 %v1079, %v1071
        %v1568 = vpack.c.b16 %v1088, %v1080
        %v1569 = vpack.c.b16 %v1089, %v1081
        %v1570 = vpack.c.b16 %v1090, %v1082
        %v1571 = vpack.c.b16 %v1091, %v1083
        %v1572 = vpack.c.b16 %v1092, %v1084
        %v1573 = vpack.c.b16 %v1093, %v1085
        %v1574 = vpack.c.b16 %v1094, %v1086
        %v1575 = vpack.c.b16 %v1095, %v1087
        %v1576 = vpack.c.b16 %v1104, %v1096
        %v1577 = vpack.c.b16 %v1105, %v1097
        %v1578 = vpack.c.b16 %v1106, %v1098
        %v1579 = vpack.c.b16 %v1107, %v1099
        %v1580 = vpack.c.b16 %v1108, %v1100
        %v1581 = vpack.c.b16 %v1109, %v1101
        %v1582 = vpack.c.b16 %v1110, %v1102
        %v1583 = vpack.c.b16 %v1111, %v1103
        %v1584 = vpack.c.b16 %v1120, %v1112
        %v1585 = vpack.c.b16 %v1121, %v1113
        %v1586 = vpack.c.b16 %v1122, %v1114
        %v1587 = vpack.c.b16 %v1123, %v1115
        %v1588 = vpack.c.b16 %v1124, %v1116
        %v1589 = vpack.c.b16 %v1125, %v1117
        %v1590 = vpack.c.b16 %v1126, %v1118
        %v1591 = vpack.c.b16 %v1127, %v1119
        %v1592 = vpack.c.b16 %v1136, %v1128
        %v1593 = vpack.c.b16 %v1137, %v1129
        %v1594 = vpack.c.b16 %v1138, %v1130
        %v1595 = vpack.c.b16 %v1139, %v1131
        %v1596 = vpack.c.b16 %v1140, %v1132
        %v1597 = vpack.c.b16 %v1141, %v1133
        %v1598 = vpack.c.b16 %v1142, %v1134
        %v1599 = vpack.c.b16 %v1143, %v1135
        %v1600 = vpack.c.b16 %v1152, %v1144
        %v1601 = vpack.c.b16 %v1153, %v1145
        %v1602 = vpack.c.b16 %v1154, %v1146
        %v1603 = vpack.c.b16 %v1155, %v1147
        %v1604 = vpack.c.b16 %v1156, %v1148
        %v1605 = vpack.c.b16 %v1157, %v1149
        %v1606 = vpack.c.b16 %v1158, %v1150
        %v1607 = vpack.c.b16 %v1159, %v1151
        %v1608 = vpack.c.b16 %v1168, %v1160
        %v1609 = vpack.c.b16 %v1169, %v1161
        %v1610 = vpack.c.b16 %v1170, %v1162
        %v1611 = vpack.c.b16 %v1171, %v1163
        %v1612 = vpack.c.b16 %v1172, %v1164
        %v1613 = vpack.c.b16 %v1173, %v1165
        %v1614 = vpack.c.b16 %v1174, %v1166
        %v1615 = vpack.c.b16 %v1175, %v1167
        %v1616 = vpack.c.b16 %v1184, %v1176
        %v1617 = vpack.c.b16 %v1185, %v1177
        %v1618 = vpack.c.b16 %v1186, %v1178
        %v1619 = vpack.c.b16 %v1187, %v1179
        %v1620 = vpack.c.b16 %v1188, %v1180
        %v1621 = vpack.c.b16 %v1189, %v1181
        %v1622 = vpack.c.b16 %v1190, %v1182
        %v1623 = vpack.c.b16 %v1191, %v1183
        %v1624 = vpack.c.b16 %v1200, %v1192
        %v1625 = vpack.c.b16 %v1201, %v1193
        %v1626 = vpack.c.b16 %v1202, %v1194
        %v1627 = vpack.c.b16 %v1203, %v1195
        %v1628 = vpack.c.b16 %v1204, %v1196
        %v1629 = vpack.c.b16 %v1205, %v1197
        %v1630 = vpack.c.b16 %v1206, %v1198
        %v1631 = vpack.c.b16 %v1207, %v1199
        %v1632 = vpack.c.b16 %v1216, %v1208
        %v1633 = vpack.c.b16 %v1217, %v1209
        %v1634 = vpack.c.b16 %v1218, %v1210
        %v1635 = vpack.c.b16 %v1219, %v1211
        %v1636 = vpack.c.b16 %v1220, %v1212
        %v1637 = vpack.c.b16 %v1221, %v1213
        %v1638 = vpack.c.b16 %v1222, %v1214
        %v1639 = vpack.c.b16 %v1223, %v1215
        %v1640 = vpack.c.b16 %v1232, %v1224
        %v1641 = vpack.c.b16 %v1233, %v1225
        %v1642 = vpack.c.b16 %v1234, %v1226
        %v1643 = vpack.c.b16 %v1235, %v1227
        %v1644 = vpack.c.b16 %v1236, %v1228
        %v1645 = vpack.c.b16 %v1237, %v1229
        %v1646 = vpack.c.b16 %v1238, %v1230
        %v1647 = vpack.c.b16 %v1239, %v1231
        %v1648 = vpack.c.b16 %v1248, %v1240
        %v1649 = vpack.c.b16 %v1249, %v1241
        %v1650 = vpack.c.b16 %v1250, %v1242
        %v1651 = vpack.c.b16 %v1251, %v1243
        %v1652 = vpack.c.b16 %v1252, %v1244
        %v1653 = vpack.c.b16 %v1253, %v1245
        %v1654 = vpack.c.b16 %v1254, %v1246
        %v1655 = vpack.c.b16 %v1255, %v1247
        %v1656 = vpack.c.b16 %v1264, %v1256
        %v1657 = vpack.c.b16 %v1265, %v1257
        %v1658 = vpack.c.b16 %v1266, %v1258
        %v1659 = vpack.c.b16 %v1267, %v1259
        %v1660 = vpack.c.b16 %v1268, %v1260
        %v1661 = vpack.c.b16 %v1269, %v1261
        %v1662 = vpack.c.b16 %v1270, %v1262
        %v1663 = vpack.c.b16 %v1271, %v1263
        %v1664 = vpack.c.b16 %v1280, %v1272
        %v1665 = vpack.c.b16 %v1281, %v1273
        %v1666 = vpack.c.b16 %v1282, %v1274
        %v1667 = vpack.c.b16 %v1283, %v1275
        %v1668 = vpack.c.b16 %v1284, %v1276
        %v1669 = vpack.c.b16 %v1285, %v1277
        %v1670 = vpack.c.b16 %v1286, %v1278
        %v1671 = vpack.c.b16 %v1287, %v1279
        %v1672 = vpack.c.b16 %v1296, %v1288
        %v1673 = vpack.c.b16 %v1297, %v1289
        %v1674 = vpack.c.b16 %v1298, %v1290
        %v1675 = vpack.c.b16 %v1299, %v1291
        %v1676 = vpack.c.b16 %v1300, %v1292
        %v1677 = vpack.c.b16 %v1301, %v1293
        %v1678 = vpack.c.b16 %v1302, %v1294
        %v1679 = vpack.c.b16 %v1303, %v1295
        %v1680 = vpack.c.b16 %v1312, %v1304
        %v1681 = vpack.c.b16 %v1313, %v1305
        %v1682 = vpack.c.b16 %v1314, %v1306
        %v1683 = vpack.c.b16 %v1315, %v1307
        %v1684 = vpack.c.b16 %v1316, %v1308
        %v1685 = vpack.c.b16 %v1317, %v1309
        %v1686 = vpack.c.b16 %v1318, %v1310
        %v1687 = vpack.c.b16 %v1319, %v1311
        %v1688 = vpack.c.b16 %v1328, %v1320
        %v1689 = vpack.c.b16 %v1329, %v1321
        %v1690 = vpack.c.b16 %v1330, %v1322
        %v1691 = vpack.c.b16 %v1331, %v1323
        %v1692 = vpack.c.b16 %v1332, %v1324
        %v1693 = vpack.c.b16 %v1333, %v1325
        %v1694 = vpack.c.b16 %v1334, %v1326
        %v1695 = vpack.c.b16 %v1335, %v1327
        %v1696 = vpack.c.b16 %v1344, %v1336
        %v1697 = vpack.c.b16 %v1345, %v1337
        %v1698 = vpack.c.b16 %v1346, %v1338
        %v1699 = vpack.c.b16 %v1347, %v1339
        %v1700 = vpack.c.b16 %v1348, %v1340
        %v1701 = vpack.c.b16 %v1349, %v1341
        %v1702 = vpack.c.b16 %v1350, %v1342
        %v1703 = vpack.c.b16 %v1351, %v1343
        %v1704 = vpack.c.b16 %v1360, %v1352
        %v1705 = vpack.c.b16 %v1361, %v1353
        %v1706 = vpack.c.b16 %v1362, %v1354
        %v1707 = vpack.c.b16 %v1363, %v1355
        %v1708 = vpack.c.b16 %v1364, %v1356
        %v1709 = vpack.c.b16 %v1365, %v1357
        %v1710 = vpack.c.b16 %v1366, %v1358
        %v1711 = vpack.c.b16 %v1367, %v1359
        %v1712 = vpack.c.b16 %v1376, %v1368
        %v1713 = vpack.c.b16 %v1377, %v1369
        %v1714 = vpack.c.b16 %v1378, %v1370
        %v1715 = vpack.c.b16 %v1379, %v1371
        %v1716 = vpack.c.b16 %v1380, %v1372
        %v1717 = vpack.c.b16 %v1381, %v1373
        %v1718 = vpack.c.b16 %v1382, %v1374
        %v1719 = vpack.c.b16 %v1383, %v1375
        %v1720 = vpack.c.b16 %v1392, %v1384
        %v1721 = vpack.c.b16 %v1393, %v1385
        %v1722 = vpack.c.b16 %v1394, %v1386
        %v1723 = vpack.c.b16 %v1395, %v1387
        %v1724 = vpack.c.b16 %v1396, %v1388
        %v1725 = vpack.c.b16 %v1397, %v1389
        %v1726 = vpack.c.b16 %v1398, %v1390
        %v1727 = vpack.c.b16 %v1399, %v1391
        %v1728 = vpack.c.b16 %v1408, %v1400
        %v1729 = vpack.c.b16 %v1409, %v1401
        %v1730 = vpack.c.b16 %v1410, %v1402
        %v1731 = vpack.c.b16 %v1411, %v1403
        %v1732 = vpack.c.b16 %v1412, %v1404
        %v1733 = vpack.c.b16 %v1413, %v1405
        %v1734 = vpack.c.b16 %v1414, %v1406
        %v1735 = vpack.c.b16 %v1415, %v1407
        %v1736 = vpack.c.b16 %v1424, %v1416
        %v1737 = vpack.c.b16 %v1425, %v1417
        %v1738 = vpack.c.b16 %v1426, %v1418
        %v1739 = vpack.c.b16 %v1427, %v1419
        %v1740 = vpack.c.b16 %v1428, %v1420
        %v1741 = vpack.c.b16 %v1429, %v1421
        %v1742 = vpack.c.b16 %v1430, %v1422
        %v1743 = vpack.c.b16 %v1431, %v1423
        %v1744 = vpack.c.b16 %v1440, %v1432
        %v1745 = vpack.c.b16 %v1441, %v1433
        %v1746 = vpack.c.b16 %v1442, %v1434
        %v1747 = vpack.c.b16 %v1443, %v1435
        %v1748 = vpack.c.b16 %v1444, %v1436
        %v1749 = vpack.c.b16 %v1445, %v1437
        %v1750 = vpack.c.b16 %v1446, %v1438
        %v1751 = vpack.c.b16 %v1447, %v1439
        %v1752 = vpack.c.b16 %v1456, %v1448
        %v1753 = vpack.c.b16 %v1457, %v1449
        %v1754 = vpack.c.b16 %v1458, %v1450
        %v1755 = vpack.c.b16 %v1459, %v1451
        %v1756 = vpack.c.b16 %v1460, %v1452
        %v1757 = vpack.c.b16 %v1461, %v1453
        %v1758 = vpack.c.b16 %v1462, %v1454
        %v1759 = vpack.c.b16 %v1463, %v1455
        %v1760 = vpack.c.b16 %v1472, %v1464
        %v1761 = vpack.c.b16 %v1473, %v1465
        %v1762 = vpack.c.b16 %v1474, %v1466
        %v1763 = vpack.c.b16 %v1475, %v1467
        %v1764 = vpack.c.b16 %v1476, %v1468
        %v1765 = vpack.c.b16 %v1477, %v1469
        %v1766 = vpack.c.b16 %v1478, %v1470
        %v1767 = vpack.c.b16 %v1479, %v1471
        %v1768 = vpack.c.b16 %v1488, %v1480
        %v1769 = vpack.c.b16 %v1489, %v1481
        %v1770 = vpack.c.b16 %v1490, %v1482
        %v1771 = vpack.c.b16 %v1491, %v1483
        %v1772 = vpack.c.b16 %v1492, %v1484
        %v1773 = vpack.c.b16 %v1493, %v1485
        %v1774 = vpack.c.b16 %v1494, %v1486
        %v1775 = vpack.c.b16 %v1495, %v1487
        %v1776 = vpack.c.b16 %v1504, %v1496
        %v1777 = vpack.c.b16 %v1505, %v1497
        %v1778 = vpack.c.b16 %v1506, %v1498
        %v1779 = vpack.c.b16 %v1507, %v1499
        %v1780 = vpack.c.b16 %v1508, %v1500
        %v1781 = vpack.c.b16 %v1509, %v1501
        %v1782 = vpack.c.b16 %v1510, %v1502
        %v1783 = vpack.c.b16 %v1511, %v1503
        %v1784 = vpack.c.b16 %v1520, %v1512
        %v1785 = vpack.c.b16 %v1521, %v1513
        %v1786 = vpack.c.b16 %v1522, %v1514
        %v1787 = vpack.c.b16 %v1523, %v1515
        %v1788 = vpack.c.b16 %v1524, %v1516
        %v1789 = vpack.c.b16 %v1525, %v1517
        %v1790 = vpack.c.b16 %v1526, %v1518
        %v1791 = vpack.c.b16 %v1527, %v1519
        %v1792 = vpack.c.b16 %v1536, %v1528
        %v1793 = vpack.c.b16 %v1537, %v1529
        %v1794 = vpack.c.b16 %v1538, %v1530
        %v1795 = vpack.c.b16 %v1539, %v1531
        %v1796 = vpack.c.b16 %v1540, %v1532
        %v1797 = vpack.c.b16 %v1541, %v1533
        %v1798 = vpack.c.b16 %v1542, %v1534
        %v1799 = vpack.c.b16 %v1543, %v1535
        %2056 = vmatprep.subr.bf16.mxu0 %v1545
        %2057 = vmatpush1.bf16.msra.mxu0 %v1544
        %2058 = vmatprep.subr.bf16.mxu0 %v1553
        %2059 = vmatpush1.bf16.msra.mxu0 %v1552
        %2060 = vmatprep.subr.bf16.mxu0 %v1561
        %2061 = vmatpush1.bf16.msra.mxu0 %v1560
        %2062 = vmatprep.subr.bf16.mxu0 %v1569
        %2063 = vmatpush1.bf16.msra.mxu0 %v1568
        %2064 = vmatprep.subr.bf16.mxu0 %v1577
        %2065 = vmatpush1.bf16.msra.mxu0 %v1576
        %2066 = vmatprep.subr.bf16.mxu0 %v1585
        %2067 = vmatpush1.bf16.msra.mxu0 %v1584
        %2068 = vmatprep.subr.bf16.mxu0 %v1593
        %2069 = vmatpush1.bf16.msra.mxu0 %v1592
        %2070 = vmatprep.subr.bf16.mxu0 %v1601
        %2071 = vmatpush1.bf16.msra.mxu0 %v1600
        %2072 = vmatprep.subr.bf16.mxu0 %v1609
        %2073 = vmatpush1.bf16.msra.mxu0 %v1608
        %2074 = vmatprep.subr.bf16.mxu0 %v1617
        %2075 = vmatpush1.bf16.msra.mxu0 %v1616
        %2076 = vmatprep.subr.bf16.mxu0 %v1625
        %2077 = vmatpush1.bf16.msra.mxu0 %v1624
        %2078 = vmatprep.subr.bf16.mxu0 %v1633
        %2079 = vmatpush1.bf16.msra.mxu0 %v1632
        %2080 = vmatprep.subr.bf16.mxu0 %v1641
        %2081 = vmatpush1.bf16.msra.mxu0 %v1640
        %2082 = vmatprep.subr.bf16.mxu0 %v1649
        %2083 = vmatpush1.bf16.msra.mxu0 %v1648
        %2084 = vmatprep.subr.bf16.mxu0 %v1657
        %2085 = vmatpush1.bf16.msra.mxu0 %v1656
        %2086 = vmatprep.subr.bf16.mxu0 %v1665
        %2087 = vmatpush1.bf16.msra.mxu0 %v1664
        %2088 = vmatprep.mubr.bf16.mxu0 %v517
        %2089 = vmatmul.mubr.bf16.gmra.mrb[0].mxu0 %v516
        %v2090 = vpop.f32.mrb[0].mxu0
        %v2091 = vadd.f32 0.0, %v2090
        %v2092 = vpop.f32.mrb[0].mxu0
        %v2093 = vadd.f32 0.0, %v2092
        %v2094 = vpop.f32.mrb[0].mxu0
        %v2095 = vpop.f32.mrb[0].mxu0
        %2096 = vdwg.mxu0
        %2097 = vmatprep.subr.bf16.mxu0 %v1673
        %2098 = vmatpush1.bf16.msra.mxu0 %v1672
        %2099 = vmatprep.subr.bf16.mxu0 %v1681
        %2100 = vmatpush1.bf16.msra.mxu0 %v1680
        %2101 = vmatprep.subr.bf16.mxu0 %v1689
        %2102 = vmatpush1.bf16.msra.mxu0 %v1688
        %2103 = vmatprep.subr.bf16.mxu0 %v1697
        %2104 = vmatpush1.bf16.msra.mxu0 %v1696
        %2105 = vmatprep.subr.bf16.mxu0 %v1705
        %2106 = vmatpush1.bf16.msra.mxu0 %v1704
        %2107 = vmatprep.subr.bf16.mxu0 %v1713
        %2108 = vmatpush1.bf16.msra.mxu0 %v1712
        %2109 = vmatprep.subr.bf16.mxu0 %v1721
        %2110 = vmatpush1.bf16.msra.mxu0 %v1720
        %2111 = vmatprep.subr.bf16.mxu0 %v1729
        %2112 = vmatpush1.bf16.msra.mxu0 %v1728
        %2113 = vmatprep.subr.bf16.mxu0 %v1737
        %2114 = vmatpush1.bf16.msra.mxu0 %v1736
        %2115 = vmatprep.subr.bf16.mxu0 %v1745
        %2116 = vmatpush1.bf16.msra.mxu0 %v1744
        %2117 = vmatprep.subr.bf16.mxu0 %v1753
        %2118 = vmatpush1.bf16.msra.mxu0 %v1752
        %2119 = vmatprep.subr.bf16.mxu0 %v1761
        %2120 = vmatpush1.bf16.msra.mxu0 %v1760
        %2121 = vmatprep.subr.bf16.mxu0 %v1769
        %2122 = vmatpush1.bf16.msra.mxu0 %v1768
        %2123 = vmatprep.subr.bf16.mxu0 %v1777
        %2124 = vmatpush1.bf16.msra.mxu0 %v1776
        %2125 = vmatprep.subr.bf16.mxu0 %v1785
        %2126 = vmatpush1.bf16.msra.mxu0 %v1784
        %2127 = vmatprep.subr.bf16.mxu0 %v1793
        %2128 = vmatpush1.bf16.msra.mxu0 %v1792
        %2129 = vmatprep.mubr.bf16.mxu0 %v519
        %2130 = vmatmul.mubr.bf16.gmra.mrb[0].mxu0 %v518
        %v2131 = vpop.f32.mrb[0].mxu0
        %v2132 = vadd.f32 %v2091, %v2131
        %v2133 = vpop.f32.mrb[0].mxu0
        %v2134 = vadd.f32 %v2093, %v2133
        %v2135 = vpop.f32.mrb[0].mxu0
        %v2136 = vpop.f32.mrb[0].mxu0
        %2137 = vdwg.mxu0
        %2138 = vmatprep.subr.bf16.mxu0 %v1547
        %2139 = vmatpush1.bf16.msra.mxu0 %v1546
        %2140 = vmatprep.subr.bf16.mxu0 %v1555
        %2141 = vmatpush1.bf16.msra.mxu0 %v1554
        %2142 = vmatprep.subr.bf16.mxu0 %v1563
        %2143 = vmatpush1.bf16.msra.mxu0 %v1562
        %2144 = vmatprep.subr.bf16.mxu0 %v1571
        %2145 = vmatpush1.bf16.msra.mxu0 %v1570
        %2146 = vmatprep.subr.bf16.mxu0 %v1579
        %2147 = vmatpush1.bf16.msra.mxu0 %v1578
        %2148 = vmatprep.subr.bf16.mxu0 %v1587
        %2149 = vmatpush1.bf16.msra.mxu0 %v1586
        %2150 = vmatprep.subr.bf16.mxu0 %v1595
        %2151 = vmatpush1.bf16.msra.mxu0 %v1594
        %2152 = vmatprep.subr.bf16.mxu0 %v1603
        %2153 = vmatpush1.bf16.msra.mxu0 %v1602
        %2154 = vmatprep.subr.bf16.mxu0 %v1611
        %2155 = vmatpush1.bf16.msra.mxu0 %v1610
        %2156 = vmatprep.subr.bf16.mxu0 %v1619
        %2157 = vmatpush1.bf16.msra.mxu0 %v1618
        %2158 = vmatprep.subr.bf16.mxu0 %v1627
        %2159 = vmatpush1.bf16.msra.mxu0 %v1626
        %2160 = vmatprep.subr.bf16.mxu0 %v1635
        %2161 = vmatpush1.bf16.msra.mxu0 %v1634
        %2162 = vmatprep.subr.bf16.mxu0 %v1643
        %2163 = vmatpush1.bf16.msra.mxu0 %v1642
        %2164 = vmatprep.subr.bf16.mxu0 %v1651
        %2165 = vmatpush1.bf16.msra.mxu0 %v1650
        %2166 = vmatprep.subr.bf16.mxu0 %v1659
        %2167 = vmatpush1.bf16.msra.mxu0 %v1658
        %2168 = vmatprep.subr.bf16.mxu0 %v1667
        %2169 = vmatpush1.bf16.msra.mxu0 %v1666
        %2170 = vmatprep.mubr.bf16.mxu0 %v517
        %2171 = vmatmul.mubr.bf16.gmra.mrb[0].mxu0 %v516
        %v2172 = vpop.f32.mrb[0].mxu0
        %v2173 = vadd.f32 0.0, %v2172
        %v2174 = vpop.f32.mrb[0].mxu0
        %v2175 = vadd.f32 0.0, %v2174
        %v2176 = vpop.f32.mrb[0].mxu0
        %v2177 = vpop.f32.mrb[0].mxu0
        %2178 = vdwg.mxu0
        %2179 = vmatprep.subr.bf16.mxu0 %v1675
        %2180 = vmatpush1.bf16.msra.mxu0 %v1674
        %2181 = vmatprep.subr.bf16.mxu0 %v1683
        %2182 = vmatpush1.bf16.msra.mxu0 %v1682
        %2183 = vmatprep.subr.bf16.mxu0 %v1691
        %2184 = vmatpush1.bf16.msra.mxu0 %v1690
        %2185 = vmatprep.subr.bf16.mxu0 %v1699
        %2186 = vmatpush1.bf16.msra.mxu0 %v1698
        %2187 = vmatprep.subr.bf16.mxu0 %v1707
        %2188 = vmatpush1.bf16.msra.mxu0 %v1706
        %2189 = vmatprep.subr.bf16.mxu0 %v1715
        %2190 = vmatpush1.bf16.msra.mxu0 %v1714
        %2191 = vmatprep.subr.bf16.mxu0 %v1723
        %2192 = vmatpush1.bf16.msra.mxu0 %v1722
        %2193 = vmatprep.subr.bf16.mxu0 %v1731
        %2194 = vmatpush1.bf16.msra.mxu0 %v1730
        %2195 = vmatprep.subr.bf16.mxu0 %v1739
        %2196 = vmatpush1.bf16.msra.mxu0 %v1738
        %2197 = vmatprep.subr.bf16.mxu0 %v1747
        %2198 = vmatpush1.bf16.msra.mxu0 %v1746
        %2199 = vmatprep.subr.bf16.mxu0 %v1755
        %2200 = vmatpush1.bf16.msra.mxu0 %v1754
        %2201 = vmatprep.subr.bf16.mxu0 %v1763
        %2202 = vmatpush1.bf16.msra.mxu0 %v1762
        %2203 = vmatprep.subr.bf16.mxu0 %v1771
        %2204 = vmatpush1.bf16.msra.mxu0 %v1770
        %2205 = vmatprep.subr.bf16.mxu0 %v1779
        %2206 = vmatpush1.bf16.msra.mxu0 %v1778
        %2207 = vmatprep.subr.bf16.mxu0 %v1787
        %2208 = vmatpush1.bf16.msra.mxu0 %v1786
        %2209 = vmatprep.subr.bf16.mxu0 %v1795
        %2210 = vmatpush1.bf16.msra.mxu0 %v1794
        %2211 = vmatprep.mubr.bf16.mxu0 %v519
        %2212 = vmatmul.mubr.bf16.gmra.mrb[0].mxu0 %v518
        %v2213 = vpop.f32.mrb[0].mxu0
        %v2214 = vadd.f32 %v2173, %v2213
        %v2215 = vpop.f32.mrb[0].mxu0
        %v2216 = vadd.f32 %v2175, %v2215
        %v2217 = vpop.f32.mrb[0].mxu0
        %v2218 = vpop.f32.mrb[0].mxu0
        %2219 = vdwg.mxu0
        %2220 = vmatprep.subr.bf16.mxu0 %v1549
        %2221 = vmatpush1.bf16.msra.mxu0 %v1548
        %2222 = vmatprep.subr.bf16.mxu0 %v1557
        %2223 = vmatpush1.bf16.msra.mxu0 %v1556
        %2224 = vmatprep.subr.bf16.mxu0 %v1565
        %2225 = vmatpush1.bf16.msra.mxu0 %v1564
        %2226 = vmatprep.subr.bf16.mxu0 %v1573
        %2227 = vmatpush1.bf16.msra.mxu0 %v1572
        %2228 = vmatprep.subr.bf16.mxu0 %v1581
        %2229 = vmatpush1.bf16.msra.mxu0 %v1580
        %2230 = vmatprep.subr.bf16.mxu0 %v1589
        %2231 = vmatpush1.bf16.msra.mxu0 %v1588
        %2232 = vmatprep.subr.bf16.mxu0 %v1597
        %2233 = vmatpush1.bf16.msra.mxu0 %v1596
        %2234 = vmatprep.subr.bf16.mxu0 %v1605
        %2235 = vmatpush1.bf16.msra.mxu0 %v1604
        %2236 = vmatprep.subr.bf16.mxu0 %v1613
        %2237 = vmatpush1.bf16.msra.mxu0 %v1612
        %2238 = vmatprep.subr.bf16.mxu0 %v1621
        %2239 = vmatpush1.bf16.msra.mxu0 %v1620
        %2240 = vmatprep.subr.bf16.mxu0 %v1629
        %2241 = vmatpush1.bf16.msra.mxu0 %v1628
        %2242 = vmatprep.subr.bf16.mxu0 %v1637
        %2243 = vmatpush1.bf16.msra.mxu0 %v1636
        %2244 = vmatprep.subr.bf16.mxu0 %v1645
        %2245 = vmatpush1.bf16.msra.mxu0 %v1644
        %2246 = vmatprep.subr.bf16.mxu0 %v1653
        %2247 = vmatpush1.bf16.msra.mxu0 %v1652
        %2248 = vmatprep.subr.bf16.mxu0 %v1661
        %2249 = vmatpush1.bf16.msra.mxu0 %v1660
        %2250 = vmatprep.subr.bf16.mxu0 %v1669
        %2251 = vmatpush1.bf16.msra.mxu0 %v1668
        %2252 = vmatprep.mubr.bf16.mxu0 %v517
        %2253 = vmatmul.mubr.bf16.gmra.mrb[0].mxu0 %v516
        %v2254 = vpop.f32.mrb[0].mxu0
        %v2255 = vadd.f32 0.0, %v2254
        %v2256 = vpop.f32.mrb[0].mxu0
        %v2257 = vadd.f32 0.0, %v2256
        %v2258 = vpop.f32.mrb[0].mxu0
        %v2259 = vpop.f32.mrb[0].mxu0
        %2260 = vdwg.mxu0
        %2261 = vmatprep.subr.bf16.mxu0 %v1677
        %2262 = vmatpush1.bf16.msra.mxu0 %v1676
        %2263 = vmatprep.subr.bf16.mxu0 %v1685
        %2264 = vmatpush1.bf16.msra.mxu0 %v1684
        %2265 = vmatprep.subr.bf16.mxu0 %v1693
        %2266 = vmatpush1.bf16.msra.mxu0 %v1692
        %2267 = vmatprep.subr.bf16.mxu0 %v1701
        %2268 = vmatpush1.bf16.msra.mxu0 %v1700
        %2269 = vmatprep.subr.bf16.mxu0 %v1709
        %2270 = vmatpush1.bf16.msra.mxu0 %v1708
        %2271 = vmatprep.subr.bf16.mxu0 %v1717
        %2272 = vmatpush1.bf16.msra.mxu0 %v1716
        %2273 = vmatprep.subr.bf16.mxu0 %v1725
        %2274 = vmatpush1.bf16.msra.mxu0 %v1724
        %2275 = vmatprep.subr.bf16.mxu0 %v1733
        %2276 = vmatpush1.bf16.msra.mxu0 %v1732
        %2277 = vmatprep.subr.bf16.mxu0 %v1741
        %2278 = vmatpush1.bf16.msra.mxu0 %v1740
        %2279 = vmatprep.subr.bf16.mxu0 %v1749
        %2280 = vmatpush1.bf16.msra.mxu0 %v1748
        %2281 = vmatprep.subr.bf16.mxu0 %v1757
        %2282 = vmatpush1.bf16.msra.mxu0 %v1756
        %2283 = vmatprep.subr.bf16.mxu0 %v1765
        %2284 = vmatpush1.bf16.msra.mxu0 %v1764
        %2285 = vmatprep.subr.bf16.mxu0 %v1773
        %2286 = vmatpush1.bf16.msra.mxu0 %v1772
        %2287 = vmatprep.subr.bf16.mxu0 %v1781
        %2288 = vmatpush1.bf16.msra.mxu0 %v1780
        %2289 = vmatprep.subr.bf16.mxu0 %v1789
        %2290 = vmatpush1.bf16.msra.mxu0 %v1788
        %2291 = vmatprep.subr.bf16.mxu0 %v1797
        %2292 = vmatpush1.bf16.msra.mxu0 %v1796
        %2293 = vmatprep.mubr.bf16.mxu0 %v519
        %2294 = vmatmul.mubr.bf16.gmra.mrb[0].mxu0 %v518
        %v2295 = vpop.f32.mrb[0].mxu0
        %v2296 = vadd.f32 %v2255, %v2295
        %v2297 = vpop.f32.mrb[0].mxu0
        %v2298 = vadd.f32 %v2257, %v2297
        %v2299 = vpop.f32.mrb[0].mxu0
        %v2300 = vpop.f32.mrb[0].mxu0
        %2301 = vdwg.mxu0
        %2302 = vmatprep.subr.bf16.mxu0 %v1551
        %2303 = vmatpush1.bf16.msra.mxu0 %v1550
        %2304 = vmatprep.subr.bf16.mxu0 %v1559
        %2305 = vmatpush1.bf16.msra.mxu0 %v1558
        %2306 = vmatprep.subr.bf16.mxu0 %v1567
        %2307 = vmatpush1.bf16.msra.mxu0 %v1566
        %2308 = vmatprep.subr.bf16.mxu0 %v1575
        %2309 = vmatpush1.bf16.msra.mxu0 %v1574
        %2310 = vmatprep.subr.bf16.mxu0 %v1583
        %2311 = vmatpush1.bf16.msra.mxu0 %v1582
        %2312 = vmatprep.subr.bf16.mxu0 %v1591
        %2313 = vmatpush1.bf16.msra.mxu0 %v1590
        %2314 = vmatprep.subr.bf16.mxu0 %v1599
        %2315 = vmatpush1.bf16.msra.mxu0 %v1598
        %2316 = vmatprep.subr.bf16.mxu0 %v1607
        %2317 = vmatpush1.bf16.msra.mxu0 %v1606
        %2318 = vmatprep.subr.bf16.mxu0 %v1615
        %2319 = vmatpush1.bf16.msra.mxu0 %v1614
        %2320 = vmatprep.subr.bf16.mxu0 %v1623
        %2321 = vmatpush1.bf16.msra.mxu0 %v1622
        %2322 = vmatprep.subr.bf16.mxu0 %v1631
        %2323 = vmatpush1.bf16.msra.mxu0 %v1630
        %2324 = vmatprep.subr.bf16.mxu0 %v1639
        %2325 = vmatpush1.bf16.msra.mxu0 %v1638
        %2326 = vmatprep.subr.bf16.mxu0 %v1647
        %2327 = vmatpush1.bf16.msra.mxu0 %v1646
        %2328 = vmatprep.subr.bf16.mxu0 %v1655
        %2329 = vmatpush1.bf16.msra.mxu0 %v1654
        %2330 = vmatprep.subr.bf16.mxu0 %v1663
        %2331 = vmatpush1.bf16.msra.mxu0 %v1662
        %2332 = vmatprep.subr.bf16.mxu0 %v1671
        %2333 = vmatpush1.bf16.msra.mxu0 %v1670
        %2334 = vmatprep.mubr.bf16.mxu0 %v517
        %2335 = vmatmul.mubr.bf16.gmra.mrb[0].mxu0 %v516
        %v2336 = vpop.f32.mrb[0].mxu0
        %v2337 = vadd.f32 0.0, %v2336
        %v2338 = vpop.f32.mrb[0].mxu0
        %v2339 = vadd.f32 0.0, %v2338
        %v2340 = vpop.f32.mrb[0].mxu0
        %v2341 = vpop.f32.mrb[0].mxu0
        %2342 = vdwg.mxu0
        %2343 = vmatprep.subr.bf16.mxu0 %v1679
        %2344 = vmatpush1.bf16.msra.mxu0 %v1678
        %2345 = vmatprep.subr.bf16.mxu0 %v1687
        %2346 = vmatpush1.bf16.msra.mxu0 %v1686
        %2347 = vmatprep.subr.bf16.mxu0 %v1695
        %2348 = vmatpush1.bf16.msra.mxu0 %v1694
        %2349 = vmatprep.subr.bf16.mxu0 %v1703
        %2350 = vmatpush1.bf16.msra.mxu0 %v1702
        %2351 = vmatprep.subr.bf16.mxu0 %v1711
        %2352 = vmatpush1.bf16.msra.mxu0 %v1710
        %2353 = vmatprep.subr.bf16.mxu0 %v1719
        %2354 = vmatpush1.bf16.msra.mxu0 %v1718
        %2355 = vmatprep.subr.bf16.mxu0 %v1727
        %2356 = vmatpush1.bf16.msra.mxu0 %v1726
        %2357 = vmatprep.subr.bf16.mxu0 %v1735
        %2358 = vmatpush1.bf16.msra.mxu0 %v1734
        %2359 = vmatprep.subr.bf16.mxu0 %v1743
        %2360 = vmatpush1.bf16.msra.mxu0 %v1742
        %2361 = vmatprep.subr.bf16.mxu0 %v1751
        %2362 = vmatpush1.bf16.msra.mxu0 %v1750
        %2363 = vmatprep.subr.bf16.mxu0 %v1759
        %2364 = vmatpush1.bf16.msra.mxu0 %v1758
        %2365 = vmatprep.subr.bf16.mxu0 %v1767
        %2366 = vmatpush1.bf16.msra.mxu0 %v1766
        %2367 = vmatprep.subr.bf16.mxu0 %v1775
        %2368 = vmatpush1.bf16.msra.mxu0 %v1774
        %2369 = vmatprep.subr.bf16.mxu0 %v1783
        %2370 = vmatpush1.bf16.msra.mxu0 %v1782
        %2371 = vmatprep.subr.bf16.mxu0 %v1791
        %2372 = vmatpush1.bf16.msra.mxu0 %v1790
        %2373 = vmatprep.subr.bf16.mxu0 %v1799
        %2374 = vmatpush1.bf16.msra.mxu0 %v1798
        %2375 = vmatprep.mubr.bf16.mxu0 %v519
        %2376 = vmatmul.mubr.bf16.gmra.mrb[0].mxu0 %v518
        %v2377 = vpop.f32.mrb[0].mxu0
        %v2378 = vadd.f32 %v2337, %v2377
        %v2379 = vpop.f32.mrb[0].mxu0
        %v2380 = vadd.f32 %v2339, %v2379
        %v2381 = vpop.f32.mrb[0].mxu0
        %v2382 = vpop.f32.mrb[0].mxu0
        %2383 = vdwg.mxu0
        %v2384 = vrot.slane %v2132, 4
        %v2385 = vadd.f32 %v2132, %v2384
        %v2386 = vrot.slane %v2385, 2
        %v2387 = vadd.f32 %v2385, %v2386
        %v2388 = vrot.slane %v2387, 1
        %v2389 = vadd.f32 %v2387, %v2388
        %v2390 = vrot.slane %v2134, 4
        %v2391 = vadd.f32 %v2134, %v2390
        %v2392 = vrot.slane %v2391, 2
        %v2393 = vadd.f32 %v2391, %v2392
        %v2394 = vrot.slane %v2393, 1
        %v2395 = vadd.f32 %v2393, %v2394
        %v2396 = vrot.slane %v2214, 4
        %v2397 = vadd.f32 %v2214, %v2396
        %v2398 = vrot.slane %v2397, 2
        %v2399 = vadd.f32 %v2397, %v2398
        %v2400 = vrot.slane %v2399, 1
        %v2401 = vadd.f32 %v2399, %v2400
        %v2402 = vrot.slane %v2216, 4
        %v2403 = vadd.f32 %v2216, %v2402
        %v2404 = vrot.slane %v2403, 2
        %v2405 = vadd.f32 %v2403, %v2404
        %v2406 = vrot.slane %v2405, 1
        %v2407 = vadd.f32 %v2405, %v2406
        %v2408 = vrot.slane %v2296, 4
        %v2409 = vadd.f32 %v2296, %v2408
        %v2410 = vrot.slane %v2409, 2
        %v2411 = vadd.f32 %v2409, %v2410
        %v2412 = vrot.slane %v2411, 1
        %v2413 = vadd.f32 %v2411, %v2412
        %v2414 = vrot.slane %v2298, 4
        %v2415 = vadd.f32 %v2298, %v2414
        %v2416 = vrot.slane %v2415, 2
        %v2417 = vadd.f32 %v2415, %v2416
        %v2418 = vrot.slane %v2417, 1
        %v2419 = vadd.f32 %v2417, %v2418
        %v2420 = vrot.slane %v2378, 4
        %v2421 = vadd.f32 %v2378, %v2420
        %v2422 = vrot.slane %v2421, 2
        %v2423 = vadd.f32 %v2421, %v2422
        %v2424 = vrot.slane %v2423, 1
        %v2425 = vadd.f32 %v2423, %v2424
        %v2426 = vrot.slane %v2380, 4
        %v2427 = vadd.f32 %v2380, %v2426
        %v2428 = vrot.slane %v2427, 2
        %v2429 = vadd.f32 %v2427, %v2428
        %v2430 = vrot.slane %v2429, 1
        %v2431 = vadd.f32 %v2429, %v2430
        %v2432 = vrcp.pop 8.0
        %v2433 = vmul.f32 %v2389, %v2432
        %v2434 = vmul.f32 %v2395, %v2432
        %v2435 = vmul.f32 %v2401, %v2432
        %v2436 = vmul.f32 %v2407, %v2432
        %v2437 = vmul.f32 %v2413, %v2432
        %v2438 = vmul.f32 %v2419, %v2432
        %v2439 = vmul.f32 %v2425, %v2432
        %v2440 = vmul.f32 %v2431, %v2432
        %v2441 = vsub.f32 %v2132, %v2433
        %v2442 = vsub.f32 %v2134, %v2434
        %v2443 = vsub.f32 %v2214, %v2435
        %v2444 = vsub.f32 %v2216, %v2436
        %v2445 = vsub.f32 %v2296, %v2437
        %v2446 = vsub.f32 %v2298, %v2438
        %v2447 = vsub.f32 %v2378, %v2439
        %v2448 = vsub.f32 %v2380, %v2440
        %v2449 = vmul.f32 %v2441, %v2441
        %v2450 = vmul.f32 %v2442, %v2442
        %v2451 = vmul.f32 %v2443, %v2443
        %v2452 = vmul.f32 %v2444, %v2444
        %v2453 = vmul.f32 %v2445, %v2445
        %v2454 = vmul.f32 %v2446, %v2446
        %v2455 = vmul.f32 %v2447, %v2447
        %v2456 = vmul.f32 %v2448, %v2448
        %v2457 = vrot.slane %v2449, 4
        %v2458 = vadd.f32 %v2449, %v2457
        %v2459 = vrot.slane %v2458, 2
        %v2460 = vadd.f32 %v2458, %v2459
        %v2461 = vrot.slane %v2460, 1
        %v2462 = vadd.f32 %v2460, %v2461
        %v2463 = vrot.slane %v2450, 4
        %v2464 = vadd.f32 %v2450, %v2463
        %v2465 = vrot.slane %v2464, 2
        %v2466 = vadd.f32 %v2464, %v2465
        %v2467 = vrot.slane %v2466, 1
        %v2468 = vadd.f32 %v2466, %v2467
        %v2469 = vrot.slane %v2451, 4
        %v2470 = vadd.f32 %v2451, %v2469
        %v2471 = vrot.slane %v2470, 2
        %v2472 = vadd.f32 %v2470, %v2471
        %v2473 = vrot.slane %v2472, 1
        %v2474 = vadd.f32 %v2472, %v2473
        %v2475 = vrot.slane %v2452, 4
        %v2476 = vadd.f32 %v2452, %v2475
        %v2477 = vrot.slane %v2476, 2
        %v2478 = vadd.f32 %v2476, %v2477
        %v2479 = vrot.slane %v2478, 1
        %v2480 = vadd.f32 %v2478, %v2479
        %v2481 = vrot.slane %v2453, 4
        %v2482 = vadd.f32 %v2453, %v2481
        %v2483 = vrot.slane %v2482, 2
        %v2484 = vadd.f32 %v2482, %v2483
        %v2485 = vrot.slane %v2484, 1
        %v2486 = vadd.f32 %v2484, %v2485
        %v2487 = vrot.slane %v2454, 4
        %v2488 = vadd.f32 %v2454, %v2487
        %v2489 = vrot.slane %v2488, 2
        %v2490 = vadd.f32 %v2488, %v2489
        %v2491 = vrot.slane %v2490, 1
        %v2492 = vadd.f32 %v2490, %v2491
        %v2493 = vrot.slane %v2455, 4
        %v2494 = vadd.f32 %v2455, %v2493
        %v2495 = vrot.slane %v2494, 2
        %v2496 = vadd.f32 %v2494, %v2495
        %v2497 = vrot.slane %v2496, 1
        %v2498 = vadd.f32 %v2496, %v2497
        %v2499 = vrot.slane %v2456, 4
        %v2500 = vadd.f32 %v2456, %v2499
        %v2501 = vrot.slane %v2500, 2
        %v2502 = vadd.f32 %v2500, %v2501
        %v2503 = vrot.slane %v2502, 1
        %v2504 = vadd.f32 %v2502, %v2503
        %v2505 = vmul.f32 %v2462, %v2432
        %v2506 = vmul.f32 %v2468, %v2432
        %v2507 = vmul.f32 %v2474, %v2432
        %v2508 = vmul.f32 %v2480, %v2432
        %v2509 = vmul.f32 %v2486, %v2432
        %v2510 = vmul.f32 %v2492, %v2432
        %v2511 = vmul.f32 %v2498, %v2432
        %v2512 = vmul.f32 %v2504, %v2432
        %v2513 = vadd.f32 %v2505, 1e-05
        %v2514 = vadd.f32 %v2506, 1e-05
        %v2515 = vadd.f32 %v2507, 1e-05
        %v2516 = vadd.f32 %v2508, 1e-05
        %v2517 = vadd.f32 %v2509, 1e-05
        %v2518 = vadd.f32 %v2510, 1e-05
        %v2519 = vadd.f32 %v2511, 1e-05
        %v2520 = vadd.f32 %v2512, 1e-05
        %v2521 = vrsqrt.pop %v2513
        %v2522 = vrsqrt.pop %v2514
        %v2523 = vrsqrt.pop %v2515
        %v2524 = vrsqrt.pop %v2516
        %v2525 = vrsqrt.pop %v2517
        %v2526 = vrsqrt.pop %v2518
        %v2527 = vrsqrt.pop %v2519
        %v2528 = vrsqrt.pop %v2520
        %v2529 = vmul.f32 %v2441, %v2521
        %v2530 = vmul.f32 %v2442, %v2522
        %v2531 = vmul.f32 %v2443, %v2523
        %v2532 = vmul.f32 %v2444, %v2524
        %v2533 = vmul.f32 %v2445, %v2525
        %v2534 = vmul.f32 %v2446, %v2526
        %v2535 = vmul.f32 %v2447, %v2527
        %v2536 = vmul.f32 %v2448, %v2528
        %v2537 = vld [vmem:[%s426] sm:$0xff]
        %v2539 = vlaneseq
        %v2540 = vshrl.u32 %v2539, 7
        %v2541 = vsub.s32 0, %v2540
        %v2542 = vrot.slane %v2537, %v2541
        %v2543 = vlaneseq
        %v2544 = vshrl.u32 %v2543, 7
        %v2545 = vsub.s32 1, %v2544
        %v2546 = vrot.slane %v2537, %v2545
        %v2547 = vlaneseq
        %v2548 = vshrl.u32 %v2547, 7
        %v2549 = vsub.s32 2, %v2548
        %v2550 = vrot.slane %v2537, %v2549
        %v2551 = vlaneseq
        %v2552 = vshrl.u32 %v2551, 7
        %v2553 = vsub.s32 3, %v2552
        %v2554 = vrot.slane %v2537, %v2553
        %v2555 = vlaneseq
        %v2556 = vshrl.u32 %v2555, 7
        %v2557 = vsub.s32 4, %v2556
        %v2558 = vrot.slane %v2537, %v2557
        %v2559 = vlaneseq
        %v2560 = vshrl.u32 %v2559, 7
        %v2561 = vsub.s32 5, %v2560
        %v2562 = vrot.slane %v2537, %v2561
        %v2563 = vlaneseq
        %v2564 = vshrl.u32 %v2563, 7
        %v2565 = vsub.s32 6, %v2564
        %v2566 = vrot.slane %v2537, %v2565
        %v2567 = vlaneseq
        %v2568 = vshrl.u32 %v2567, 7
        %v2569 = vsub.s32 7, %v2568
        %v2570 = vrot.slane %v2537, %v2569
        %v2579 = vmul.f32 %v2529, %v2542
        %v2580 = vmul.f32 %v2530, %v2546
        %v2581 = vmul.f32 %v2531, %v2550
        %v2582 = vmul.f32 %v2532, %v2554
        %v2583 = vmul.f32 %v2533, %v2558
        %v2584 = vmul.f32 %v2534, %v2562
        %v2585 = vmul.f32 %v2535, %v2566
        %v2586 = vmul.f32 %v2536, %v2570
        %v2587 = vld [vmem:[%s435] sm:$0xff]
        %v2589 = vlaneseq
        %v2590 = vshrl.u32 %v2589, 7
        %v2591 = vsub.s32 0, %v2590
        %v2592 = vrot.slane %v2587, %v2591
        %v2593 = vlaneseq
        %v2594 = vshrl.u32 %v2593, 7
        %v2595 = vsub.s32 1, %v2594
        %v2596 = vrot.slane %v2587, %v2595
        %v2597 = vlaneseq
        %v2598 = vshrl.u32 %v2597, 7
        %v2599 = vsub.s32 2, %v2598
        %v2600 = vrot.slane %v2587, %v2599
        %v2601 = vlaneseq
        %v2602 = vshrl.u32 %v2601, 7
        %v2603 = vsub.s32 3, %v2602
        %v2604 = vrot.slane %v2587, %v2603
        %v2605 = vlaneseq
        %v2606 = vshrl.u32 %v2605, 7
        %v2607 = vsub.s32 4, %v2606
        %v2608 = vrot.slane %v2587, %v2607
        %v2609 = vlaneseq
        %v2610 = vshrl.u32 %v2609, 7
        %v2611 = vsub.s32 5, %v2610
        %v2612 = vrot.slane %v2587, %v2611
        %v2613 = vlaneseq
        %v2614 = vshrl.u32 %v2613, 7
        %v2615 = vsub.s32 6, %v2614
        %v2616 = vrot.slane %v2587, %v2615
        %v2617 = vlaneseq
        %v2618 = vshrl.u32 %v2617, 7
        %v2619 = vsub.s32 7, %v2618
        %v2620 = vrot.slane %v2587, %v2619
        %v2629 = vadd.f32 %v2579, %v2592
        %v2630 = vadd.f32 %v2580, %v2596
        %v2631 = vadd.f32 %v2581, %v2600
        %v2632 = vadd.f32 %v2582, %v2604
        %v2633 = vadd.f32 %v2583, %v2608
        %v2634 = vadd.f32 %v2584, %v2612
        %v2635 = vadd.f32 %v2585, %v2616
        %v2636 = vadd.f32 %v2586, %v2620
        %v2637 = vmax.f32 %v2629, 0.0
        %v2638 = vmax.f32 %v2630, 0.0
        %v2639 = vmax.f32 %v2631, 0.0
        %v2640 = vmax.f32 %v2632, 0.0
        %v2641 = vmax.f32 %v2633, 0.0
        %v2642 = vmax.f32 %v2634, 0.0
        %v2643 = vmax.f32 %v2635, 0.0
        %v2644 = vmax.f32 %v2636, 0.0
        %v2645 = vld [vmem:[#allocation2] sm:$0xff]
        %v2646 = vld [vmem:[#allocation2 + $0x8] sm:$0xff]
        %v2647 = vld [vmem:[#allocation2 + $0x10] sm:$0xff]
        %v2648 = vld [vmem:[#allocation2 + $0x18] sm:$0xff]
        %v2649 = vpack.c.bf16 %v2637, %v2637
        %v2650 = vpack.c.bf16 %v2638, %v2638
        %v2651 = vpack.c.bf16 %v2639, %v2639
        %v2652 = vpack.c.bf16 %v2640, %v2640
        %v2653 = vpack.c.bf16 %v2641, %v2641
        %v2654 = vpack.c.bf16 %v2642, %v2642
        %v2655 = vpack.c.bf16 %v2643, %v2643
        %v2656 = vpack.c.bf16 %v2644, %v2644
        %v2657 = vld [vmem:[%s444] sm:$0xff]
        %v2658 = vld [vmem:[%s444 + $0x8] sm:$0xff]
        %v2659 = vld [vmem:[%s444 + $0x10] sm:$0xff]
        %v2660 = vld [vmem:[%s444 + $0x18] sm:$0xff]
        %v2661 = vld [vmem:[%s444 + $0x20] sm:$0xff]
        %v2662 = vld [vmem:[%s444 + $0x28] sm:$0xff]
        %v2663 = vld [vmem:[%s444 + $0x30] sm:$0xff]
        %v2664 = vld [vmem:[%s444 + $0x38] sm:$0xff]
        %v2665 = vld [vmem:[%s444 + $0x40] sm:$0xff]
        %v2666 = vld [vmem:[%s444 + $0x48] sm:$0xff]
        %v2667 = vld [vmem:[%s444 + $0x50] sm:$0xff]
        %v2668 = vld [vmem:[%s444 + $0x58] sm:$0xff]
        %v2669 = vld [vmem:[%s444 + $0x60] sm:$0xff]
        %v2670 = vld [vmem:[%s444 + $0x68] sm:$0xff]
        %v2671 = vld [vmem:[%s444 + $0x70] sm:$0xff]
        %v2672 = vld [vmem:[%s444 + $0x78] sm:$0xff]
        %v2673 = vld [vmem:[%s444 + $0x80] sm:$0xff]
        %v2674 = vld [vmem:[%s444 + $0x88] sm:$0xff]
        %v2675 = vld [vmem:[%s444 + $0x90] sm:$0xff]
        %v2676 = vld [vmem:[%s444 + $0x98] sm:$0xff]
        %v2677 = vld [vmem:[%s444 + $0xa0] sm:$0xff]
        %v2678 = vld [vmem:[%s444 + $0xa8] sm:$0xff]
        %v2679 = vld [vmem:[%s444 + $0xb0] sm:$0xff]
        %v2680 = vld [vmem:[%s444 + $0xb8] sm:$0xff]
        %v2681 = vld [vmem:[%s444 + $0xc0] sm:$0xff]
        %v2682 = vld [vmem:[%s444 + $0xc8] sm:$0xff]
        %v2683 = vld [vmem:[%s444 + $0xd0] sm:$0xff]
        %v2684 = vld [vmem:[%s444 + $0xd8] sm:$0xff]
        %v2685 = vld [vmem:[%s444 + $0xe0] sm:$0xff]
        %v2686 = vld [vmem:[%s444 + $0xe8] sm:$0xff]
        %v2687 = vld [vmem:[%s444 + $0xf0] sm:$0xff]
        %v2688 = vld [vmem:[%s444 + $0xf8] sm:$0xff]
        %v2689 = vld [vmem:[%s444 + $0x100] sm:$0xff]
        %v2690 = vld [vmem:[%s444 + $0x108] sm:$0xff]
        %v2691 = vld [vmem:[%s444 + $0x110] sm:$0xff]
        %v2692 = vld [vmem:[%s444 + $0x118] sm:$0xff]
        %v2693 = vld [vmem:[%s444 + $0x120] sm:$0xff]
        %v2694 = vld [vmem:[%s444 + $0x128] sm:$0xff]
        %v2695 = vld [vmem:[%s444 + $0x130] sm:$0xff]
        %v2696 = vld [vmem:[%s444 + $0x138] sm:$0xff]
        %v2697 = vld [vmem:[%s444 + $0x140] sm:$0xff]
        %v2698 = vld [vmem:[%s444 + $0x148] sm:$0xff]
        %v2699 = vld [vmem:[%s444 + $0x150] sm:$0xff]
        %v2700 = vld [vmem:[%s444 + $0x158] sm:$0xff]
        %v2701 = vld [vmem:[%s444 + $0x160] sm:$0xff]
        %v2702 = vld [vmem:[%s444 + $0x168] sm:$0xff]
        %v2703 = vld [vmem:[%s444 + $0x170] sm:$0xff]
        %v2704 = vld [vmem:[%s444 + $0x178] sm:$0xff]
        %v2705 = vld [vmem:[%s444 + $0x180] sm:$0xff]
        %v2706 = vld [vmem:[%s444 + $0x188] sm:$0xff]
        %v2707 = vld [vmem:[%s444 + $0x190] sm:$0xff]
        %v2708 = vld [vmem:[%s444 + $0x198] sm:$0xff]
        %v2709 = vld [vmem:[%s444 + $0x1a0] sm:$0xff]
        %v2710 = vld [vmem:[%s444 + $0x1a8] sm:$0xff]
        %v2711 = vld [vmem:[%s444 + $0x1b0] sm:$0xff]
        %v2712 = vld [vmem:[%s444 + $0x1b8] sm:$0xff]
        %v2713 = vld [vmem:[%s444 + $0x1c0] sm:$0xff]
        %v2714 = vld [vmem:[%s444 + $0x1c8] sm:$0xff]
        %v2715 = vld [vmem:[%s444 + $0x1d0] sm:$0xff]
        %v2716 = vld [vmem:[%s444 + $0x1d8] sm:$0xff]
        %v2717 = vld [vmem:[%s444 + $0x1e0] sm:$0xff]
        %v2718 = vld [vmem:[%s444 + $0x1e8] sm:$0xff]
        %v2719 = vld [vmem:[%s444 + $0x1f0] sm:$0xff]
        %v2720 = vld [vmem:[%s444 + $0x1f8] sm:$0xff]
        %v2721 = vld [vmem:[%s444 + $0x200] sm:$0xff]
        %v2722 = vld [vmem:[%s444 + $0x208] sm:$0xff]
        %v2723 = vld [vmem:[%s444 + $0x210] sm:$0xff]
        %v2724 = vld [vmem:[%s444 + $0x218] sm:$0xff]
        %v2725 = vld [vmem:[%s444 + $0x220] sm:$0xff]
        %v2726 = vld [vmem:[%s444 + $0x228] sm:$0xff]
        %v2727 = vld [vmem:[%s444 + $0x230] sm:$0xff]
        %v2728 = vld [vmem:[%s444 + $0x238] sm:$0xff]
        %v2729 = vld [vmem:[%s444 + $0x240] sm:$0xff]
        %v2730 = vld [vmem:[%s444 + $0x248] sm:$0xff]
        %v2731 = vld [vmem:[%s444 + $0x250] sm:$0xff]
        %v2732 = vld [vmem:[%s444 + $0x258] sm:$0xff]
        %v2733 = vld [vmem:[%s444 + $0x260] sm:$0xff]
        %v2734 = vld [vmem:[%s444 + $0x268] sm:$0xff]
        %v2735 = vld [vmem:[%s444 + $0x270] sm:$0xff]
        %v2736 = vld [vmem:[%s444 + $0x278] sm:$0xff]
        %v2737 = vld [vmem:[%s444 + $0x280] sm:$0xff]
        %v2738 = vld [vmem:[%s444 + $0x288] sm:$0xff]
        %v2739 = vld [vmem:[%s444 + $0x290] sm:$0xff]
        %v2740 = vld [vmem:[%s444 + $0x298] sm:$0xff]
        %v2741 = vld [vmem:[%s444 + $0x2a0] sm:$0xff]
        %v2742 = vld [vmem:[%s444 + $0x2a8] sm:$0xff]
        %v2743 = vld [vmem:[%s444 + $0x2b0] sm:$0xff]
        %v2744 = vld [vmem:[%s444 + $0x2b8] sm:$0xff]
        %v2745 = vld [vmem:[%s444 + $0x2c0] sm:$0xff]
        %v2746 = vld [vmem:[%s444 + $0x2c8] sm:$0xff]
        %v2747 = vld [vmem:[%s444 + $0x2d0] sm:$0xff]
        %v2748 = vld [vmem:[%s444 + $0x2d8] sm:$0xff]
        %v2749 = vld [vmem:[%s444 + $0x2e0] sm:$0xff]
        %v2750 = vld [vmem:[%s444 + $0x2e8] sm:$0xff]
        %v2751 = vld [vmem:[%s444 + $0x2f0] sm:$0xff]
        %v2752 = vld [vmem:[%s444 + $0x2f8] sm:$0xff]
        %v2753 = vld [vmem:[%s444 + $0x300] sm:$0xff]
        %v2754 = vld [vmem:[%s444 + $0x308] sm:$0xff]
        %v2755 = vld [vmem:[%s444 + $0x310] sm:$0xff]
        %v2756 = vld [vmem:[%s444 + $0x318] sm:$0xff]
        %v2757 = vld [vmem:[%s444 + $0x320] sm:$0xff]
        %v2758 = vld [vmem:[%s444 + $0x328] sm:$0xff]
        %v2759 = vld [vmem:[%s444 + $0x330] sm:$0xff]
        %v2760 = vld [vmem:[%s444 + $0x338] sm:$0xff]
        %v2761 = vld [vmem:[%s444 + $0x340] sm:$0xff]
        %v2762 = vld [vmem:[%s444 + $0x348] sm:$0xff]
        %v2763 = vld [vmem:[%s444 + $0x350] sm:$0xff]
        %v2764 = vld [vmem:[%s444 + $0x358] sm:$0xff]
        %v2765 = vld [vmem:[%s444 + $0x360] sm:$0xff]
        %v2766 = vld [vmem:[%s444 + $0x368] sm:$0xff]
        %v2767 = vld [vmem:[%s444 + $0x370] sm:$0xff]
        %v2768 = vld [vmem:[%s444 + $0x378] sm:$0xff]
        %v2769 = vld [vmem:[%s444 + $0x380] sm:$0xff]
        %v2770 = vld [vmem:[%s444 + $0x388] sm:$0xff]
        %v2771 = vld [vmem:[%s444 + $0x390] sm:$0xff]
        %v2772 = vld [vmem:[%s444 + $0x398] sm:$0xff]
        %v2773 = vld [vmem:[%s444 + $0x3a0] sm:$0xff]
        %v2774 = vld [vmem:[%s444 + $0x3a8] sm:$0xff]
        %v2775 = vld [vmem:[%s444 + $0x3b0] sm:$0xff]
        %v2776 = vld [vmem:[%s444 + $0x3b8] sm:$0xff]
        %v2777 = vld [vmem:[%s444 + $0x3c0] sm:$0xff]
        %v2778 = vld [vmem:[%s444 + $0x3c8] sm:$0xff]
        %v2779 = vld [vmem:[%s444 + $0x3d0] sm:$0xff]
        %v2780 = vld [vmem:[%s444 + $0x3d8] sm:$0xff]
        %v2781 = vld [vmem:[%s444 + $0x3e0] sm:$0xff]
        %v2782 = vld [vmem:[%s444 + $0x3e8] sm:$0xff]
        %v2783 = vld [vmem:[%s444 + $0x3f0] sm:$0xff]
        %v2784 = vld [vmem:[%s444 + $0x3f8] sm:$0xff]
        %v2785 = vld [vmem:[%s444 + $0x400] sm:$0xff]
        %v2786 = vld [vmem:[%s444 + $0x408] sm:$0xff]
        %v2787 = vld [vmem:[%s444 + $0x410] sm:$0xff]
        %v2788 = vld [vmem:[%s444 + $0x418] sm:$0xff]
        %v2789 = vld [vmem:[%s444 + $0x420] sm:$0xff]
        %v2790 = vld [vmem:[%s444 + $0x428] sm:$0xff]
        %v2791 = vld [vmem:[%s444 + $0x430] sm:$0xff]
        %v2792 = vld [vmem:[%s444 + $0x438] sm:$0xff]
        %v2793 = vld [vmem:[%s444 + $0x440] sm:$0xff]
        %v2794 = vld [vmem:[%s444 + $0x448] sm:$0xff]
        %v2795 = vld [vmem:[%s444 + $0x450] sm:$0xff]
        %v2796 = vld [vmem:[%s444 + $0x458] sm:$0xff]
        %v2797 = vld [vmem:[%s444 + $0x460] sm:$0xff]
        %v2798 = vld [vmem:[%s444 + $0x468] sm:$0xff]
        %v2799 = vld [vmem:[%s444 + $0x470] sm:$0xff]
        %v2800 = vld [vmem:[%s444 + $0x478] sm:$0xff]
        %v2801 = vld [vmem:[%s444 + $0x480] sm:$0xff]
        %v2802 = vld [vmem:[%s444 + $0x488] sm:$0xff]
        %v2803 = vld [vmem:[%s444 + $0x490] sm:$0xff]
        %v2804 = vld [vmem:[%s444 + $0x498] sm:$0xff]
        %v2805 = vld [vmem:[%s444 + $0x4a0] sm:$0xff]
        %v2806 = vld [vmem:[%s444 + $0x4a8] sm:$0xff]
        %v2807 = vld [vmem:[%s444 + $0x4b0] sm:$0xff]
        %v2808 = vld [vmem:[%s444 + $0x4b8] sm:$0xff]
        %v2809 = vld [vmem:[%s444 + $0x4c0] sm:$0xff]
        %v2810 = vld [vmem:[%s444 + $0x4c8] sm:$0xff]
        %v2811 = vld [vmem:[%s444 + $0x4d0] sm:$0xff]
        %v2812 = vld [vmem:[%s444 + $0x4d8] sm:$0xff]
        %v2813 = vld [vmem:[%s444 + $0x4e0] sm:$0xff]
        %v2814 = vld [vmem:[%s444 + $0x4e8] sm:$0xff]
        %v2815 = vld [vmem:[%s444 + $0x4f0] sm:$0xff]
        %v2816 = vld [vmem:[%s444 + $0x4f8] sm:$0xff]
        %v2817 = vld [vmem:[%s444 + $0x500] sm:$0xff]
        %v2818 = vld [vmem:[%s444 + $0x508] sm:$0xff]
        %v2819 = vld [vmem:[%s444 + $0x510] sm:$0xff]
        %v2820 = vld [vmem:[%s444 + $0x518] sm:$0xff]
        %v2821 = vld [vmem:[%s444 + $0x520] sm:$0xff]
        %v2822 = vld [vmem:[%s444 + $0x528] sm:$0xff]
        %v2823 = vld [vmem:[%s444 + $0x530] sm:$0xff]
        %v2824 = vld [vmem:[%s444 + $0x538] sm:$0xff]
        %v2825 = vld [vmem:[%s444 + $0x540] sm:$0xff]
        %v2826 = vld [vmem:[%s444 + $0x548] sm:$0xff]
        %v2827 = vld [vmem:[%s444 + $0x550] sm:$0xff]
        %v2828 = vld [vmem:[%s444 + $0x558] sm:$0xff]
        %v2829 = vld [vmem:[%s444 + $0x560] sm:$0xff]
        %v2830 = vld [vmem:[%s444 + $0x568] sm:$0xff]
        %v2831 = vld [vmem:[%s444 + $0x570] sm:$0xff]
        %v2832 = vld [vmem:[%s444 + $0x578] sm:$0xff]
        %v2833 = vld [vmem:[%s444 + $0x580] sm:$0xff]
        %v2834 = vld [vmem:[%s444 + $0x588] sm:$0xff]
        %v2835 = vld [vmem:[%s444 + $0x590] sm:$0xff]
        %v2836 = vld [vmem:[%s444 + $0x598] sm:$0xff]
        %v2837 = vld [vmem:[%s444 + $0x5a0] sm:$0xff]
        %v2838 = vld [vmem:[%s444 + $0x5a8] sm:$0xff]
        %v2839 = vld [vmem:[%s444 + $0x5b0] sm:$0xff]
        %v2840 = vld [vmem:[%s444 + $0x5b8] sm:$0xff]
        %v2841 = vld [vmem:[%s444 + $0x5c0] sm:$0xff]
        %v2842 = vld [vmem:[%s444 + $0x5c8] sm:$0xff]
        %v2843 = vld [vmem:[%s444 + $0x5d0] sm:$0xff]
        %v2844 = vld [vmem:[%s444 + $0x5d8] sm:$0xff]
        %v2845 = vld [vmem:[%s444 + $0x5e0] sm:$0xff]
        %v2846 = vld [vmem:[%s444 + $0x5e8] sm:$0xff]
        %v2847 = vld [vmem:[%s444 + $0x5f0] sm:$0xff]
        %v2848 = vld [vmem:[%s444 + $0x5f8] sm:$0xff]
        %v2849 = vld [vmem:[%s444 + $0x600] sm:$0xff]
        %v2850 = vld [vmem:[%s444 + $0x608] sm:$0xff]
        %v2851 = vld [vmem:[%s444 + $0x610] sm:$0xff]
        %v2852 = vld [vmem:[%s444 + $0x618] sm:$0xff]
        %v2853 = vld [vmem:[%s444 + $0x620] sm:$0xff]
        %v2854 = vld [vmem:[%s444 + $0x628] sm:$0xff]
        %v2855 = vld [vmem:[%s444 + $0x630] sm:$0xff]
        %v2856 = vld [vmem:[%s444 + $0x638] sm:$0xff]
        %v2857 = vld [vmem:[%s444 + $0x640] sm:$0xff]
        %v2858 = vld [vmem:[%s444 + $0x648] sm:$0xff]
        %v2859 = vld [vmem:[%s444 + $0x650] sm:$0xff]
        %v2860 = vld [vmem:[%s444 + $0x658] sm:$0xff]
        %v2861 = vld [vmem:[%s444 + $0x660] sm:$0xff]
        %v2862 = vld [vmem:[%s444 + $0x668] sm:$0xff]
        %v2863 = vld [vmem:[%s444 + $0x670] sm:$0xff]
        %v2864 = vld [vmem:[%s444 + $0x678] sm:$0xff]
        %v2865 = vld [vmem:[%s444 + $0x680] sm:$0xff]
        %v2866 = vld [vmem:[%s444 + $0x688] sm:$0xff]
        %v2867 = vld [vmem:[%s444 + $0x690] sm:$0xff]
        %v2868 = vld [vmem:[%s444 + $0x698] sm:$0xff]
        %v2869 = vld [vmem:[%s444 + $0x6a0] sm:$0xff]
        %v2870 = vld [vmem:[%s444 + $0x6a8] sm:$0xff]
        %v2871 = vld [vmem:[%s444 + $0x6b0] sm:$0xff]
        %v2872 = vld [vmem:[%s444 + $0x6b8] sm:$0xff]
        %v2873 = vld [vmem:[%s444 + $0x6c0] sm:$0xff]
        %v2874 = vld [vmem:[%s444 + $0x6c8] sm:$0xff]
        %v2875 = vld [vmem:[%s444 + $0x6d0] sm:$0xff]
        %v2876 = vld [vmem:[%s444 + $0x6d8] sm:$0xff]
        %v2877 = vld [vmem:[%s444 + $0x6e0] sm:$0xff]
        %v2878 = vld [vmem:[%s444 + $0x6e8] sm:$0xff]
        %v2879 = vld [vmem:[%s444 + $0x6f0] sm:$0xff]
        %v2880 = vld [vmem:[%s444 + $0x6f8] sm:$0xff]
        %v2881 = vld [vmem:[%s444 + $0x700] sm:$0xff]
        %v2882 = vld [vmem:[%s444 + $0x708] sm:$0xff]
        %v2883 = vld [vmem:[%s444 + $0x710] sm:$0xff]
        %v2884 = vld [vmem:[%s444 + $0x718] sm:$0xff]
        %v2885 = vld [vmem:[%s444 + $0x720] sm:$0xff]
        %v2886 = vld [vmem:[%s444 + $0x728] sm:$0xff]
        %v2887 = vld [vmem:[%s444 + $0x730] sm:$0xff]
        %v2888 = vld [vmem:[%s444 + $0x738] sm:$0xff]
        %v2889 = vld [vmem:[%s444 + $0x740] sm:$0xff]
        %v2890 = vld [vmem:[%s444 + $0x748] sm:$0xff]
        %v2891 = vld [vmem:[%s444 + $0x750] sm:$0xff]
        %v2892 = vld [vmem:[%s444 + $0x758] sm:$0xff]
        %v2893 = vld [vmem:[%s444 + $0x760] sm:$0xff]
        %v2894 = vld [vmem:[%s444 + $0x768] sm:$0xff]
        %v2895 = vld [vmem:[%s444 + $0x770] sm:$0xff]
        %v2896 = vld [vmem:[%s444 + $0x778] sm:$0xff]
        %v2897 = vld [vmem:[%s444 + $0x780] sm:$0xff]
        %v2898 = vld [vmem:[%s444 + $0x788] sm:$0xff]
        %v2899 = vld [vmem:[%s444 + $0x790] sm:$0xff]
        %v2900 = vld [vmem:[%s444 + $0x798] sm:$0xff]
        %v2901 = vld [vmem:[%s444 + $0x7a0] sm:$0xff]
        %v2902 = vld [vmem:[%s444 + $0x7a8] sm:$0xff]
        %v2903 = vld [vmem:[%s444 + $0x7b0] sm:$0xff]
        %v2904 = vld [vmem:[%s444 + $0x7b8] sm:$0xff]
        %v2905 = vld [vmem:[%s444 + $0x7c0] sm:$0xff]
        %v2906 = vld [vmem:[%s444 + $0x7c8] sm:$0xff]
        %v2907 = vld [vmem:[%s444 + $0x7d0] sm:$0xff]
        %v2908 = vld [vmem:[%s444 + $0x7d8] sm:$0xff]
        %v2909 = vld [vmem:[%s444 + $0x7e0] sm:$0xff]
        %v2910 = vld [vmem:[%s444 + $0x7e8] sm:$0xff]
        %v2911 = vld [vmem:[%s444 + $0x7f0] sm:$0xff]
        %v2912 = vld [vmem:[%s444 + $0x7f8] sm:$0xff]
        %v3169 = vunpack.c.l.b16 %v2657
        %v3170 = vunpack.c.h.b16 %v2657
        %v3171 = vunpack.c.l.b16 %v2658
        %v3172 = vunpack.c.h.b16 %v2658
        %v3173 = vunpack.c.l.b16 %v2659
        %v3174 = vunpack.c.h.b16 %v2659
        %v3175 = vunpack.c.l.b16 %v2660
        %v3176 = vunpack.c.h.b16 %v2660
        %v3177 = vunpack.c.l.b16 %v2661
        %v3178 = vunpack.c.h.b16 %v2661
        %v3179 = vunpack.c.l.b16 %v2662
        %v3180 = vunpack.c.h.b16 %v2662
        %v3181 = vunpack.c.l.b16 %v2663
        %v3182 = vunpack.c.h.b16 %v2663
        %v3183 = vunpack.c.l.b16 %v2664
        %v3184 = vunpack.c.h.b16 %v2664
        %v3185 = vunpack.c.l.b16 %v2665
        %v3186 = vunpack.c.h.b16 %v2665
        %v3187 = vunpack.c.l.b16 %v2666
        %v3188 = vunpack.c.h.b16 %v2666
        %v3189 = vunpack.c.l.b16 %v2667
        %v3190 = vunpack.c.h.b16 %v2667
        %v3191 = vunpack.c.l.b16 %v2668
        %v3192 = vunpack.c.h.b16 %v2668
        %v3193 = vunpack.c.l.b16 %v2669
        %v3194 = vunpack.c.h.b16 %v2669
        %v3195 = vunpack.c.l.b16 %v2670
        %v3196 = vunpack.c.h.b16 %v2670
        %v3197 = vunpack.c.l.b16 %v2671
        %v3198 = vunpack.c.h.b16 %v2671
        %v3199 = vunpack.c.l.b16 %v2672
        %v3200 = vunpack.c.h.b16 %v2672
        %v3201 = vunpack.c.l.b16 %v2673
        %v3202 = vunpack.c.h.b16 %v2673
        %v3203 = vunpack.c.l.b16 %v2674
        %v3204 = vunpack.c.h.b16 %v2674
        %v3205 = vunpack.c.l.b16 %v2675
        %v3206 = vunpack.c.h.b16 %v2675
        %v3207 = vunpack.c.l.b16 %v2676
        %v3208 = vunpack.c.h.b16 %v2676
        %v3209 = vunpack.c.l.b16 %v2677
        %v3210 = vunpack.c.h.b16 %v2677
        %v3211 = vunpack.c.l.b16 %v2678
        %v3212 = vunpack.c.h.b16 %v2678
        %v3213 = vunpack.c.l.b16 %v2679
        %v3214 = vunpack.c.h.b16 %v2679
        %v3215 = vunpack.c.l.b16 %v2680
        %v3216 = vunpack.c.h.b16 %v2680
        %v3217 = vunpack.c.l.b16 %v2681
        %v3218 = vunpack.c.h.b16 %v2681
        %v3219 = vunpack.c.l.b16 %v2682
        %v3220 = vunpack.c.h.b16 %v2682
        %v3221 = vunpack.c.l.b16 %v2683
        %v3222 = vunpack.c.h.b16 %v2683
        %v3223 = vunpack.c.l.b16 %v2684
        %v3224 = vunpack.c.h.b16 %v2684
        %v3225 = vunpack.c.l.b16 %v2685
        %v3226 = vunpack.c.h.b16 %v2685
        %v3227 = vunpack.c.l.b16 %v2686
        %v3228 = vunpack.c.h.b16 %v2686
        %v3229 = vunpack.c.l.b16 %v2687
        %v3230 = vunpack.c.h.b16 %v2687
        %v3231 = vunpack.c.l.b16 %v2688
        %v3232 = vunpack.c.h.b16 %v2688
        %v3233 = vunpack.c.l.b16 %v2689
        %v3234 = vunpack.c.h.b16 %v2689
        %v3235 = vunpack.c.l.b16 %v2690
        %v3236 = vunpack.c.h.b16 %v2690
        %v3237 = vunpack.c.l.b16 %v2691
        %v3238 = vunpack.c.h.b16 %v2691
        %v3239 = vunpack.c.l.b16 %v2692
        %v3240 = vunpack.c.h.b16 %v2692
        %v3241 = vunpack.c.l.b16 %v2693
        %v3242 = vunpack.c.h.b16 %v2693
        %v3243 = vunpack.c.l.b16 %v2694
        %v3244 = vunpack.c.h.b16 %v2694
        %v3245 = vunpack.c.l.b16 %v2695
        %v3246 = vunpack.c.h.b16 %v2695
        %v3247 = vunpack.c.l.b16 %v2696
        %v3248 = vunpack.c.h.b16 %v2696
        %v3249 = vunpack.c.l.b16 %v2697
        %v3250 = vunpack.c.h.b16 %v2697
        %v3251 = vunpack.c.l.b16 %v2698
        %v3252 = vunpack.c.h.b16 %v2698
        %v3253 = vunpack.c.l.b16 %v2699
        %v3254 = vunpack.c.h.b16 %v2699
        %v3255 = vunpack.c.l.b16 %v2700
        %v3256 = vunpack.c.h.b16 %v2700
        %v3257 = vunpack.c.l.b16 %v2701
        %v3258 = vunpack.c.h.b16 %v2701
        %v3259 = vunpack.c.l.b16 %v2702
        %v3260 = vunpack.c.h.b16 %v2702
        %v3261 = vunpack.c.l.b16 %v2703
        %v3262 = vunpack.c.h.b16 %v2703
        %v3263 = vunpack.c.l.b16 %v2704
        %v3264 = vunpack.c.h.b16 %v2704
        %v3265 = vunpack.c.l.b16 %v2705
        %v3266 = vunpack.c.h.b16 %v2705
        %v3267 = vunpack.c.l.b16 %v2706
        %v3268 = vunpack.c.h.b16 %v2706
        %v3269 = vunpack.c.l.b16 %v2707
        %v3270 = vunpack.c.h.b16 %v2707
        %v3271 = vunpack.c.l.b16 %v2708
        %v3272 = vunpack.c.h.b16 %v2708
        %v3273 = vunpack.c.l.b16 %v2709
        %v3274 = vunpack.c.h.b16 %v2709
        %v3275 = vunpack.c.l.b16 %v2710
        %v3276 = vunpack.c.h.b16 %v2710
        %v3277 = vunpack.c.l.b16 %v2711
        %v3278 = vunpack.c.h.b16 %v2711
        %v3279 = vunpack.c.l.b16 %v2712
        %v3280 = vunpack.c.h.b16 %v2712
        %v3281 = vunpack.c.l.b16 %v2713
        %v3282 = vunpack.c.h.b16 %v2713
        %v3283 = vunpack.c.l.b16 %v2714
        %v3284 = vunpack.c.h.b16 %v2714
        %v3285 = vunpack.c.l.b16 %v2715
        %v3286 = vunpack.c.h.b16 %v2715
        %v3287 = vunpack.c.l.b16 %v2716
        %v3288 = vunpack.c.h.b16 %v2716
        %v3289 = vunpack.c.l.b16 %v2717
        %v3290 = vunpack.c.h.b16 %v2717
        %v3291 = vunpack.c.l.b16 %v2718
        %v3292 = vunpack.c.h.b16 %v2718
        %v3293 = vunpack.c.l.b16 %v2719
        %v3294 = vunpack.c.h.b16 %v2719
        %v3295 = vunpack.c.l.b16 %v2720
        %v3296 = vunpack.c.h.b16 %v2720
        %v3297 = vunpack.c.l.b16 %v2721
        %v3298 = vunpack.c.h.b16 %v2721
        %v3299 = vunpack.c.l.b16 %v2722
        %v3300 = vunpack.c.h.b16 %v2722
        %v3301 = vunpack.c.l.b16 %v2723
        %v3302 = vunpack.c.h.b16 %v2723
        %v3303 = vunpack.c.l.b16 %v2724
        %v3304 = vunpack.c.h.b16 %v2724
        %v3305 = vunpack.c.l.b16 %v2725
        %v3306 = vunpack.c.h.b16 %v2725
        %v3307 = vunpack.c.l.b16 %v2726
        %v3308 = vunpack.c.h.b16 %v2726
        %v3309 = vunpack.c.l.b16 %v2727
        %v3310 = vunpack.c.h.b16 %v2727
        %v3311 = vunpack.c.l.b16 %v2728
        %v3312 = vunpack.c.h.b16 %v2728
        %v3313 = vunpack.c.l.b16 %v2729
        %v3314 = vunpack.c.h.b16 %v2729
        %v3315 = vunpack.c.l.b16 %v2730
        %v3316 = vunpack.c.h.b16 %v2730
        %v3317 = vunpack.c.l.b16 %v2731
        %v3318 = vunpack.c.h.b16 %v2731
        %v3319 = vunpack.c.l.b16 %v2732
        %v3320 = vunpack.c.h.b16 %v2732
        %v3321 = vunpack.c.l.b16 %v2733
        %v3322 = vunpack.c.h.b16 %v2733
        %v3323 = vunpack.c.l.b16 %v2734
        %v3324 = vunpack.c.h.b16 %v2734
        %v3325 = vunpack.c.l.b16 %v2735
        %v3326 = vunpack.c.h.b16 %v2735
        %v3327 = vunpack.c.l.b16 %v2736
        %v3328 = vunpack.c.h.b16 %v2736
        %v3329 = vunpack.c.l.b16 %v2737
        %v3330 = vunpack.c.h.b16 %v2737
        %v3331 = vunpack.c.l.b16 %v2738
        %v3332 = vunpack.c.h.b16 %v2738
        %v3333 = vunpack.c.l.b16 %v2739
        %v3334 = vunpack.c.h.b16 %v2739
        %v3335 = vunpack.c.l.b16 %v2740
        %v3336 = vunpack.c.h.b16 %v2740
        %v3337 = vunpack.c.l.b16 %v2741
        %v3338 = vunpack.c.h.b16 %v2741
        %v3339 = vunpack.c.l.b16 %v2742
        %v3340 = vunpack.c.h.b16 %v2742
        %v3341 = vunpack.c.l.b16 %v2743
        %v3342 = vunpack.c.h.b16 %v2743
        %v3343 = vunpack.c.l.b16 %v2744
        %v3344 = vunpack.c.h.b16 %v2744
        %v3345 = vunpack.c.l.b16 %v2745
        %v3346 = vunpack.c.h.b16 %v2745
        %v3347 = vunpack.c.l.b16 %v2746
        %v3348 = vunpack.c.h.b16 %v2746
        %v3349 = vunpack.c.l.b16 %v2747
        %v3350 = vunpack.c.h.b16 %v2747
        %v3351 = vunpack.c.l.b16 %v2748
        %v3352 = vunpack.c.h.b16 %v2748
        %v3353 = vunpack.c.l.b16 %v2749
        %v3354 = vunpack.c.h.b16 %v2749
        %v3355 = vunpack.c.l.b16 %v2750
        %v3356 = vunpack.c.h.b16 %v2750
        %v3357 = vunpack.c.l.b16 %v2751
        %v3358 = vunpack.c.h.b16 %v2751
        %v3359 = vunpack.c.l.b16 %v2752
        %v3360 = vunpack.c.h.b16 %v2752
        %v3361 = vunpack.c.l.b16 %v2753
        %v3362 = vunpack.c.h.b16 %v2753
        %v3363 = vunpack.c.l.b16 %v2754
        %v3364 = vunpack.c.h.b16 %v2754
        %v3365 = vunpack.c.l.b16 %v2755
        %v3366 = vunpack.c.h.b16 %v2755
        %v3367 = vunpack.c.l.b16 %v2756
        %v3368 = vunpack.c.h.b16 %v2756
        %v3369 = vunpack.c.l.b16 %v2757
        %v3370 = vunpack.c.h.b16 %v2757
        %v3371 = vunpack.c.l.b16 %v2758
        %v3372 = vunpack.c.h.b16 %v2758
        %v3373 = vunpack.c.l.b16 %v2759
        %v3374 = vunpack.c.h.b16 %v2759
        %v3375 = vunpack.c.l.b16 %v2760
        %v3376 = vunpack.c.h.b16 %v2760
        %v3377 = vunpack.c.l.b16 %v2761
        %v3378 = vunpack.c.h.b16 %v2761
        %v3379 = vunpack.c.l.b16 %v2762
        %v3380 = vunpack.c.h.b16 %v2762
        %v3381 = vunpack.c.l.b16 %v2763
        %v3382 = vunpack.c.h.b16 %v2763
        %v3383 = vunpack.c.l.b16 %v2764
        %v3384 = vunpack.c.h.b16 %v2764
        %v3385 = vunpack.c.l.b16 %v2765
        %v3386 = vunpack.c.h.b16 %v2765
        %v3387 = vunpack.c.l.b16 %v2766
        %v3388 = vunpack.c.h.b16 %v2766
        %v3389 = vunpack.c.l.b16 %v2767
        %v3390 = vunpack.c.h.b16 %v2767
        %v3391 = vunpack.c.l.b16 %v2768
        %v3392 = vunpack.c.h.b16 %v2768
        %v3393 = vunpack.c.l.b16 %v2769
        %v3394 = vunpack.c.h.b16 %v2769
        %v3395 = vunpack.c.l.b16 %v2770
        %v3396 = vunpack.c.h.b16 %v2770
        %v3397 = vunpack.c.l.b16 %v2771
        %v3398 = vunpack.c.h.b16 %v2771
        %v3399 = vunpack.c.l.b16 %v2772
        %v3400 = vunpack.c.h.b16 %v2772
        %v3401 = vunpack.c.l.b16 %v2773
        %v3402 = vunpack.c.h.b16 %v2773
        %v3403 = vunpack.c.l.b16 %v2774
        %v3404 = vunpack.c.h.b16 %v2774
        %v3405 = vunpack.c.l.b16 %v2775
        %v3406 = vunpack.c.h.b16 %v2775
        %v3407 = vunpack.c.l.b16 %v2776
        %v3408 = vunpack.c.h.b16 %v2776
        %v3409 = vunpack.c.l.b16 %v2777
        %v3410 = vunpack.c.h.b16 %v2777
        %v3411 = vunpack.c.l.b16 %v2778
        %v3412 = vunpack.c.h.b16 %v2778
        %v3413 = vunpack.c.l.b16 %v2779
        %v3414 = vunpack.c.h.b16 %v2779
        %v3415 = vunpack.c.l.b16 %v2780
        %v3416 = vunpack.c.h.b16 %v2780
        %v3417 = vunpack.c.l.b16 %v2781
        %v3418 = vunpack.c.h.b16 %v2781
        %v3419 = vunpack.c.l.b16 %v2782
        %v3420 = vunpack.c.h.b16 %v2782
        %v3421 = vunpack.c.l.b16 %v2783
        %v3422 = vunpack.c.h.b16 %v2783
        %v3423 = vunpack.c.l.b16 %v2784
        %v3424 = vunpack.c.h.b16 %v2784
        %v3425 = vunpack.c.l.b16 %v2785
        %v3426 = vunpack.c.h.b16 %v2785
        %v3427 = vunpack.c.l.b16 %v2786
        %v3428 = vunpack.c.h.b16 %v2786
        %v3429 = vunpack.c.l.b16 %v2787
        %v3430 = vunpack.c.h.b16 %v2787
        %v3431 = vunpack.c.l.b16 %v2788
        %v3432 = vunpack.c.h.b16 %v2788
        %v3433 = vunpack.c.l.b16 %v2789
        %v3434 = vunpack.c.h.b16 %v2789
        %v3435 = vunpack.c.l.b16 %v2790
        %v3436 = vunpack.c.h.b16 %v2790
        %v3437 = vunpack.c.l.b16 %v2791
        %v3438 = vunpack.c.h.b16 %v2791
        %v3439 = vunpack.c.l.b16 %v2792
        %v3440 = vunpack.c.h.b16 %v2792
        %v3441 = vunpack.c.l.b16 %v2793
        %v3442 = vunpack.c.h.b16 %v2793
        %v3443 = vunpack.c.l.b16 %v2794
        %v3444 = vunpack.c.h.b16 %v2794
        %v3445 = vunpack.c.l.b16 %v2795
        %v3446 = vunpack.c.h.b16 %v2795
        %v3447 = vunpack.c.l.b16 %v2796
        %v3448 = vunpack.c.h.b16 %v2796
        %v3449 = vunpack.c.l.b16 %v2797
        %v3450 = vunpack.c.h.b16 %v2797
        %v3451 = vunpack.c.l.b16 %v2798
        %v3452 = vunpack.c.h.b16 %v2798
        %v3453 = vunpack.c.l.b16 %v2799
        %v3454 = vunpack.c.h.b16 %v2799
        %v3455 = vunpack.c.l.b16 %v2800
        %v3456 = vunpack.c.h.b16 %v2800
        %v3457 = vunpack.c.l.b16 %v2801
        %v3458 = vunpack.c.h.b16 %v2801
        %v3459 = vunpack.c.l.b16 %v2802
        %v3460 = vunpack.c.h.b16 %v2802
        %v3461 = vunpack.c.l.b16 %v2803
        %v3462 = vunpack.c.h.b16 %v2803
        %v3463 = vunpack.c.l.b16 %v2804
        %v3464 = vunpack.c.h.b16 %v2804
        %v3465 = vunpack.c.l.b16 %v2805
        %v3466 = vunpack.c.h.b16 %v2805
        %v3467 = vunpack.c.l.b16 %v2806
        %v3468 = vunpack.c.h.b16 %v2806
        %v3469 = vunpack.c.l.b16 %v2807
        %v3470 = vunpack.c.h.b16 %v2807
        %v3471 = vunpack.c.l.b16 %v2808
        %v3472 = vunpack.c.h.b16 %v2808
        %v3473 = vunpack.c.l.b16 %v2809
        %v3474 = vunpack.c.h.b16 %v2809
        %v3475 = vunpack.c.l.b16 %v2810
        %v3476 = vunpack.c.h.b16 %v2810
        %v3477 = vunpack.c.l.b16 %v2811
        %v3478 = vunpack.c.h.b16 %v2811
        %v3479 = vunpack.c.l.b16 %v2812
        %v3480 = vunpack.c.h.b16 %v2812
        %v3481 = vunpack.c.l.b16 %v2813
        %v3482 = vunpack.c.h.b16 %v2813
        %v3483 = vunpack.c.l.b16 %v2814
        %v3484 = vunpack.c.h.b16 %v2814
        %v3485 = vunpack.c.l.b16 %v2815
        %v3486 = vunpack.c.h.b16 %v2815
        %v3487 = vunpack.c.l.b16 %v2816
        %v3488 = vunpack.c.h.b16 %v2816
        %v3489 = vunpack.c.l.b16 %v2817
        %v3490 = vunpack.c.h.b16 %v2817
        %v3491 = vunpack.c.l.b16 %v2818
        %v3492 = vunpack.c.h.b16 %v2818
        %v3493 = vunpack.c.l.b16 %v2819
        %v3494 = vunpack.c.h.b16 %v2819
        %v3495 = vunpack.c.l.b16 %v2820
        %v3496 = vunpack.c.h.b16 %v2820
        %v3497 = vunpack.c.l.b16 %v2821
        %v3498 = vunpack.c.h.b16 %v2821
        %v3499 = vunpack.c.l.b16 %v2822
        %v3500 = vunpack.c.h.b16 %v2822
        %v3501 = vunpack.c.l.b16 %v2823
        %v3502 = vunpack.c.h.b16 %v2823
        %v3503 = vunpack.c.l.b16 %v2824
        %v3504 = vunpack.c.h.b16 %v2824
        %v3505 = vunpack.c.l.b16 %v2825
        %v3506 = vunpack.c.h.b16 %v2825
        %v3507 = vunpack.c.l.b16 %v2826
        %v3508 = vunpack.c.h.b16 %v2826
        %v3509 = vunpack.c.l.b16 %v2827
        %v3510 = vunpack.c.h.b16 %v2827
        %v3511 = vunpack.c.l.b16 %v2828
        %v3512 = vunpack.c.h.b16 %v2828
        %v3513 = vunpack.c.l.b16 %v2829
        %v3514 = vunpack.c.h.b16 %v2829
        %v3515 = vunpack.c.l.b16 %v2830
        %v3516 = vunpack.c.h.b16 %v2830
        %v3517 = vunpack.c.l.b16 %v2831
        %v3518 = vunpack.c.h.b16 %v2831
        %v3519 = vunpack.c.l.b16 %v2832
        %v3520 = vunpack.c.h.b16 %v2832
        %v3521 = vunpack.c.l.b16 %v2833
        %v3522 = vunpack.c.h.b16 %v2833
        %v3523 = vunpack.c.l.b16 %v2834
        %v3524 = vunpack.c.h.b16 %v2834
        %v3525 = vunpack.c.l.b16 %v2835
        %v3526 = vunpack.c.h.b16 %v2835
        %v3527 = vunpack.c.l.b16 %v2836
        %v3528 = vunpack.c.h.b16 %v2836
        %v3529 = vunpack.c.l.b16 %v2837
        %v3530 = vunpack.c.h.b16 %v2837
        %v3531 = vunpack.c.l.b16 %v2838
        %v3532 = vunpack.c.h.b16 %v2838
        %v3533 = vunpack.c.l.b16 %v2839
        %v3534 = vunpack.c.h.b16 %v2839
        %v3535 = vunpack.c.l.b16 %v2840
        %v3536 = vunpack.c.h.b16 %v2840
        %v3537 = vunpack.c.l.b16 %v2841
        %v3538 = vunpack.c.h.b16 %v2841
        %v3539 = vunpack.c.l.b16 %v2842
        %v3540 = vunpack.c.h.b16 %v2842
        %v3541 = vunpack.c.l.b16 %v2843
        %v3542 = vunpack.c.h.b16 %v2843
        %v3543 = vunpack.c.l.b16 %v2844
        %v3544 = vunpack.c.h.b16 %v2844
        %v3545 = vunpack.c.l.b16 %v2845
        %v3546 = vunpack.c.h.b16 %v2845
        %v3547 = vunpack.c.l.b16 %v2846
        %v3548 = vunpack.c.h.b16 %v2846
        %v3549 = vunpack.c.l.b16 %v2847
        %v3550 = vunpack.c.h.b16 %v2847
        %v3551 = vunpack.c.l.b16 %v2848
        %v3552 = vunpack.c.h.b16 %v2848
        %v3553 = vunpack.c.l.b16 %v2849
        %v3554 = vunpack.c.h.b16 %v2849
        %v3555 = vunpack.c.l.b16 %v2850
        %v3556 = vunpack.c.h.b16 %v2850
        %v3557 = vunpack.c.l.b16 %v2851
        %v3558 = vunpack.c.h.b16 %v2851
        %v3559 = vunpack.c.l.b16 %v2852
        %v3560 = vunpack.c.h.b16 %v2852
        %v3561 = vunpack.c.l.b16 %v2853
        %v3562 = vunpack.c.h.b16 %v2853
        %v3563 = vunpack.c.l.b16 %v2854
        %v3564 = vunpack.c.h.b16 %v2854
        %v3565 = vunpack.c.l.b16 %v2855
        %v3566 = vunpack.c.h.b16 %v2855
        %v3567 = vunpack.c.l.b16 %v2856
        %v3568 = vunpack.c.h.b16 %v2856
        %v3569 = vunpack.c.l.b16 %v2857
        %v3570 = vunpack.c.h.b16 %v2857
        %v3571 = vunpack.c.l.b16 %v2858
        %v3572 = vunpack.c.h.b16 %v2858
        %v3573 = vunpack.c.l.b16 %v2859
        %v3574 = vunpack.c.h.b16 %v2859
        %v3575 = vunpack.c.l.b16 %v2860
        %v3576 = vunpack.c.h.b16 %v2860
        %v3577 = vunpack.c.l.b16 %v2861
        %v3578 = vunpack.c.h.b16 %v2861
        %v3579 = vunpack.c.l.b16 %v2862
        %v3580 = vunpack.c.h.b16 %v2862
        %v3581 = vunpack.c.l.b16 %v2863
        %v3582 = vunpack.c.h.b16 %v2863
        %v3583 = vunpack.c.l.b16 %v2864
        %v3584 = vunpack.c.h.b16 %v2864
        %v3585 = vunpack.c.l.b16 %v2865
        %v3586 = vunpack.c.h.b16 %v2865
        %v3587 = vunpack.c.l.b16 %v2866
        %v3588 = vunpack.c.h.b16 %v2866
        %v3589 = vunpack.c.l.b16 %v2867
        %v3590 = vunpack.c.h.b16 %v2867
        %v3591 = vunpack.c.l.b16 %v2868
        %v3592 = vunpack.c.h.b16 %v2868
        %v3593 = vunpack.c.l.b16 %v2869
        %v3594 = vunpack.c.h.b16 %v2869
        %v3595 = vunpack.c.l.b16 %v2870
        %v3596 = vunpack.c.h.b16 %v2870
        %v3597 = vunpack.c.l.b16 %v2871
        %v3598 = vunpack.c.h.b16 %v2871
        %v3599 = vunpack.c.l.b16 %v2872
        %v3600 = vunpack.c.h.b16 %v2872
        %v3601 = vunpack.c.l.b16 %v2873
        %v3602 = vunpack.c.h.b16 %v2873
        %v3603 = vunpack.c.l.b16 %v2874
        %v3604 = vunpack.c.h.b16 %v2874
        %v3605 = vunpack.c.l.b16 %v2875
        %v3606 = vunpack.c.h.b16 %v2875
        %v3607 = vunpack.c.l.b16 %v2876
        %v3608 = vunpack.c.h.b16 %v2876
        %v3609 = vunpack.c.l.b16 %v2877
        %v3610 = vunpack.c.h.b16 %v2877
        %v3611 = vunpack.c.l.b16 %v2878
        %v3612 = vunpack.c.h.b16 %v2878
        %v3613 = vunpack.c.l.b16 %v2879
        %v3614 = vunpack.c.h.b16 %v2879
        %v3615 = vunpack.c.l.b16 %v2880
        %v3616 = vunpack.c.h.b16 %v2880
        %v3617 = vunpack.c.l.b16 %v2881
        %v3618 = vunpack.c.h.b16 %v2881
        %v3619 = vunpack.c.l.b16 %v2882
        %v3620 = vunpack.c.h.b16 %v2882
        %v3621 = vunpack.c.l.b16 %v2883
        %v3622 = vunpack.c.h.b16 %v2883
        %v3623 = vunpack.c.l.b16 %v2884
        %v3624 = vunpack.c.h.b16 %v2884
        %v3625 = vunpack.c.l.b16 %v2885
        %v3626 = vunpack.c.h.b16 %v2885
        %v3627 = vunpack.c.l.b16 %v2886
        %v3628 = vunpack.c.h.b16 %v2886
        %v3629 = vunpack.c.l.b16 %v2887
        %v3630 = vunpack.c.h.b16 %v2887
        %v3631 = vunpack.c.l.b16 %v2888
        %v3632 = vunpack.c.h.b16 %v2888
        %v3633 = vunpack.c.l.b16 %v2889
        %v3634 = vunpack.c.h.b16 %v2889
        %v3635 = vunpack.c.l.b16 %v2890
        %v3636 = vunpack.c.h.b16 %v2890
        %v3637 = vunpack.c.l.b16 %v2891
        %v3638 = vunpack.c.h.b16 %v2891
        %v3639 = vunpack.c.l.b16 %v2892
        %v3640 = vunpack.c.h.b16 %v2892
        %v3641 = vunpack.c.l.b16 %v2893
        %v3642 = vunpack.c.h.b16 %v2893
        %v3643 = vunpack.c.l.b16 %v2894
        %v3644 = vunpack.c.h.b16 %v2894
        %v3645 = vunpack.c.l.b16 %v2895
        %v3646 = vunpack.c.h.b16 %v2895
        %v3647 = vunpack.c.l.b16 %v2896
        %v3648 = vunpack.c.h.b16 %v2896
        %v3649 = vunpack.c.l.b16 %v2897
        %v3650 = vunpack.c.h.b16 %v2897
        %v3651 = vunpack.c.l.b16 %v2898
        %v3652 = vunpack.c.h.b16 %v2898
        %v3653 = vunpack.c.l.b16 %v2899
        %v3654 = vunpack.c.h.b16 %v2899
        %v3655 = vunpack.c.l.b16 %v2900
        %v3656 = vunpack.c.h.b16 %v2900
        %v3657 = vunpack.c.l.b16 %v2901
        %v3658 = vunpack.c.h.b16 %v2901
        %v3659 = vunpack.c.l.b16 %v2902
        %v3660 = vunpack.c.h.b16 %v2902
        %v3661 = vunpack.c.l.b16 %v2903
        %v3662 = vunpack.c.h.b16 %v2903
        %v3663 = vunpack.c.l.b16 %v2904
        %v3664 = vunpack.c.h.b16 %v2904
        %v3665 = vunpack.c.l.b16 %v2905
        %v3666 = vunpack.c.h.b16 %v2905
        %v3667 = vunpack.c.l.b16 %v2906
        %v3668 = vunpack.c.h.b16 %v2906
        %v3669 = vunpack.c.l.b16 %v2907
        %v3670 = vunpack.c.h.b16 %v2907
        %v3671 = vunpack.c.l.b16 %v2908
        %v3672 = vunpack.c.h.b16 %v2908
        %v3673 = vunpack.c.l.b16 %v2909
        %v3674 = vunpack.c.h.b16 %v2909
        %v3675 = vunpack.c.l.b16 %v2910
        %v3676 = vunpack.c.h.b16 %v2910
        %v3677 = vunpack.c.l.b16 %v2911
        %v3678 = vunpack.c.h.b16 %v2911
        %v3679 = vunpack.c.l.b16 %v2912
        %v3680 = vunpack.c.h.b16 %v2912
        %v3681 = vpack.c.b16 %v3173, %v3169
        %v3682 = vpack.c.b16 %v3174, %v3170
        %v3683 = vpack.c.b16 %v3175, %v3171
        %v3684 = vpack.c.b16 %v3176, %v3172
        %v3685 = vpack.c.b16 %v3181, %v3177
        %v3686 = vpack.c.b16 %v3182, %v3178
        %v3687 = vpack.c.b16 %v3183, %v3179
        %v3688 = vpack.c.b16 %v3184, %v3180
        %v3689 = vpack.c.b16 %v3189, %v3185
        %v3690 = vpack.c.b16 %v3190, %v3186
        %v3691 = vpack.c.b16 %v3191, %v3187
        %v3692 = vpack.c.b16 %v3192, %v3188
        %v3693 = vpack.c.b16 %v3197, %v3193
        %v3694 = vpack.c.b16 %v3198, %v3194
        %v3695 = vpack.c.b16 %v3199, %v3195
        %v3696 = vpack.c.b16 %v3200, %v3196
        %v3697 = vpack.c.b16 %v3205, %v3201
        %v3698 = vpack.c.b16 %v3206, %v3202
        %v3699 = vpack.c.b16 %v3207, %v3203
        %v3700 = vpack.c.b16 %v3208, %v3204
        %v3701 = vpack.c.b16 %v3213, %v3209
        %v3702 = vpack.c.b16 %v3214, %v3210
        %v3703 = vpack.c.b16 %v3215, %v3211
        %v3704 = vpack.c.b16 %v3216, %v3212
        %v3705 = vpack.c.b16 %v3221, %v3217
        %v3706 = vpack.c.b16 %v3222, %v3218
        %v3707 = vpack.c.b16 %v3223, %v3219
        %v3708 = vpack.c.b16 %v3224, %v3220
        %v3709 = vpack.c.b16 %v3229, %v3225
        %v3710 = vpack.c.b16 %v3230, %v3226
        %v3711 = vpack.c.b16 %v3231, %v3227
        %v3712 = vpack.c.b16 %v3232, %v3228
        %v3713 = vpack.c.b16 %v3237, %v3233
        %v3714 = vpack.c.b16 %v3238, %v3234
        %v3715 = vpack.c.b16 %v3239, %v3235
        %v3716 = vpack.c.b16 %v3240, %v3236
        %v3717 = vpack.c.b16 %v3245, %v3241
        %v3718 = vpack.c.b16 %v3246, %v3242
        %v3719 = vpack.c.b16 %v3247, %v3243
        %v3720 = vpack.c.b16 %v3248, %v3244
        %v3721 = vpack.c.b16 %v3253, %v3249
        %v3722 = vpack.c.b16 %v3254, %v3250
        %v3723 = vpack.c.b16 %v3255, %v3251
        %v3724 = vpack.c.b16 %v3256, %v3252
        %v3725 = vpack.c.b16 %v3261, %v3257
        %v3726 = vpack.c.b16 %v3262, %v3258
        %v3727 = vpack.c.b16 %v3263, %v3259
        %v3728 = vpack.c.b16 %v3264, %v3260
        %v3729 = vpack.c.b16 %v3269, %v3265
        %v3730 = vpack.c.b16 %v3270, %v3266
        %v3731 = vpack.c.b16 %v3271, %v3267
        %v3732 = vpack.c.b16 %v3272, %v3268
        %v3733 = vpack.c.b16 %v3277, %v3273
        %v3734 = vpack.c.b16 %v3278, %v3274
        %v3735 = vpack.c.b16 %v3279, %v3275
        %v3736 = vpack.c.b16 %v3280, %v3276
        %v3737 = vpack.c.b16 %v3285, %v3281
        %v3738 = vpack.c.b16 %v3286, %v3282
        %v3739 = vpack.c.b16 %v3287, %v3283
        %v3740 = vpack.c.b16 %v3288, %v3284
        %v3741 = vpack.c.b16 %v3293, %v3289
        %v3742 = vpack.c.b16 %v3294, %v3290
        %v3743 = vpack.c.b16 %v3295, %v3291
        %v3744 = vpack.c.b16 %v3296, %v3292
        %v3745 = vpack.c.b16 %v3301, %v3297
        %v3746 = vpack.c.b16 %v3302, %v3298
        %v3747 = vpack.c.b16 %v3303, %v3299
        %v3748 = vpack.c.b16 %v3304, %v3300
        %v3749 = vpack.c.b16 %v3309, %v3305
        %v3750 = vpack.c.b16 %v3310, %v3306
        %v3751 = vpack.c.b16 %v3311, %v3307
        %v3752 = vpack.c.b16 %v3312, %v3308
        %v3753 = vpack.c.b16 %v3317, %v3313
        %v3754 = vpack.c.b16 %v3318, %v3314
        %v3755 = vpack.c.b16 %v3319, %v3315
        %v3756 = vpack.c.b16 %v3320, %v3316
        %v3757 = vpack.c.b16 %v3325, %v3321
        %v3758 = vpack.c.b16 %v3326, %v3322
        %v3759 = vpack.c.b16 %v3327, %v3323
        %v3760 = vpack.c.b16 %v3328, %v3324
        %v3761 = vpack.c.b16 %v3333, %v3329
        %v3762 = vpack.c.b16 %v3334, %v3330
        %v3763 = vpack.c.b16 %v3335, %v3331
        %v3764 = vpack.c.b16 %v3336, %v3332
        %v3765 = vpack.c.b16 %v3341, %v3337
        %v3766 = vpack.c.b16 %v3342, %v3338
        %v3767 = vpack.c.b16 %v3343, %v3339
        %v3768 = vpack.c.b16 %v3344, %v3340
        %v3769 = vpack.c.b16 %v3349, %v3345
        %v3770 = vpack.c.b16 %v3350, %v3346
        %v3771 = vpack.c.b16 %v3351, %v3347
        %v3772 = vpack.c.b16 %v3352, %v3348
        %v3773 = vpack.c.b16 %v3357, %v3353
        %v3774 = vpack.c.b16 %v3358, %v3354
        %v3775 = vpack.c.b16 %v3359, %v3355
        %v3776 = vpack.c.b16 %v3360, %v3356
        %v3777 = vpack.c.b16 %v3365, %v3361
        %v3778 = vpack.c.b16 %v3366, %v3362
        %v3779 = vpack.c.b16 %v3367, %v3363
        %v3780 = vpack.c.b16 %v3368, %v3364
        %v3781 = vpack.c.b16 %v3373, %v3369
        %v3782 = vpack.c.b16 %v3374, %v3370
        %v3783 = vpack.c.b16 %v3375, %v3371
        %v3784 = vpack.c.b16 %v3376, %v3372
        %v3785 = vpack.c.b16 %v3381, %v3377
        %v3786 = vpack.c.b16 %v3382, %v3378
        %v3787 = vpack.c.b16 %v3383, %v3379
        %v3788 = vpack.c.b16 %v3384, %v3380
        %v3789 = vpack.c.b16 %v3389, %v3385
        %v3790 = vpack.c.b16 %v3390, %v3386
        %v3791 = vpack.c.b16 %v3391, %v3387
        %v3792 = vpack.c.b16 %v3392, %v3388
        %v3793 = vpack.c.b16 %v3397, %v3393
        %v3794 = vpack.c.b16 %v3398, %v3394
        %v3795 = vpack.c.b16 %v3399, %v3395
        %v3796 = vpack.c.b16 %v3400, %v3396
        %v3797 = vpack.c.b16 %v3405, %v3401
        %v3798 = vpack.c.b16 %v3406, %v3402
        %v3799 = vpack.c.b16 %v3407, %v3403
        %v3800 = vpack.c.b16 %v3408, %v3404
        %v3801 = vpack.c.b16 %v3413, %v3409
        %v3802 = vpack.c.b16 %v3414, %v3410
        %v3803 = vpack.c.b16 %v3415, %v3411
        %v3804 = vpack.c.b16 %v3416, %v3412
        %v3805 = vpack.c.b16 %v3421, %v3417
        %v3806 = vpack.c.b16 %v3422, %v3418
        %v3807 = vpack.c.b16 %v3423, %v3419
        %v3808 = vpack.c.b16 %v3424, %v3420
        %v3809 = vpack.c.b16 %v3429, %v3425
        %v3810 = vpack.c.b16 %v3430, %v3426
        %v3811 = vpack.c.b16 %v3431, %v3427
        %v3812 = vpack.c.b16 %v3432, %v3428
        %v3813 = vpack.c.b16 %v3437, %v3433
        %v3814 = vpack.c.b16 %v3438, %v3434
        %v3815 = vpack.c.b16 %v3439, %v3435
        %v3816 = vpack.c.b16 %v3440, %v3436
        %v3817 = vpack.c.b16 %v3445, %v3441
        %v3818 = vpack.c.b16 %v3446, %v3442
        %v3819 = vpack.c.b16 %v3447, %v3443
        %v3820 = vpack.c.b16 %v3448, %v3444
        %v3821 = vpack.c.b16 %v3453, %v3449
        %v3822 = vpack.c.b16 %v3454, %v3450
        %v3823 = vpack.c.b16 %v3455, %v3451
        %v3824 = vpack.c.b16 %v3456, %v3452
        %v3825 = vpack.c.b16 %v3461, %v3457
        %v3826 = vpack.c.b16 %v3462, %v3458
        %v3827 = vpack.c.b16 %v3463, %v3459
        %v3828 = vpack.c.b16 %v3464, %v3460
        %v3829 = vpack.c.b16 %v3469, %v3465
        %v3830 = vpack.c.b16 %v3470, %v3466
        %v3831 = vpack.c.b16 %v3471, %v3467
        %v3832 = vpack.c.b16 %v3472, %v3468
        %v3833 = vpack.c.b16 %v3477, %v3473
        %v3834 = vpack.c.b16 %v3478, %v3474
        %v3835 = vpack.c.b16 %v3479, %v3475
        %v3836 = vpack.c.b16 %v3480, %v3476
        %v3837 = vpack.c.b16 %v3485, %v3481
        %v3838 = vpack.c.b16 %v3486, %v3482
        %v3839 = vpack.c.b16 %v3487, %v3483
        %v3840 = vpack.c.b16 %v3488, %v3484
        %v3841 = vpack.c.b16 %v3493, %v3489
        %v3842 = vpack.c.b16 %v3494, %v3490
        %v3843 = vpack.c.b16 %v3495, %v3491
        %v3844 = vpack.c.b16 %v3496, %v3492
        %v3845 = vpack.c.b16 %v3501, %v3497
        %v3846 = vpack.c.b16 %v3502, %v3498
        %v3847 = vpack.c.b16 %v3503, %v3499
        %v3848 = vpack.c.b16 %v3504, %v3500
        %v3849 = vpack.c.b16 %v3509, %v3505
        %v3850 = vpack.c.b16 %v3510, %v3506
        %v3851 = vpack.c.b16 %v3511, %v3507
        %v3852 = vpack.c.b16 %v3512, %v3508
        %v3853 = vpack.c.b16 %v3517, %v3513
        %v3854 = vpack.c.b16 %v3518, %v3514
        %v3855 = vpack.c.b16 %v3519, %v3515
        %v3856 = vpack.c.b16 %v3520, %v3516
        %v3857 = vpack.c.b16 %v3525, %v3521
        %v3858 = vpack.c.b16 %v3526, %v3522
        %v3859 = vpack.c.b16 %v3527, %v3523
        %v3860 = vpack.c.b16 %v3528, %v3524
        %v3861 = vpack.c.b16 %v3533, %v3529
        %v3862 = vpack.c.b16 %v3534, %v3530
        %v3863 = vpack.c.b16 %v3535, %v3531
        %v3864 = vpack.c.b16 %v3536, %v3532
        %v3865 = vpack.c.b16 %v3541, %v3537
        %v3866 = vpack.c.b16 %v3542, %v3538
        %v3867 = vpack.c.b16 %v3543, %v3539
        %v3868 = vpack.c.b16 %v3544, %v3540
        %v3869 = vpack.c.b16 %v3549, %v3545
        %v3870 = vpack.c.b16 %v3550, %v3546
        %v3871 = vpack.c.b16 %v3551, %v3547
        %v3872 = vpack.c.b16 %v3552, %v3548
        %v3873 = vpack.c.b16 %v3557, %v3553
        %v3874 = vpack.c.b16 %v3558, %v3554
        %v3875 = vpack.c.b16 %v3559, %v3555
        %v3876 = vpack.c.b16 %v3560, %v3556
        %v3877 = vpack.c.b16 %v3565, %v3561
        %v3878 = vpack.c.b16 %v3566, %v3562
        %v3879 = vpack.c.b16 %v3567, %v3563
        %v3880 = vpack.c.b16 %v3568, %v3564
        %v3881 = vpack.c.b16 %v3573, %v3569
        %v3882 = vpack.c.b16 %v3574, %v3570
        %v3883 = vpack.c.b16 %v3575, %v3571
        %v3884 = vpack.c.b16 %v3576, %v3572
        %v3885 = vpack.c.b16 %v3581, %v3577
        %v3886 = vpack.c.b16 %v3582, %v3578
        %v3887 = vpack.c.b16 %v3583, %v3579
        %v3888 = vpack.c.b16 %v3584, %v3580
        %v3889 = vpack.c.b16 %v3589, %v3585
        %v3890 = vpack.c.b16 %v3590, %v3586
        %v3891 = vpack.c.b16 %v3591, %v3587
        %v3892 = vpack.c.b16 %v3592, %v3588
        %v3893 = vpack.c.b16 %v3597, %v3593
        %v3894 = vpack.c.b16 %v3598, %v3594
        %v3895 = vpack.c.b16 %v3599, %v3595
        %v3896 = vpack.c.b16 %v3600, %v3596
        %v3897 = vpack.c.b16 %v3605, %v3601
        %v3898 = vpack.c.b16 %v3606, %v3602
        %v3899 = vpack.c.b16 %v3607, %v3603
        %v3900 = vpack.c.b16 %v3608, %v3604
        %v3901 = vpack.c.b16 %v3613, %v3609
        %v3902 = vpack.c.b16 %v3614, %v3610
        %v3903 = vpack.c.b16 %v3615, %v3611
        %v3904 = vpack.c.b16 %v3616, %v3612
        %v3905 = vpack.c.b16 %v3621, %v3617
        %v3906 = vpack.c.b16 %v3622, %v3618
        %v3907 = vpack.c.b16 %v3623, %v3619
        %v3908 = vpack.c.b16 %v3624, %v3620
        %v3909 = vpack.c.b16 %v3629, %v3625
        %v3910 = vpack.c.b16 %v3630, %v3626
        %v3911 = vpack.c.b16 %v3631, %v3627
        %v3912 = vpack.c.b16 %v3632, %v3628
        %v3913 = vpack.c.b16 %v3637, %v3633
        %v3914 = vpack.c.b16 %v3638, %v3634
        %v3915 = vpack.c.b16 %v3639, %v3635
        %v3916 = vpack.c.b16 %v3640, %v3636
        %v3917 = vpack.c.b16 %v3645, %v3641
        %v3918 = vpack.c.b16 %v3646, %v3642
        %v3919 = vpack.c.b16 %v3647, %v3643
        %v3920 = vpack.c.b16 %v3648, %v3644
        %v3921 = vpack.c.b16 %v3653, %v3649
        %v3922 = vpack.c.b16 %v3654, %v3650
        %v3923 = vpack.c.b16 %v3655, %v3651
        %v3924 = vpack.c.b16 %v3656, %v3652
        %v3925 = vpack.c.b16 %v3661, %v3657
        %v3926 = vpack.c.b16 %v3662, %v3658
        %v3927 = vpack.c.b16 %v3663, %v3659
        %v3928 = vpack.c.b16 %v3664, %v3660
        %v3929 = vpack.c.b16 %v3669, %v3665
        %v3930 = vpack.c.b16 %v3670, %v3666
        %v3931 = vpack.c.b16 %v3671, %v3667
        %v3932 = vpack.c.b16 %v3672, %v3668
        %v3933 = vpack.c.b16 %v3677, %v3673
        %v3934 = vpack.c.b16 %v3678, %v3674
        %v3935 = vpack.c.b16 %v3679, %v3675
        %v3936 = vpack.c.b16 %v3680, %v3676
        %4193 = vmatprep.subr.bf16.mxu0 %v3682
        %4194 = vmatpush1.bf16.msra.mxu0 %v3681
        %4195 = vmatprep.subr.bf16.mxu0 %v3686
        %4196 = vmatpush1.bf16.msra.mxu0 %v3685
        %4197 = vmatprep.subr.bf16.mxu0 %v3690
        %4198 = vmatpush1.bf16.msra.mxu0 %v3689
        %4199 = vmatprep.subr.bf16.mxu0 %v3694
        %4200 = vmatpush1.bf16.msra.mxu0 %v3693
        %4201 = vmatprep.subr.bf16.mxu0 %v3698
        %4202 = vmatpush1.bf16.msra.mxu0 %v3697
        %4203 = vmatprep.subr.bf16.mxu0 %v3702
        %4204 = vmatpush1.bf16.msra.mxu0 %v3701
        %4205 = vmatprep.subr.bf16.mxu0 %v3706
        %4206 = vmatpush1.bf16.msra.mxu0 %v3705
        %4207 = vmatprep.subr.bf16.mxu0 %v3710
        %4208 = vmatpush1.bf16.msra.mxu0 %v3709
        %4209 = vmatprep.subr.bf16.mxu0 %v3714
        %4210 = vmatpush1.bf16.msra.mxu0 %v3713
        %4211 = vmatprep.subr.bf16.mxu0 %v3718
        %4212 = vmatpush1.bf16.msra.mxu0 %v3717
        %4213 = vmatprep.subr.bf16.mxu0 %v3722
        %4214 = vmatpush1.bf16.msra.mxu0 %v3721
        %4215 = vmatprep.subr.bf16.mxu0 %v3726
        %4216 = vmatpush1.bf16.msra.mxu0 %v3725
        %4217 = vmatprep.subr.bf16.mxu0 %v3730
        %4218 = vmatpush1.bf16.msra.mxu0 %v3729
        %4219 = vmatprep.subr.bf16.mxu0 %v3734
        %4220 = vmatpush1.bf16.msra.mxu0 %v3733
        %4221 = vmatprep.subr.bf16.mxu0 %v3738
        %4222 = vmatpush1.bf16.msra.mxu0 %v3737
        %4223 = vmatprep.subr.bf16.mxu0 %v3742
        %4224 = vmatpush1.bf16.msra.mxu0 %v3741
        %4225 = vmatprep.mubr.bf16.mxu0 %v2650
        %4226 = vmatmul.mubr.bf16.gmra.mrb[0].mxu0 %v2649
        %v4227 = vpop.f32.mrb[0].mxu0
        %v4228 = vadd.f32 0.0, %v4227
        %v4229 = vpop.f32.mrb[0].mxu0
        %v4230 = vadd.f32 0.0, %v4229
        %v4231 = vpop.f32.mrb[0].mxu0
        %v4232 = vpop.f32.mrb[0].mxu0
        %4233 = vdwg.mxu0
        %4234 = vmatprep.subr.bf16.mxu0 %v3746
        %4235 = vmatpush1.bf16.msra.mxu0 %v3745
        %4236 = vmatprep.subr.bf16.mxu0 %v3750
        %4237 = vmatpush1.bf16.msra.mxu0 %v3749
        %4238 = vmatprep.subr.bf16.mxu0 %v3754
        %4239 = vmatpush1.bf16.msra.mxu0 %v3753
        %4240 = vmatprep.subr.bf16.mxu0 %v3758
        %4241 = vmatpush1.bf16.msra.mxu0 %v3757
        %4242 = vmatprep.subr.bf16.mxu0 %v3762
        %4243 = vmatpush1.bf16.msra.mxu0 %v3761
        %4244 = vmatprep.subr.bf16.mxu0 %v3766
        %4245 = vmatpush1.bf16.msra.mxu0 %v3765
        %4246 = vmatprep.subr.bf16.mxu0 %v3770
        %4247 = vmatpush1.bf16.msra.mxu0 %v3769
        %4248 = vmatprep.subr.bf16.mxu0 %v3774
        %4249 = vmatpush1.bf16.msra.mxu0 %v3773
        %4250 = vmatprep.subr.bf16.mxu0 %v3778
        %4251 = vmatpush1.bf16.msra.mxu0 %v3777
        %4252 = vmatprep.subr.bf16.mxu0 %v3782
        %4253 = vmatpush1.bf16.msra.mxu0 %v3781
        %4254 = vmatprep.subr.bf16.mxu0 %v3786
        %4255 = vmatpush1.bf16.msra.mxu0 %v3785
        %4256 = vmatprep.subr.bf16.mxu0 %v3790
        %4257 = vmatpush1.bf16.msra.mxu0 %v3789
        %4258 = vmatprep.subr.bf16.mxu0 %v3794
        %4259 = vmatpush1.bf16.msra.mxu0 %v3793
        %4260 = vmatprep.subr.bf16.mxu0 %v3798
        %4261 = vmatpush1.bf16.msra.mxu0 %v3797
        %4262 = vmatprep.subr.bf16.mxu0 %v3802
        %4263 = vmatpush1.bf16.msra.mxu0 %v3801
        %4264 = vmatprep.subr.bf16.mxu0 %v3806
        %4265 = vmatpush1.bf16.msra.mxu0 %v3805
        %4266 = vmatprep.mubr.bf16.mxu0 %v2652
        %4267 = vmatmul.mubr.bf16.gmra.mrb[0].mxu0 %v2651
        %v4268 = vpop.f32.mrb[0].mxu0
        %v4269 = vadd.f32 %v4228, %v4268
        %v4270 = vpop.f32.mrb[0].mxu0
        %v4271 = vadd.f32 %v4230, %v4270
        %v4272 = vpop.f32.mrb[0].mxu0
        %v4273 = vpop.f32.mrb[0].mxu0
        %4274 = vdwg.mxu0
        %4275 = vmatprep.subr.bf16.mxu0 %v3810
        %4276 = vmatpush1.bf16.msra.mxu0 %v3809
        %4277 = vmatprep.subr.bf16.mxu0 %v3814
        %4278 = vmatpush1.bf16.msra.mxu0 %v3813
        %4279 = vmatprep.subr.bf16.mxu0 %v3818
        %4280 = vmatpush1.bf16.msra.mxu0 %v3817
        %4281 = vmatprep.subr.bf16.mxu0 %v3822
        %4282 = vmatpush1.bf16.msra.mxu0 %v3821
        %4283 = vmatprep.subr.bf16.mxu0 %v3826
        %4284 = vmatpush1.bf16.msra.mxu0 %v3825
        %4285 = vmatprep.subr.bf16.mxu0 %v3830
        %4286 = vmatpush1.bf16.msra.mxu0 %v3829
        %4287 = vmatprep.subr.bf16.mxu0 %v3834
        %4288 = vmatpush1.bf16.msra.mxu0 %v3833
        %4289 = vmatprep.subr.bf16.mxu0 %v3838
        %4290 = vmatpush1.bf16.msra.mxu0 %v3837
        %4291 = vmatprep.subr.bf16.mxu0 %v3842
        %4292 = vmatpush1.bf16.msra.mxu0 %v3841
        %4293 = vmatprep.subr.bf16.mxu0 %v3846
        %4294 = vmatpush1.bf16.msra.mxu0 %v3845
        %4295 = vmatprep.subr.bf16.mxu0 %v3850
        %4296 = vmatpush1.bf16.msra.mxu0 %v3849
        %4297 = vmatprep.subr.bf16.mxu0 %v3854
        %4298 = vmatpush1.bf16.msra.mxu0 %v3853
        %4299 = vmatprep.subr.bf16.mxu0 %v3858
        %4300 = vmatpush1.bf16.msra.mxu0 %v3857
        %4301 = vmatprep.subr.bf16.mxu0 %v3862
        %4302 = vmatpush1.bf16.msra.mxu0 %v3861
        %4303 = vmatprep.subr.bf16.mxu0 %v3866
        %4304 = vmatpush1.bf16.msra.mxu0 %v3865
        %4305 = vmatprep.subr.bf16.mxu0 %v3870
        %4306 = vmatpush1.bf16.msra.mxu0 %v3869
        %4307 = vmatprep.mubr.bf16.mxu0 %v2654
        %4308 = vmatmul.mubr.bf16.gmra.mrb[0].mxu0 %v2653
        %v4309 = vpop.f32.mrb[0].mxu0
        %v4310 = vadd.f32 %v4269, %v4309
        %v4311 = vpop.f32.mrb[0].mxu0
        %v4312 = vadd.f32 %v4271, %v4311
        %v4313 = vpop.f32.mrb[0].mxu0
        %v4314 = vpop.f32.mrb[0].mxu0
        %4315 = vdwg.mxu0
        %4316 = vmatprep.subr.bf16.mxu0 %v3874
        %4317 = vmatpush1.bf16.msra.mxu0 %v3873
        %4318 = vmatprep.subr.bf16.mxu0 %v3878
        %4319 = vmatpush1.bf16.msra.mxu0 %v3877
        %4320 = vmatprep.subr.bf16.mxu0 %v3882
        %4321 = vmatpush1.bf16.msra.mxu0 %v3881
        %4322 = vmatprep.subr.bf16.mxu0 %v3886
        %4323 = vmatpush1.bf16.msra.mxu0 %v3885
        %4324 = vmatprep.subr.bf16.mxu0 %v3890
        %4325 = vmatpush1.bf16.msra.mxu0 %v3889
        %4326 = vmatprep.subr.bf16.mxu0 %v3894
        %4327 = vmatpush1.bf16.msra.mxu0 %v3893
        %4328 = vmatprep.subr.bf16.mxu0 %v3898
        %4329 = vmatpush1.bf16.msra.mxu0 %v3897
        %4330 = vmatprep.subr.bf16.mxu0 %v3902
        %4331 = vmatpush1.bf16.msra.mxu0 %v3901
        %4332 = vmatprep.subr.bf16.mxu0 %v3906
        %4333 = vmatpush1.bf16.msra.mxu0 %v3905
        %4334 = vmatprep.subr.bf16.mxu0 %v3910
        %4335 = vmatpush1.bf16.msra.mxu0 %v3909
        %4336 = vmatprep.subr.bf16.mxu0 %v3914
        %4337 = vmatpush1.bf16.msra.mxu0 %v3913
        %4338 = vmatprep.subr.bf16.mxu0 %v3918
        %4339 = vmatpush1.bf16.msra.mxu0 %v3917
        %4340 = vmatprep.subr.bf16.mxu0 %v3922
        %4341 = vmatpush1.bf16.msra.mxu0 %v3921
        %4342 = vmatprep.subr.bf16.mxu0 %v3926
        %4343 = vmatpush1.bf16.msra.mxu0 %v3925
        %4344 = vmatprep.subr.bf16.mxu0 %v3930
        %4345 = vmatpush1.bf16.msra.mxu0 %v3929
        %4346 = vmatprep.subr.bf16.mxu0 %v3934
        %4347 = vmatpush1.bf16.msra.mxu0 %v3933
        %4348 = vmatprep.mubr.bf16.mxu0 %v2656
        %4349 = vmatmul.mubr.bf16.gmra.mrb[0].mxu0 %v2655
        %v4350 = vpop.f32.mrb[0].mxu0
        %v4351 = vadd.f32 %v4310, %v4350
        %v4352 = vpop.f32.mrb[0].mxu0
        %v4353 = vadd.f32 %v4312, %v4352
        %v4354 = vpop.f32.mrb[0].mxu0
        %v4355 = vpop.f32.mrb[0].mxu0
        %4356 = vdwg.mxu0
        %4357 = vmatprep.subr.bf16.mxu0 %v3684
        %4358 = vmatpush1.bf16.msra.mxu0 %v3683
        %4359 = vmatprep.subr.bf16.mxu0 %v3688
        %4360 = vmatpush1.bf16.msra.mxu0 %v3687
        %4361 = vmatprep.subr.bf16.mxu0 %v3692
        %4362 = vmatpush1.bf16.msra.mxu0 %v3691
        %4363 = vmatprep.subr.bf16.mxu0 %v3696
        %4364 = vmatpush1.bf16.msra.mxu0 %v3695
        %4365 = vmatprep.subr.bf16.mxu0 %v3700
        %4366 = vmatpush1.bf16.msra.mxu0 %v3699
        %4367 = vmatprep.subr.bf16.mxu0 %v3704
        %4368 = vmatpush1.bf16.msra.mxu0 %v3703
        %4369 = vmatprep.subr.bf16.mxu0 %v3708
        %4370 = vmatpush1.bf16.msra.mxu0 %v3707
        %4371 = vmatprep.subr.bf16.mxu0 %v3712
        %4372 = vmatpush1.bf16.msra.mxu0 %v3711
        %4373 = vmatprep.subr.bf16.mxu0 %v3716
        %4374 = vmatpush1.bf16.msra.mxu0 %v3715
        %4375 = vmatprep.subr.bf16.mxu0 %v3720
        %4376 = vmatpush1.bf16.msra.mxu0 %v3719
        %4377 = vmatprep.subr.bf16.mxu0 %v3724
        %4378 = vmatpush1.bf16.msra.mxu0 %v3723
        %4379 = vmatprep.subr.bf16.mxu0 %v3728
        %4380 = vmatpush1.bf16.msra.mxu0 %v3727
        %4381 = vmatprep.subr.bf16.mxu0 %v3732
        %4382 = vmatpush1.bf16.msra.mxu0 %v3731
        %4383 = vmatprep.subr.bf16.mxu0 %v3736
        %4384 = vmatpush1.bf16.msra.mxu0 %v3735
        %4385 = vmatprep.subr.bf16.mxu0 %v3740
        %4386 = vmatpush1.bf16.msra.mxu0 %v3739
        %4387 = vmatprep.subr.bf16.mxu0 %v3744
        %4388 = vmatpush1.bf16.msra.mxu0 %v3743
        %4389 = vmatprep.mubr.bf16.mxu0 %v2650
        %4390 = vmatmul.mubr.bf16.gmra.mrb[0].mxu0 %v2649
        %v4391 = vpop.f32.mrb[0].mxu0
        %v4392 = vadd.f32 0.0, %v4391
        %v4393 = vpop.f32.mrb[0].mxu0
        %v4394 = vadd.f32 0.0, %v4393
        %v4395 = vpop.f32.mrb[0].mxu0
        %v4396 = vpop.f32.mrb[0].mxu0
        %4397 = vdwg.mxu0
        %4398 = vmatprep.subr.bf16.mxu0 %v3748
        %4399 = vmatpush1.bf16.msra.mxu0 %v3747
        %4400 = vmatprep.subr.bf16.mxu0 %v3752
        %4401 = vmatpush1.bf16.msra.mxu0 %v3751
        %4402 = vmatprep.subr.bf16.mxu0 %v3756
        %4403 = vmatpush1.bf16.msra.mxu0 %v3755
        %4404 = vmatprep.subr.bf16.mxu0 %v3760
        %4405 = vmatpush1.bf16.msra.mxu0 %v3759
        %4406 = vmatprep.subr.bf16.mxu0 %v3764
        %4407 = vmatpush1.bf16.msra.mxu0 %v3763
        %4408 = vmatprep.subr.bf16.mxu0 %v3768
        %4409 = vmatpush1.bf16.msra.mxu0 %v3767
        %4410 = vmatprep.subr.bf16.mxu0 %v3772
        %4411 = vmatpush1.bf16.msra.mxu0 %v3771
        %4412 = vmatprep.subr.bf16.mxu0 %v3776
        %4413 = vmatpush1.bf16.msra.mxu0 %v3775
        %4414 = vmatprep.subr.bf16.mxu0 %v3780
        %4415 = vmatpush1.bf16.msra.mxu0 %v3779
        %4416 = vmatprep.subr.bf16.mxu0 %v3784
        %4417 = vmatpush1.bf16.msra.mxu0 %v3783
        %4418 = vmatprep.subr.bf16.mxu0 %v3788
        %4419 = vmatpush1.bf16.msra.mxu0 %v3787
        %4420 = vmatprep.subr.bf16.mxu0 %v3792
        %4421 = vmatpush1.bf16.msra.mxu0 %v3791
        %4422 = vmatprep.subr.bf16.mxu0 %v3796
        %4423 = vmatpush1.bf16.msra.mxu0 %v3795
        %4424 = vmatprep.subr.bf16.mxu0 %v3800
        %4425 = vmatpush1.bf16.msra.mxu0 %v3799
        %4426 = vmatprep.subr.bf16.mxu0 %v3804
        %4427 = vmatpush1.bf16.msra.mxu0 %v3803
        %4428 = vmatprep.subr.bf16.mxu0 %v3808
        %4429 = vmatpush1.bf16.msra.mxu0 %v3807
        %4430 = vmatprep.mubr.bf16.mxu0 %v2652
        %4431 = vmatmul.mubr.bf16.gmra.mrb[0].mxu0 %v2651
        %v4432 = vpop.f32.mrb[0].mxu0
        %v4433 = vadd.f32 %v4392, %v4432
        %v4434 = vpop.f32.mrb[0].mxu0
        %v4435 = vadd.f32 %v4394, %v4434
        %v4436 = vpop.f32.mrb[0].mxu0
        %v4437 = vpop.f32.mrb[0].mxu0
        %4438 = vdwg.mxu0
        %4439 = vmatprep.subr.bf16.mxu0 %v3812
        %4440 = vmatpush1.bf16.msra.mxu0 %v3811
        %4441 = vmatprep.subr.bf16.mxu0 %v3816
        %4442 = vmatpush1.bf16.msra.mxu0 %v3815
        %4443 = vmatprep.subr.bf16.mxu0 %v3820
        %4444 = vmatpush1.bf16.msra.mxu0 %v3819
        %4445 = vmatprep.subr.bf16.mxu0 %v3824
        %4446 = vmatpush1.bf16.msra.mxu0 %v3823
        %4447 = vmatprep.subr.bf16.mxu0 %v3828
        %4448 = vmatpush1.bf16.msra.mxu0 %v3827
        %4449 = vmatprep.subr.bf16.mxu0 %v3832
        %4450 = vmatpush1.bf16.msra.mxu0 %v3831
        %4451 = vmatprep.subr.bf16.mxu0 %v3836
        %4452 = vmatpush1.bf16.msra.mxu0 %v3835
        %4453 = vmatprep.subr.bf16.mxu0 %v3840
        %4454 = vmatpush1.bf16.msra.mxu0 %v3839
        %4455 = vmatprep.subr.bf16.mxu0 %v3844
        %4456 = vmatpush1.bf16.msra.mxu0 %v3843
        %4457 = vmatprep.subr.bf16.mxu0 %v3848
        %4458 = vmatpush1.bf16.msra.mxu0 %v3847
        %4459 = vmatprep.subr.bf16.mxu0 %v3852
        %4460 = vmatpush1.bf16.msra.mxu0 %v3851
        %4461 = vmatprep.subr.bf16.mxu0 %v3856
        %4462 = vmatpush1.bf16.msra.mxu0 %v3855
        %4463 = vmatprep.subr.bf16.mxu0 %v3860
        %4464 = vmatpush1.bf16.msra.mxu0 %v3859
        %4465 = vmatprep.subr.bf16.mxu0 %v3864
        %4466 = vmatpush1.bf16.msra.mxu0 %v3863
        %4467 = vmatprep.subr.bf16.mxu0 %v3868
        %4468 = vmatpush1.bf16.msra.mxu0 %v3867
        %4469 = vmatprep.subr.bf16.mxu0 %v3872
        %4470 = vmatpush1.bf16.msra.mxu0 %v3871
        %4471 = vmatprep.mubr.bf16.mxu0 %v2654
        %4472 = vmatmul.mubr.bf16.gmra.mrb[0].mxu0 %v2653
        %v4473 = vpop.f32.mrb[0].mxu0
        %v4474 = vadd.f32 %v4433, %v4473
        %v4475 = vpop.f32.mrb[0].mxu0
        %v4476 = vadd.f32 %v4435, %v4475
        %v4477 = vpop.f32.mrb[0].mxu0
        %v4478 = vpop.f32.mrb[0].mxu0
        %4479 = vdwg.mxu0
        %4480 = vmatprep.subr.bf16.mxu0 %v3876
        %4481 = vmatpush1.bf16.msra.mxu0 %v3875
        %4482 = vmatprep.subr.bf16.mxu0 %v3880
        %4483 = vmatpush1.bf16.msra.mxu0 %v3879
        %4484 = vmatprep.subr.bf16.mxu0 %v3884
        %4485 = vmatpush1.bf16.msra.mxu0 %v3883
        %4486 = vmatprep.subr.bf16.mxu0 %v3888
        %4487 = vmatpush1.bf16.msra.mxu0 %v3887
        %4488 = vmatprep.subr.bf16.mxu0 %v3892
        %4489 = vmatpush1.bf16.msra.mxu0 %v3891
        %4490 = vmatprep.subr.bf16.mxu0 %v3896
        %4491 = vmatpush1.bf16.msra.mxu0 %v3895
        %4492 = vmatprep.subr.bf16.mxu0 %v3900
        %4493 = vmatpush1.bf16.msra.mxu0 %v3899
        %4494 = vmatprep.subr.bf16.mxu0 %v3904
        %4495 = vmatpush1.bf16.msra.mxu0 %v3903
        %4496 = vmatprep.subr.bf16.mxu0 %v3908
        %4497 = vmatpush1.bf16.msra.mxu0 %v3907
        %4498 = vmatprep.subr.bf16.mxu0 %v3912
        %4499 = vmatpush1.bf16.msra.mxu0 %v3911
        %4500 = vmatprep.subr.bf16.mxu0 %v3916
        %4501 = vmatpush1.bf16.msra.mxu0 %v3915
        %4502 = vmatprep.subr.bf16.mxu0 %v3920
        %4503 = vmatpush1.bf16.msra.mxu0 %v3919
        %4504 = vmatprep.subr.bf16.mxu0 %v3924
        %4505 = vmatpush1.bf16.msra.mxu0 %v3923
        %4506 = vmatprep.subr.bf16.mxu0 %v3928
        %4507 = vmatpush1.bf16.msra.mxu0 %v3927
        %4508 = vmatprep.subr.bf16.mxu0 %v3932
        %4509 = vmatpush1.bf16.msra.mxu0 %v3931
        %4510 = vmatprep.subr.bf16.mxu0 %v3936
        %4511 = vmatpush1.bf16.msra.mxu0 %v3935
        %4512 = vmatprep.mubr.bf16.mxu0 %v2656
        %4513 = vmatmul.mubr.bf16.gmra.mrb[0].mxu0 %v2655
        %v4514 = vpop.f32.mrb[0].mxu0
        %v4515 = vadd.f32 %v4474, %v4514
        %v4516 = vpop.f32.mrb[0].mxu0
        %v4517 = vadd.f32 %v4476, %v4516
        %v4518 = vpop.f32.mrb[0].mxu0
        %v4519 = vpop.f32.mrb[0].mxu0
        %4520 = vdwg.mxu0
        %v4521 = vadd.f32 %v2645, %v4351
        %v4522 = vadd.f32 %v2646, %v4353
        %v4523 = vadd.f32 %v2647, %v4515
        %v4524 = vadd.f32 %v2648, %v4517
        %4525 = vst [vmem:[#allocation2] sm:$0xff] %v4521
        %4526 = vst [vmem:[#allocation2 + $0x8] sm:$0xff] %v4522
        %4527 = vst [vmem:[#allocation2 + $0x10] sm:$0xff] %v4523
        %4528 = vst [vmem:[#allocation2 + $0x18] sm:$0xff] %v4524
        %p4529 = scmp.eq.s32.totalorder %s30, 1
        // Predicated region
        $region93: #{tpu_custom_call.1} parent=55 // pred_check
          %p4530 = pneg %p4529
        $region94: #{tpu_custom_call.1} parent=55 // pred_check_branch
          %4532 = sbr.rel (%p4530) target = $region96
        $region95: #{tpu_custom_call.1} parent=55 // pred_region
          %v4533 = vld [vmem:[#allocation2] sm:$0xff]
          %v4534 = vld [vmem:[#allocation2 + $0x8] sm:$0xff]
          %v4535 = vld [vmem:[#allocation2 + $0x10] sm:$0xff]
          %v4536 = vld [vmem:[#allocation2 + $0x18] sm:$0xff]
          %v4537 = vrot.slane %v4533, 4
          %v4538 = vadd.f32 %v4533, %v4537
          %v4539 = vrot.slane %v4538, 2
          %v4540 = vadd.f32 %v4538, %v4539
          %v4541 = vrot.slane %v4540, 1
          %v4542 = vadd.f32 %v4540, %v4541
          %v4543 = vrot.slane %v4534, 4
          %v4544 = vadd.f32 %v4534, %v4543
          %v4545 = vrot.slane %v4544, 2
          %v4546 = vadd.f32 %v4544, %v4545
          %v4547 = vrot.slane %v4546, 1
          %v4548 = vadd.f32 %v4546, %v4547
          %v4549 = vrot.slane %v4535, 4
          %v4550 = vadd.f32 %v4535, %v4549
          %v4551 = vrot.slane %v4550, 2
          %v4552 = vadd.f32 %v4550, %v4551
          %v4553 = vrot.slane %v4552, 1
          %v4554 = vadd.f32 %v4552, %v4553
          %v4555 = vrot.slane %v4536, 4
          %v4556 = vadd.f32 %v4536, %v4555
          %v4557 = vrot.slane %v4556, 2
          %v4558 = vadd.f32 %v4556, %v4557
          %v4559 = vrot.slane %v4558, 1
          %v4560 = vadd.f32 %v4558, %v4559
          %v4561 = vmul.f32 %v4542, %v2432
          %v4562 = vmul.f32 %v4548, %v2432
          %v4563 = vmul.f32 %v4554, %v2432
          %v4564 = vmul.f32 %v4560, %v2432
          %v4565 = vsub.f32 %v4533, %v4561
          %v4566 = vsub.f32 %v4534, %v4562
          %v4567 = vsub.f32 %v4535, %v4563
          %v4568 = vsub.f32 %v4536, %v4564
          %v4569 = vmul.f32 %v4565, %v4565
          %v4570 = vmul.f32 %v4566, %v4566
          %v4571 = vmul.f32 %v4567, %v4567
          %v4572 = vmul.f32 %v4568, %v4568
          %v4573 = vrot.slane %v4569, 4
          %v4574 = vadd.f32 %v4569, %v4573
          %v4575 = vrot.slane %v4574, 2
          %v4576 = vadd.f32 %v4574, %v4575
          %v4577 = vrot.slane %v4576, 1
          %v4578 = vadd.f32 %v4576, %v4577
          %v4579 = vrot.slane %v4570, 4
          %v4580 = vadd.f32 %v4570, %v4579
          %v4581 = vrot.slane %v4580, 2
          %v4582 = vadd.f32 %v4580, %v4581
          %v4583 = vrot.slane %v4582, 1
          %v4584 = vadd.f32 %v4582, %v4583
          %v4585 = vrot.slane %v4571, 4
          %v4586 = vadd.f32 %v4571, %v4585
          %v4587 = vrot.slane %v4586, 2
          %v4588 = vadd.f32 %v4586, %v4587
          %v4589 = vrot.slane %v4588, 1
          %v4590 = vadd.f32 %v4588, %v4589
          %v4591 = vrot.slane %v4572, 4
          %v4592 = vadd.f32 %v4572, %v4591
          %v4593 = vrot.slane %v4592, 2
          %v4594 = vadd.f32 %v4592, %v4593
          %v4595 = vrot.slane %v4594, 1
          %v4596 = vadd.f32 %v4594, %v4595
          %v4597 = vmul.f32 %v4578, %v2432
          %v4598 = vmul.f32 %v4584, %v2432
          %v4599 = vmul.f32 %v4590, %v2432
          %v4600 = vmul.f32 %v4596, %v2432
          %v4601 = vadd.f32 %v4597, 1e-05
          %v4602 = vadd.f32 %v4598, 1e-05
          %v4603 = vadd.f32 %v4599, 1e-05
          %v4604 = vadd.f32 %v4600, 1e-05
          %v4605 = vrsqrt.pop %v4601
          %v4606 = vrsqrt.pop %v4602
          %v4607 = vrsqrt.pop %v4603
          %v4608 = vrsqrt.pop %v4604
          %v4609 = vmul.f32 %v4565, %v4605
          %v4610 = vmul.f32 %v4566, %v4606
          %v4611 = vmul.f32 %v4567, %v4607
          %v4612 = vmul.f32 %v4568, %v4608
          %v4613 = vld [vmem:[#allocation12] sm:$0xf]
          %v4615 = vlaneseq
          %v4616 = vshrl.u32 %v4615, 7
          %v4617 = vsub.s32 0, %v4616
          %v4618 = vrot.slane %v4613, %v4617
          %v4619 = vlaneseq
          %v4620 = vshrl.u32 %v4619, 7
          %v4621 = vsub.s32 1, %v4620
          %v4622 = vrot.slane %v4613, %v4621
          %v4623 = vlaneseq
          %v4624 = vshrl.u32 %v4623, 7
          %v4625 = vsub.s32 2, %v4624
          %v4626 = vrot.slane %v4613, %v4625
          %v4627 = vlaneseq
          %v4628 = vshrl.u32 %v4627, 7
          %v4629 = vsub.s32 3, %v4628
          %v4630 = vrot.slane %v4613, %v4629
          %v4635 = vmul.f32 %v4609, %v4618
          %v4636 = vmul.f32 %v4610, %v4622
          %v4637 = vmul.f32 %v4611, %v4626
          %v4638 = vmul.f32 %v4612, %v4630
          %v4639 = vld [vmem:[#allocation14] sm:$0xf]
          %v4641 = vlaneseq
          %v4642 = vshrl.u32 %v4641, 7
          %v4643 = vsub.s32 0, %v4642
          %v4644 = vrot.slane %v4639, %v4643
          %v4645 = vlaneseq
          %v4646 = vshrl.u32 %v4645, 7
          %v4647 = vsub.s32 1, %v4646
          %v4648 = vrot.slane %v4639, %v4647
          %v4649 = vlaneseq
          %v4650 = vshrl.u32 %v4649, 7
          %v4651 = vsub.s32 2, %v4650
          %v4652 = vrot.slane %v4639, %v4651
          %v4653 = vlaneseq
          %v4654 = vshrl.u32 %v4653, 7
          %v4655 = vsub.s32 3, %v4654
          %v4656 = vrot.slane %v4639, %v4655
          %v4661 = vadd.f32 %v4635, %v4644
          %v4662 = vadd.f32 %v4636, %v4648
          %v4663 = vadd.f32 %v4637, %v4652
          %v4664 = vadd.f32 %v4638, %v4656
          %v4665 = vmax.f32 %v4661, 0.0
          %v4666 = vmax.f32 %v4662, 0.0
          %v4667 = vmax.f32 %v4663, 0.0
          %v4668 = vmax.f32 %v4664, 0.0
          %v4669 = vld [vmem:[#allocation15] sm:$0xf]
          %v4671 = vlaneseq
          %v4672 = vshrl.u32 %v4671, 7
          %v4673 = vsub.s32 0, %v4672
          %v4674 = vrot.slane %v4669, %v4673
          %v4675 = vlaneseq
          %v4676 = vshrl.u32 %v4675, 7
          %v4677 = vsub.s32 1, %v4676
          %v4678 = vrot.slane %v4669, %v4677
          %v4679 = vlaneseq
          %v4680 = vshrl.u32 %v4679, 7
          %v4681 = vsub.s32 2, %v4680
          %v4682 = vrot.slane %v4669, %v4681
          %v4683 = vlaneseq
          %v4684 = vshrl.u32 %v4683, 7
          %v4685 = vsub.s32 3, %v4684
          %v4686 = vrot.slane %v4669, %v4685
          %v4691 = vmul.f32 %v4665, %v4674
          %v4692 = vmul.f32 %v4666, %v4678
          %v4693 = vmul.f32 %v4667, %v4682
          %v4694 = vmul.f32 %v4668, %v4686
          %v4695 = vadd.f32 %v4691, %v4692
          %v4696 = vadd.f32 %v4695, %v4693
          %v4697 = vadd.f32 %v4696, %v4694
          %4698 = vadd.xlane.f32.xlu0 %v4697
          %v4699 = vpop.xlane.xlu0 %4698
          %s4700 = sld [smem:[#allocation3]]
          %v4701 = vstv %s4700
          %v4702 = vadd.f32 %v4699, %v4701
          %vm4703 = vcmask 7168
          %4704 = vst.msk [vmem:[%s9] sm:$0xff] %vm4703, %v4702
        $region96: #{tpu_custom_call.1} parent=55 // pred_fallthru
          _
        // Predicated region
        $region97: #{tpu_custom_call.1} parent=55 // pred_check
          %p4705 = pneg %p252
        $region98: #{tpu_custom_call.1} parent=55 // pred_check_branch
          %4707 = sbr.rel (%p4705) target = $region100
        $region99: #{tpu_custom_call.1} parent=55 // pred_region
          _
        $region100: #{tpu_custom_call.1} parent=55 // pred_fallthru
          _
        // Predicated region
        $region101: #{tpu_custom_call.1} parent=55 // pred_check
          %p4708 = pneg %p252
        $region102: #{tpu_custom_call.1} parent=55 // pred_check_branch
          %4710 = sbr.rel (%p4708) target = $region104
        $region103: #{tpu_custom_call.1} parent=55 // pred_region
          _
        $region104: #{tpu_custom_call.1} parent=55 // pred_fallthru
          _
      $region56: #{tpu_custom_call.1} parent=5 // pred_fallthru
        _
      %p4711 = scmp.le.s32.totalorder 2, %s25
      // Predicated region
      $region105: #{tpu_custom_call.1} parent=5 // pred_check
        %p4712 = pneg %p4711
      $region106: #{tpu_custom_call.1} parent=5 // pred_check_branch
        %4714 = sbr.rel (%p4712) target = $region108
      $region107: #{tpu_custom_call.1} parent=5 // pred_region
        %s4715 = ssub.s32 %s25, 2
      $region108: #{tpu_custom_call.1} parent=5 // pred_fallthru
        _
    $region6: #{tpu_custom_call.1} parent=1 // loop_footer
      %s29 = sadd.s32 1, %s25
    $region7: #{tpu_custom_call.1} parent=1 // loop_footer_branch
      %24 = sbr.rel target = $region3
    $region8: #{tpu_custom_call.1} parent=1 // loop_exit
      _
    %4716 = vsyncpa [#allocation5], 1
    %s4717 = scalar_lea.sflag [#allocation5], 1
    %4718 = vsyncpa %s4717, 1
    %4719 = vsyncpa [#allocation7], 1
    %s4720 = scalar_lea.sflag [#allocation7], 1
    %4721 = vsyncpa %s4720, 1
    %4722 = vsyncpa [#allocation10], 1
    %s4723 = scalar_lea.sflag [#allocation10], 1
    %4724 = vsyncpa %s4723, 1
    %4725 = vsyncpa [#allocation13], 1
    %4726 = vsyncpa [#allocation16], 1

</llo_original>
